<compile_context>
chip_gen: v6e
topology: v6e:2x2x1
jax: 0.10.0
libtpu: 0.0.40
codegen_flags: <defaults>
</compile_context>

<pallas_src>
import functools
import math

import jax
import jax.numpy as jnp
from jax import lax
from jax.experimental import pallas as pl
from jax.experimental.pallas import tpu as pltpu


# ----------------------------- in-kernel helpers -----------------------------

def _layer_norm_f32(x, w, b, eps=1e-5):
    # x: (L, D) f32 ; w, b: (1, D) f32.  Two-pass (PyTorch-style) statistics.
    mu = jnp.mean(x, axis=-1, keepdims=True)
    xc = x - mu
    var = jnp.mean(xc * xc, axis=-1, keepdims=True)
    return xc * lax.rsqrt(var + eps) * w + b


def _mha_from_kv(q_in, kv_bf16, wq, bq, wo, bo, pv_ref, *, nhead, head_dim,
                 need_weights):
    """Multi-head attention with pre-projected, bf16-resident K/V.

    q_in: (Lq, D) f32.  1/sqrt(head_dim) is already folded into wq/bq.
    kv_bf16: (Lk, 2D) bf16 (packed K | V, already biased).
    wq/wo: (D, D) bf16 (in, out).  bq/bo: (1, D) f32.
    pv_ref: (Lq, D) f32 VMEM scratch — per-head PV slices, then ONE fused
    (Lq,D)x(D,D) out-projection dot.
    Returns (attn_out (Lq, D) f32, head-averaged weights (Lq, Lk) f32 or None).
    """
    D = nhead * head_dim
    q = jnp.dot(q_in.astype(jnp.bfloat16), wq,
                preferred_element_type=jnp.float32) + bq            # (Lq, D) f32
    q = q.astype(jnp.bfloat16)
    k = kv_bf16[:, :D]
    v = kv_bf16[:, D:]

    w_sum = None
    # Static unrolled head loop (small nhead); each step is a plain 2-D MXU dot.
    # TODO(synk): for nhead >= 16 switch to lax.fori_loop(..., unroll=True) with
    # pl.ds slices to bound live ranges.
    for h in range(nhead):
        lo, hi = h * head_dim, (h + 1) * head_dim
        s = lax.dot_general(q[:, lo:hi], k[:, lo:hi],
                            (((1,), (1,)), ((), ())),
                            preferred_element_type=jnp.float32)     # (Lq, Lk)
        s = s - jnp.max(s, axis=-1, keepdims=True)
        e = jnp.exp(s)
        denom = jnp.sum(e, axis=-1, keepdims=True)
        if need_weights:
            p = e / denom                       # exact: weights are user-visible
            w_sum = p if w_sum is None else w_sum + p
        else:
            p = e * pl.reciprocal(denom, approx=True)   # EUP, value path only
        pv_ref[:, lo:hi] = jnp.dot(p.astype(jnp.bfloat16), v[:, lo:hi],
                                   preferred_element_type=jnp.float32)

    # Single fused out-projection: full contraction depth D on the MXU.
    attn_out = jnp.dot(pv_ref[...].astype(jnp.bfloat16), wo,
                       preferred_element_type=jnp.float32) + bo     # (Lq, D)
    if need_weights:
        return attn_out, w_sum * (1.0 / nhead)
    return attn_out, None


# --------------------------------- the kernel --------------------------------

def _decoder_kernel(tgt_ref, mem_ref,
                    sa_wq_ref, sa_bq_ref, sa_wkv_ref, sa_bkv_ref, sa_wo_ref, sa_bo_ref,
                    ca_wq_ref, ca_bq_ref, ca_wkv_ref, ca_bkv_ref, ca_wo_ref, ca_bo_ref,
                    w1_ref, b1_ref, w2_ref, b2_ref,
                    n1w_ref, n1b_ref, n2w_ref, n2b_ref, n3w_ref, n3b_ref,
                    out_ref, attn_ref,
                    sa_kv_ref, ca_kv_ref, pv_ref,
                    *, nhead, head_dim, tq, ff_chunk):
    qt = pl.program_id(1)

    # --- per-batch K/V projections, hoisted out of the query-tile loop ---------
    @pl.when(qt == 0)
    def _():
        tgt_bf = tgt_ref[0].astype(jnp.bfloat16)                    # (T, D)
        sa_kv_ref[...] = (jnp.dot(tgt_bf, sa_wkv_ref[...],
                                  preferred_element_type=jnp.float32)
                          + sa_bkv_ref[...]).astype(jnp.bfloat16)   # (T, 2D) bf16
        mem_bf = mem_ref[0].astype(jnp.bfloat16)                    # (S, D)
        ca_kv_ref[...] = (jnp.dot(mem_bf, ca_wkv_ref[...],
                                  preferred_element_type=jnp.float32)
                          + ca_bkv_ref[...]).astype(jnp.bfloat16)   # (S, 2D) bf16

    # Query tile sliced from the already-resident full-tgt block (no extra stream).
    q_start = pl.multiple_of(qt * tq, tq)
    x = tgt_ref[0, pl.ds(q_start, tq), :].astype(jnp.float32)       # (tq, D) f32

    # --- self-attention + residual + norm1 -------------------------------------
    sa_out, _ = _mha_from_kv(x, sa_kv_ref[...],
                             sa_wq_ref[...], sa_bq_ref[...],
                             sa_wo_ref[...], sa_bo_ref[...], pv_ref,
                             nhead=nhead, head_dim=head_dim, need_weights=False)
    x = _layer_norm_f32(x + sa_out, n1w_ref[...], n1b_ref[...])

    # --- cross-attention + residual + norm2 -------------------------------------
    ca_out, attn_w = _mha_from_kv(x, ca_kv_ref[...],
                                  ca_wq_ref[...], ca_bq_ref[...],
                                  ca_wo_ref[...], ca_bo_ref[...], pv_ref,
                                  nhead=nhead, head_dim=head_dim, need_weights=True)
    x = _layer_norm_f32(x + ca_out, n2w_ref[...], n2b_ref[...])

    # --- feed-forward (chunked over the hidden dim) + residual + norm3 ----------
    x_bf = x.astype(jnp.bfloat16)
    ff_dim = w1_ref.shape[1]
    ff = None
    for lo in range(0, ff_dim, ff_chunk):      # static chunk loop; bounds live FFN tiles
        hi = lo + ff_chunk
        h = jnp.dot(x_bf, w1_ref[:, lo:hi], preferred_element_type=jnp.float32)
        h = jnp.maximum(h + b1_ref[:, lo:hi], 0.0)                   # ReLU
        term = jnp.dot(h.astype(jnp.bfloat16), w2_ref[lo:hi, :],
                       preferred_element_type=jnp.float32)
        ff = term if ff is None else ff + term
    ff = ff + b2_ref[...]
    x = _layer_norm_f32(x + ff, n3w_ref[...], n3b_ref[...])

    out_ref[0] = x.astype(out_ref.dtype)
    attn_ref[0] = attn_w.astype(attn_ref.dtype)


# --------------------------------- wrapper ------------------------------------

def transformer_decoder_layer(tgt, memory, params, nhead):
    """tgt: (B, T, D), memory: (B, S, D). Returns (out (B,T,D), attn (B,T,S))."""
    B, T, D = tgt.shape
    _, S, _ = memory.shape
    assert D % nhead == 0
    head_dim = D // nhead

    # Query tiling: many pipeline steps for long sequences, full seq otherwise.
    # TODO(synk): pad T to a multiple of 128 for long non-aligned sequences instead
    # of falling back to a single full-sequence tile.
    tq = 128 if (T % 128 == 0) else T
    n_q_tiles = T // tq

    ff_dim = params["w1"].shape[0]
    ff_chunk = 512 if (ff_dim > 512 and ff_dim % 512 == 0) else ff_dim

    f32, bf16 = jnp.float32, jnp.bfloat16
    scale = 1.0 / math.sqrt(head_dim)

    def t_bf16(w, s=1.0):   # PyTorch (out, in) -> (in, out), optional scale, bf16
        return (jnp.asarray(w, f32).T * s).astype(bf16)

    def row(b, s=1.0):      # 1-D param -> (1, N) f32 row for lane broadcast
        return (jnp.asarray(b, f32) * s).reshape(1, -1)

    sa_in_w, sa_in_b = params["sa_in_w"], params["sa_in_b"]
    ca_in_w, ca_in_b = params["ca_in_w"], params["ca_in_b"]

    weight_args = (
        # 1/sqrt(head_dim) folded into the q projections (weights AND biases).
        t_bf16(sa_in_w[:D], scale), row(sa_in_b[:D], scale),   # self-attn q proj
        t_bf16(sa_in_w[D:]), row(sa_in_b[D:]),                 # self-attn fused K/V proj
        t_bf16(params["sa_out_w"]), row(params["sa_out_b"]),
        t_bf16(ca_in_w[:D], scale), row(ca_in_b[:D], scale),   # cross-attn q proj
        t_bf16(ca_in_w[D:]), row(ca_in_b[D:]),                 # cross-attn fused K/V proj
        t_bf16(params["ca_out_w"]), row(params["ca_out_b"]),
        t_bf16(params["w1"]), row(params["b1"]),
        t_bf16(params["w2"]), row(params["b2"]),
        row(params["n1w"]), row(params["n1b"]),
        row(params["n2w"]), row(params["n2b"]),
        row(params["n3w"]), row(params["n3b"]),
    )

    # Weights fully resident in VMEM (single copy, no per-step double buffering).
    # TODO(synk): for very large D*FF on v7x (64 MiB VMEM), stream w1/w2 with a
    # blocked BlockSpec over the ff axis instead of full residency.
    w_spec = pl.BlockSpec(memory_space=pltpu.MemorySpace.VMEM)

    in_specs = [
        pl.BlockSpec((1, T, D), lambda b, t: (b, 0, 0)),    # full tgt (const over t)
        pl.BlockSpec((1, S, D), lambda b, t: (b, 0, 0)),    # full memory (const over t)
    ] + [w_spec] * len(weight_args)

    out_specs = (
        pl.BlockSpec((1, tq, D), lambda b, t: (b, t, 0)),
        # TODO(synk): pad S to a multiple of 128 / make this output optional to keep
        # the attention-weights store lane-dense when it is not needed.
        pl.BlockSpec((1, tq, S), lambda b, t: (b, t, 0)),
    )

    scratch_shapes = [
        pltpu.VMEM((T, 2 * D), bf16),   # self-attn packed K|V, carried across q tiles
        pltpu.VMEM((S, 2 * D), bf16),   # cross-attn packed K|V, carried across q tiles
        pltpu.VMEM((tq, D), f32),       # per-head PV slab -> fused out-projection
    ]

    # Scoped-VMEM budget: resident weights + carried scratch + pipelined activation
    # tiles + temporaries; cap at 48 MiB to leave headroom on v7x's 64 MiB.
    weight_bytes = sum(int(a.size) * a.dtype.itemsize for a in weight_args)
    scratch_bytes = 2 * (T * 2 * D + S * 2 * D) + 4 * tq * D
    act_bytes = 4 * (2 * (T * D + S * D)              # double-buffered input blocks
                     + 2 * (tq * D + tq * S)          # double-buffered output tiles
                     + 3 * tq * max(T, S)             # score / softmax temporaries
                     + 4 * tq * max(D, ff_chunk))     # misc f32 temporaries
    vmem_limit = int(min(48 * 1024 * 1024,
                         max(16 * 1024 * 1024,
                             weight_bytes + scratch_bytes + act_bytes + (4 << 20))))

    kernel = functools.partial(_decoder_kernel, nhead=nhead, head_dim=head_dim,
                               tq=tq, ff_chunk=ff_chunk)

    out, attn = pl.pallas_call(
        kernel,
        out_shape=(jax.ShapeDtypeStruct((B, T, D), tgt.dtype),
                   jax.ShapeDtypeStruct((B, T, S), jnp.float32)),
        grid_spec=pltpu.PrefetchScalarGridSpec(
            num_scalar_prefetch=0,
            grid=(B, n_q_tiles),
            in_specs=in_specs,
            out_specs=out_specs,
            scratch_shapes=scratch_shapes),
        compiler_params=pltpu.CompilerParams(
            # Batch axis parallel (megacore); query-tile axis carries the K/V scratch
            # so it must stay "arbitrary".
            dimension_semantics=("parallel", "arbitrary"),
            vmem_limit_bytes=vmem_limit),
    )(tgt, memory, *weight_args)
    return out, attn


# ----------------- independent pure-JAX (PyTorch-semantics) reference -----------------

def _torch_style_reference(tgt, memory, p, nhead):
    """f32 re-implementation of nn.TransformerDecoderLayer (eval), batch-major.
    Written directly from the PyTorch math; shares no code with the kernel."""
    def layer_norm(x, w, b, eps=1e-5):
        mu = x.mean(-1, keepdims=True)
        var = ((x - mu) ** 2).mean(-1, keepdims=True)
        return (x - mu) / jnp.sqrt(var + eps) * w + b

    def mha(q_in, k_in, v_in, in_w, in_b, out_w, out_b):
        B, Lq, D = q_in.shape
        Lk = k_in.shape[1]
        hd = D // nhead
        q = q_in @ in_w[:D].T + in_b[:D]
        k = k_in @ in_w[D:2 * D].T + in_b[D:2 * D]
        v = v_in @ in_w[2 * D:].T + in_b[2 * D:]
        q = q.reshape(B, Lq, nhead, hd).transpose(0, 2, 1, 3) * (1.0 / math.sqrt(hd))
        k = k.reshape(B, Lk, nhead, hd).transpose(0, 2, 1, 3)
        v = v.reshape(B, Lk, nhead, hd).transpose(0, 2, 1, 3)
        s = q @ k.transpose(0, 1, 3, 2)                       # (B, H, Lq, Lk)
        a = jax.nn.softmax(s, axis=-1)
        o = (a @ v).transpose(0, 2, 1, 3).reshape(B, Lq, D)
        return o @ out_w.T + out_b, a.mean(axis=1)            # weights averaged over heads

    x = tgt
    sa, _ = mha(x, x, x, p["sa_in_w"], p["sa_in_b"], p["sa_out_w"], p["sa_out_b"])
    x = layer_norm(x + sa, p["n1w"], p["n1b"])
    ca, attn = mha(x, memory, memory, p["ca_in_w"], p["ca_in_b"],
                   p["ca_out_w"], p["ca_out_b"])
    x = layer_norm(x + ca, p["n2w"], p["n2b"])
    h = jax.nn.relu(x @ p["w1"].T + p["b1"])
    ff = h @ p["w2"].T + p["b2"]
    x = layer_norm(x + ff, p["n3w"], p["n3b"])
    return x, attn


# --------------------------------- params --------------------------------------

def init_params(key, d_model, nhead, dim_ff):
    """Parameters in PyTorch orientation: in_proj_weight (3D, D), linearN.weight (out, in)."""
    ks = jax.random.split(key, 16)
    D, FF = d_model, dim_ff

    def w(k, shape, scale=0.05):
        return jax.random.normal(k, shape, jnp.float32) * scale

    return {
        "sa_in_w": w(ks[0], (3 * D, D)), "sa_in_b": w(ks[1], (3 * D,), 0.02),
        "sa_out_w": w(ks[2], (D, D)),    "sa_out_b": w(ks[3], (D,), 0.02),
        "ca_in_w": w(ks[4], (3 * D, D)), "ca_in_b": w(ks[5], (3 * D,), 0.02),
        "ca_out_w": w(ks[6], (D, D)),    "ca_out_b": w(ks[7], (D,), 0.02),
        "w1": w(ks[8], (FF, D)),         "b1": w(ks[9], (FF,), 0.02),
        "w2": w(ks[10], (D, FF)),        "b2": w(ks[11], (D,), 0.02),
        "n1w": 1.0 + w(ks[12], (D,), 0.1), "n1b": w(ks[13], (D,), 0.05),
        "n2w": 1.0 + w(ks[14], (D,), 0.1), "n2b": w(ks[15], (D,), 0.05),
        "n3w": jnp.ones((D,), jnp.float32), "n3b": jnp.zeros((D,), jnp.float32),
    }


# ----------------------------------- main ---------------------------------------

if __name__ == "__main__":
    B, T, S, D, NHEAD, FF = 2, 8, 16, 32, 4, 64

    key = jax.random.PRNGKey(0)
    k_tgt, k_mem, k_par = jax.random.split(key, 3)
    tgt = jax.random.normal(k_tgt, (B, T, D), jnp.float32)
    memory = jax.random.normal(k_mem, (B, S, D), jnp.float32)
    params = init_params(k_par, D, NHEAD, FF)

    out, attn = transformer_decoder_layer(tgt, memory, params, NHEAD)
    out = jax.block_until_ready(out)
    attn = jax.block_until_ready(attn)

    # Correctness vs an independent f32 reference of the PyTorch-layer math.
    # Tolerances account for bf16 matmul inputs (cross-attn weights use an exact
    # softmax divide; the self-attn value path uses the EUP approximate reciprocal).
    ref_out, ref_attn = _torch_style_reference(tgt, memory, params, NHEAD)
    assert out.shape == (B, T, D) and attn.shape == (B, T, S)
    assert jnp.allclose(out, ref_out, atol=3e-2, rtol=3e-2), \
        float(jnp.max(jnp.abs(out - ref_out)))
    assert jnp.allclose(attn, ref_attn, atol=5e-3, rtol=3e-2), \
        float(jnp.max(jnp.abs(attn - ref_attn)))

    print("KERNEL_OK")
</pallas_src>

<mosaic_0001>
module attributes {stable_mosaic.version = 11 : i64} {
  func.func @_decoder_kernel(%arg0: i32, %arg1: i32, %arg2: memref<1x8x32xf32, #tpu.memory_space<vmem>>, %arg3: memref<1x16x32xf32, #tpu.memory_space<vmem>>, %arg4: memref<32x32xbf16, #tpu.memory_space<vmem>>, %arg5: memref<1x32xf32, #tpu.memory_space<vmem>>, %arg6: memref<32x64xbf16, #tpu.memory_space<vmem>>, %arg7: memref<1x64xf32, #tpu.memory_space<vmem>>, %arg8: memref<32x32xbf16, #tpu.memory_space<vmem>>, %arg9: memref<1x32xf32, #tpu.memory_space<vmem>>, %arg10: memref<32x32xbf16, #tpu.memory_space<vmem>>, %arg11: memref<1x32xf32, #tpu.memory_space<vmem>>, %arg12: memref<32x64xbf16, #tpu.memory_space<vmem>>, %arg13: memref<1x64xf32, #tpu.memory_space<vmem>>, %arg14: memref<32x32xbf16, #tpu.memory_space<vmem>>, %arg15: memref<1x32xf32, #tpu.memory_space<vmem>>, %arg16: memref<32x64xbf16, #tpu.memory_space<vmem>>, %arg17: memref<1x64xf32, #tpu.memory_space<vmem>>, %arg18: memref<64x32xbf16, #tpu.memory_space<vmem>>, %arg19: memref<1x32xf32, #tpu.memory_space<vmem>>, %arg20: memref<1x32xf32, #tpu.memory_space<vmem>>, %arg21: memref<1x32xf32, #tpu.memory_space<vmem>>, %arg22: memref<1x32xf32, #tpu.memory_space<vmem>>, %arg23: memref<1x32xf32, #tpu.memory_space<vmem>>, %arg24: memref<1x32xf32, #tpu.memory_space<vmem>>, %arg25: memref<1x32xf32, #tpu.memory_space<vmem>>, %arg26: memref<1x8x32xf32, #tpu.memory_space<vmem>>, %arg27: memref<1x8x16xf32, #tpu.memory_space<vmem>>, %arg28: memref<8x64xbf16, #tpu.memory_space<vmem>>, %arg29: memref<16x64xbf16, #tpu.memory_space<vmem>>, %arg30: memref<8x32xf32, #tpu.memory_space<vmem>>) attributes {dimension_semantics = [#tpu.dimension_semantics<parallel>, #tpu.dimension_semantics<arbitrary>], iteration_bounds = array<i64: 2, 1>, scalar_prefetch = 0 : i64, scratch_operands = 3 : i64, tpu.core_type = #tpu.core_type<tc>, window_params = [{transform_indices = @transform_0, window_bounds = array<i64: 1, 8, 32>}, {transform_indices = @transform_1, window_bounds = array<i64: 1, 16, 32>}, {pipeline_mode = #tpu.pipeline_mode<synchronous>, transform_indices = @transform_2, window_bounds = array<i64: 32, 32>}, {pipeline_mode = #tpu.pipeline_mode<synchronous>, transform_indices = @transform_3, window_bounds = array<i64: 1, 32>}, {pipeline_mode = #tpu.pipeline_mode<synchronous>, transform_indices = @transform_4, window_bounds = array<i64: 32, 64>}, {pipeline_mode = #tpu.pipeline_mode<synchronous>, transform_indices = @transform_5, window_bounds = array<i64: 1, 64>}, {pipeline_mode = #tpu.pipeline_mode<synchronous>, transform_indices = @transform_6, window_bounds = array<i64: 32, 32>}, {pipeline_mode = #tpu.pipeline_mode<synchronous>, transform_indices = @transform_7, window_bounds = array<i64: 1, 32>}, {pipeline_mode = #tpu.pipeline_mode<synchronous>, transform_indices = @transform_8, window_bounds = array<i64: 32, 32>}, {pipeline_mode = #tpu.pipeline_mode<synchronous>, transform_indices = @transform_9, window_bounds = array<i64: 1, 32>}, {pipeline_mode = #tpu.pipeline_mode<synchronous>, transform_indices = @transform_10, window_bounds = array<i64: 32, 64>}, {pipeline_mode = #tpu.pipeline_mode<synchronous>, transform_indices = @transform_11, window_bounds = array<i64: 1, 64>}, {pipeline_mode = #tpu.pipeline_mode<synchronous>, transform_indices = @transform_12, window_bounds = array<i64: 32, 32>}, {pipeline_mode = #tpu.pipeline_mode<synchronous>, transform_indices = @transform_13, window_bounds = array<i64: 1, 32>}, {pipeline_mode = #tpu.pipeline_mode<synchronous>, transform_indices = @transform_14, window_bounds = array<i64: 32, 64>}, {pipeline_mode = #tpu.pipeline_mode<synchronous>, transform_indices = @transform_15, window_bounds = array<i64: 1, 64>}, {pipeline_mode = #tpu.pipeline_mode<synchronous>, transform_indices = @transform_16, window_bounds = array<i64: 64, 32>}, {pipeline_mode = #tpu.pipeline_mode<synchronous>, transform_indices = @transform_17, window_bounds = array<i64: 1, 32>}, {pipeline_mode = #tpu.pipeline_mode<synchronous>, transform_indices = @transform_18, window_bounds = array<i64: 1, 32>}, {pipeline_mode = #tpu.pipeline_mode<synchronous>, transform_indices = @transform_19, window_bounds = array<i64: 1, 32>}, {pipeline_mode = #tpu.pipeline_mode<synchronous>, transform_indices = @transform_20, window_bounds = array<i64: 1, 32>}, {pipeline_mode = #tpu.pipeline_mode<synchronous>, transform_indices = @transform_21, window_bounds = array<i64: 1, 32>}, {pipeline_mode = #tpu.pipeline_mode<synchronous>, transform_indices = @transform_22, window_bounds = array<i64: 1, 32>}, {pipeline_mode = #tpu.pipeline_mode<synchronous>, transform_indices = @transform_23, window_bounds = array<i64: 1, 32>}, {transform_indices = @transform_24, window_bounds = array<i64: 1, 8, 32>}, {transform_indices = @transform_25, window_bounds = array<i64: 1, 8, 16>}]} {
    %c0_i32 = arith.constant 0 : i32
    %0 = arith.cmpi eq, %arg1, %c0_i32 : i32
    %1 = arith.extui %0 : i1 to i32
    %c0_i32_0 = arith.constant 0 : i32
    %2 = arith.cmpi ne, %1, %c0_i32_0 : i32
    scf.if %2 {
      %c0_119 = arith.constant 0 : index
      %c0_120 = arith.constant 0 : index
      %c0_121 = arith.constant 0 : index
      %268 = vector.load %arg2[%c0_119, %c0_120, %c0_121] : memref<1x8x32xf32, #tpu.memory_space<vmem>>, vector<1x8x32xf32>
      %269 = vector.shape_cast %268 : vector<1x8x32xf32> to vector<8x32xf32>
      %270 = arith.truncf %269 : vector<8x32xf32> to vector<8x32xbf16>
      %c0_122 = arith.constant 0 : index
      %c0_123 = arith.constant 0 : index
      %271 = vector.load %arg6[%c0_122, %c0_123] : memref<32x64xbf16, #tpu.memory_space<vmem>>, vector<32x64xbf16>
      %cst_124 = arith.constant dense<0.000000e+00> : vector<8x64xf32>
      %272 = tpu.matmul %270, %271, %cst_124 {dimension_numbers = #tpu.dot_dimension_numbers<[1], [0], [0], [1], [0, 0, 1, 1], [], []>} : vector<8x32xbf16>, vector<32x64xbf16>, vector<8x64xf32> -> vector<8x64xf32>
      %c0_125 = arith.constant 0 : index
      %c0_126 = arith.constant 0 : index
      %273 = vector.load %arg7[%c0_125, %c0_126] : memref<1x64xf32, #tpu.memory_space<vmem>>, vector<1x64xf32>
      %274 = vector.broadcast %273 : vector<1x64xf32> to vector<8x64xf32>
      %275 = arith.addf %272, %274 : vector<8x64xf32>
      %276 = arith.truncf %275 : vector<8x64xf32> to vector<8x64xbf16>
      %c0_127 = arith.constant 0 : index
      %c0_128 = arith.constant 0 : index
      %277 = vector.load %arg28[%c0_127, %c0_128] : memref<8x64xbf16, #tpu.memory_space<vmem>>, vector<8x64xbf16>
      tpu.vector_store %arg28[%c0_127, %c0_128], %276 {strides = array<i32>} : memref<8x64xbf16, #tpu.memory_space<vmem>>, vector<8x64xbf16>,
      %c0_129 = arith.constant 0 : index
      %c0_130 = arith.constant 0 : index
      %c0_131 = arith.constant 0 : index
      %278 = vector.load %arg3[%c0_129, %c0_130, %c0_131] : memref<1x16x32xf32, #tpu.memory_space<vmem>>, vector<1x16x32xf32>
      %279 = vector.shape_cast %278 : vector<1x16x32xf32> to vector<16x32xf32>
      %280 = arith.truncf %279 : vector<16x32xf32> to vector<16x32xbf16>
      %c0_132 = arith.constant 0 : index
      %c0_133 = arith.constant 0 : index
      %281 = vector.load %arg12[%c0_132, %c0_133] : memref<32x64xbf16, #tpu.memory_space<vmem>>, vector<32x64xbf16>
      %cst_134 = arith.constant dense<0.000000e+00> : vector<16x64xf32>
      %282 = tpu.matmul %280, %281, %cst_134 {dimension_numbers = #tpu.dot_dimension_numbers<[1], [0], [0], [1], [0, 0, 1, 1], [], []>} : vector<16x32xbf16>, vector<32x64xbf16>, vector<16x64xf32> -> vector<16x64xf32>
      %c0_135 = arith.constant 0 : index
      %c0_136 = arith.constant 0 : index
      %283 = vector.load %arg13[%c0_135, %c0_136] : memref<1x64xf32, #tpu.memory_space<vmem>>, vector<1x64xf32>
      %284 = vector.broadcast %283 : vector<1x64xf32> to vector<16x64xf32>
      %285 = arith.addf %282, %284 : vector<16x64xf32>
      %286 = arith.truncf %285 : vector<16x64xf32> to vector<16x64xbf16>
      %c0_137 = arith.constant 0 : index
      %c0_138 = arith.constant 0 : index
      %287 = vector.load %arg29[%c0_137, %c0_138] : memref<16x64xbf16, #tpu.memory_space<vmem>>, vector<16x64xbf16>
      tpu.vector_store %arg29[%c0_137, %c0_138], %286 {strides = array<i32>} : memref<16x64xbf16, #tpu.memory_space<vmem>>, vector<16x64xbf16>,
    } else {
    }
    %c8_i32 = arith.constant 8 : i32
    %3 = arith.muli %arg1, %c8_i32 : i32
    %4 = tpu.assume_multiple %3, 8 : i32
    %c0 = arith.constant 0 : index
    %5 = arith.index_cast %4 : i32 to index
    %c0_1 = arith.constant 0 : index
    %6 = vector.load %arg2[%c0, %5, %c0_1] : memref<1x8x32xf32, #tpu.memory_space<vmem>>, vector<1x8x32xf32>
    %7 = vector.shape_cast %6 : vector<1x8x32xf32> to vector<8x32xf32>
    %c0_2 = arith.constant 0 : index
    %c0_3 = arith.constant 0 : index
    %8 = vector.load %arg28[%c0_2, %c0_3] : memref<8x64xbf16, #tpu.memory_space<vmem>>, vector<8x64xbf16>
    %c0_4 = arith.constant 0 : index
    %c0_5 = arith.constant 0 : index
    %9 = vector.load %arg4[%c0_4, %c0_5] : memref<32x32xbf16, #tpu.memory_space<vmem>>, vector<32x32xbf16>
    %c0_6 = arith.constant 0 : index
    %c0_7 = arith.constant 0 : index
    %10 = vector.load %arg5[%c0_6, %c0_7] : memref<1x32xf32, #tpu.memory_space<vmem>>, vector<1x32xf32>
    %c0_8 = arith.constant 0 : index
    %c0_9 = arith.constant 0 : index
    %11 = vector.load %arg8[%c0_8, %c0_9] : memref<32x32xbf16, #tpu.memory_space<vmem>>, vector<32x32xbf16>
    %c0_10 = arith.constant 0 : index
    %c0_11 = arith.constant 0 : index
    %12 = vector.load %arg9[%c0_10, %c0_11] : memref<1x32xf32, #tpu.memory_space<vmem>>, vector<1x32xf32>
    %13 = arith.truncf %7 : vector<8x32xf32> to vector<8x32xbf16>
    %cst = arith.constant dense<0.000000e+00> : vector<8x32xf32>
    %14 = tpu.matmul %13, %9, %cst {dimension_numbers = #tpu.dot_dimension_numbers<[1], [0], [0], [1], [0, 0, 1, 1], [], []>} : vector<8x32xbf16>, vector<32x32xbf16>, vector<8x32xf32> -> vector<8x32xf32>
    %15 = vector.broadcast %10 : vector<1x32xf32> to vector<8x32xf32>
    %16 = arith.addf %14, %15 : vector<8x32xf32>
    %17 = arith.truncf %16 : vector<8x32xf32> to vector<8x32xbf16>
    %18 = vector.extract_strided_slice %8 {offsets = [0, 0], sizes = [8, 32], strides = [1, 1]} : vector<8x64xbf16> to vector<8x32xbf16>
    %19 = vector.extract_strided_slice %8 {offsets = [0, 32], sizes = [8, 32], strides = [1, 1]} : vector<8x64xbf16> to vector<8x32xbf16>
    %20 = vector.extract_strided_slice %17 {offsets = [0, 0], sizes = [8, 8], strides = [1, 1]} : vector<8x32xbf16> to vector<8x8xbf16>
    %21 = vector.extract_strided_slice %18 {offsets = [0, 0], sizes = [8, 8], strides = [1, 1]} : vector<8x32xbf16> to vector<8x8xbf16>
    %cst_12 = arith.constant dense<0.000000e+00> : vector<8x8xf32>
    %22 = tpu.matmul %20, %21, %cst_12 {dimension_numbers = #tpu.dot_dimension_numbers<[1], [1], [0], [0], [0, 0, 1, 0], [], []>} : vector<8x8xbf16>, vector<8x8xbf16>, vector<8x8xf32> -> vector<8x8xf32>
    %cst_13 = arith.constant dense<0xFF800000> : vector<8xf32>
    %23 = vector.multi_reduction <maximumf>, %22, %cst_13 [1] : vector<8x8xf32> to vector<8xf32>
    %24 = vector.shape_cast %23 : vector<8xf32> to vector<8x1xf32>
    %25 = vector.broadcast %24 : vector<8x1xf32> to vector<8x8xf32>
    %26 = arith.subf %22, %25 : vector<8x8xf32>
    %27 = math.exp %26 : vector<8x8xf32>
    %cst_14 = arith.constant dense<0.000000e+00> : vector<8xf32>
    %28 = vector.multi_reduction <add>, %27, %cst_14 [1] : vector<8x8xf32> to vector<8xf32>
    %29 = vector.shape_cast %28 : vector<8xf32> to vector<8x1xf32>
    %30 = tpu.reciprocal %29 {approx = true} : vector<8x1xf32> -> vector<8x1xf32>
    %31 = vector.broadcast %30 : vector<8x1xf32> to vector<8x8xf32>
    %32 = arith.mulf %27, %31 : vector<8x8xf32>
    %33 = arith.truncf %32 : vector<8x8xf32> to vector<8x8xbf16>
    %34 = vector.extract_strided_slice %19 {offsets = [0, 0], sizes = [8, 8], strides = [1, 1]} : vector<8x32xbf16> to vector<8x8xbf16>
    %cst_15 = arith.constant dense<0.000000e+00> : vector<8x8xf32>
    %35 = tpu.matmul %33, %34, %cst_15 {dimension_numbers = #tpu.dot_dimension_numbers<[1], [0], [0], [1], [0, 0, 1, 1], [], []>} : vector<8x8xbf16>, vector<8x8xbf16>, vector<8x8xf32> -> vector<8x8xf32>
    %c0_16 = arith.constant 0 : index
    %c0_17 = arith.constant 0 : index
    %36 = vector.load %arg30[%c0_16, %c0_17] : memref<8x32xf32, #tpu.memory_space<vmem>>, vector<8x8xf32>
    tpu.vector_store %arg30[%c0_16, %c0_17], %35 {strides = array<i32>} : memref<8x32xf32, #tpu.memory_space<vmem>>, vector<8x8xf32>,
    %37 = vector.extract_strided_slice %17 {offsets = [0, 8], sizes = [8, 8], strides = [1, 1]} : vector<8x32xbf16> to vector<8x8xbf16>
    %38 = vector.extract_strided_slice %18 {offsets = [0, 8], sizes = [8, 8], strides = [1, 1]} : vector<8x32xbf16> to vector<8x8xbf16>
    %cst_18 = arith.constant dense<0.000000e+00> : vector<8x8xf32>
    %39 = tpu.matmul %37, %38, %cst_18 {dimension_numbers = #tpu.dot_dimension_numbers<[1], [1], [0], [0], [0, 0, 1, 0], [], []>} : vector<8x8xbf16>, vector<8x8xbf16>, vector<8x8xf32> -> vector<8x8xf32>
    %cst_19 = arith.constant dense<0xFF800000> : vector<8xf32>
    %40 = vector.multi_reduction <maximumf>, %39, %cst_19 [1] : vector<8x8xf32> to vector<8xf32>
    %41 = vector.shape_cast %40 : vector<8xf32> to vector<8x1xf32>
    %42 = vector.broadcast %41 : vector<8x1xf32> to vector<8x8xf32>
    %43 = arith.subf %39, %42 : vector<8x8xf32>
    %44 = math.exp %43 : vector<8x8xf32>
    %cst_20 = arith.constant dense<0.000000e+00> : vector<8xf32>
    %45 = vector.multi_reduction <add>, %44, %cst_20 [1] : vector<8x8xf32> to vector<8xf32>
    %46 = vector.shape_cast %45 : vector<8xf32> to vector<8x1xf32>
    %47 = tpu.reciprocal %46 {approx = true} : vector<8x1xf32> -> vector<8x1xf32>
    %48 = vector.broadcast %47 : vector<8x1xf32> to vector<8x8xf32>
    %49 = arith.mulf %44, %48 : vector<8x8xf32>
    %50 = arith.truncf %49 : vector<8x8xf32> to vector<8x8xbf16>
    %51 = vector.extract_strided_slice %19 {offsets = [0, 8], sizes = [8, 8], strides = [1, 1]} : vector<8x32xbf16> to vector<8x8xbf16>
    %cst_21 = arith.constant dense<0.000000e+00> : vector<8x8xf32>
    %52 = tpu.matmul %50, %51, %cst_21 {dimension_numbers = #tpu.dot_dimension_numbers<[1], [0], [0], [1], [0, 0, 1, 1], [], []>} : vector<8x8xbf16>, vector<8x8xbf16>, vector<8x8xf32> -> vector<8x8xf32>
    %c0_22 = arith.constant 0 : index
    %c8 = arith.constant 8 : index
    %53 = vector.load %arg30[%c0_22, %c8] : memref<8x32xf32, #tpu.memory_space<vmem>>, vector<8x8xf32>
    tpu.vector_store %arg30[%c0_22, %c8], %52 {strides = array<i32>} : memref<8x32xf32, #tpu.memory_space<vmem>>, vector<8x8xf32>,
    %54 = vector.extract_strided_slice %17 {offsets = [0, 16], sizes = [8, 8], strides = [1, 1]} : vector<8x32xbf16> to vector<8x8xbf16>
    %55 = vector.extract_strided_slice %18 {offsets = [0, 16], sizes = [8, 8], strides = [1, 1]} : vector<8x32xbf16> to vector<8x8xbf16>
    %cst_23 = arith.constant dense<0.000000e+00> : vector<8x8xf32>
    %56 = tpu.matmul %54, %55, %cst_23 {dimension_numbers = #tpu.dot_dimension_numbers<[1], [1], [0], [0], [0, 0, 1, 0], [], []>} : vector<8x8xbf16>, vector<8x8xbf16>, vector<8x8xf32> -> vector<8x8xf32>
    %cst_24 = arith.constant dense<0xFF800000> : vector<8xf32>
    %57 = vector.multi_reduction <maximumf>, %56, %cst_24 [1] : vector<8x8xf32> to vector<8xf32>
    %58 = vector.shape_cast %57 : vector<8xf32> to vector<8x1xf32>
    %59 = vector.broadcast %58 : vector<8x1xf32> to vector<8x8xf32>
    %60 = arith.subf %56, %59 : vector<8x8xf32>
    %61 = math.exp %60 : vector<8x8xf32>
    %cst_25 = arith.constant dense<0.000000e+00> : vector<8xf32>
    %62 = vector.multi_reduction <add>, %61, %cst_25 [1] : vector<8x8xf32> to vector<8xf32>
    %63 = vector.shape_cast %62 : vector<8xf32> to vector<8x1xf32>
    %64 = tpu.reciprocal %63 {approx = true} : vector<8x1xf32> -> vector<8x1xf32>
    %65 = vector.broadcast %64 : vector<8x1xf32> to vector<8x8xf32>
    %66 = arith.mulf %61, %65 : vector<8x8xf32>
    %67 = arith.truncf %66 : vector<8x8xf32> to vector<8x8xbf16>
    %68 = vector.extract_strided_slice %19 {offsets = [0, 16], sizes = [8, 8], strides = [1, 1]} : vector<8x32xbf16> to vector<8x8xbf16>
    %cst_26 = arith.constant dense<0.000000e+00> : vector<8x8xf32>
    %69 = tpu.matmul %67, %68, %cst_26 {dimension_numbers = #tpu.dot_dimension_numbers<[1], [0], [0], [1], [0, 0, 1, 1], [], []>} : vector<8x8xbf16>, vector<8x8xbf16>, vector<8x8xf32> -> vector<8x8xf32>
    %c0_27 = arith.constant 0 : index
    %c16 = arith.constant 16 : index
    %70 = vector.load %arg30[%c0_27, %c16] : memref<8x32xf32, #tpu.memory_space<vmem>>, vector<8x8xf32>
    tpu.vector_store %arg30[%c0_27, %c16], %69 {strides = array<i32>} : memref<8x32xf32, #tpu.memory_space<vmem>>, vector<8x8xf32>,
    %71 = vector.extract_strided_slice %17 {offsets = [0, 24], sizes = [8, 8], strides = [1, 1]} : vector<8x32xbf16> to vector<8x8xbf16>
    %72 = vector.extract_strided_slice %18 {offsets = [0, 24], sizes = [8, 8], strides = [1, 1]} : vector<8x32xbf16> to vector<8x8xbf16>
    %cst_28 = arith.constant dense<0.000000e+00> : vector<8x8xf32>
    %73 = tpu.matmul %71, %72, %cst_28 {dimension_numbers = #tpu.dot_dimension_numbers<[1], [1], [0], [0], [0, 0, 1, 0], [], []>} : vector<8x8xbf16>, vector<8x8xbf16>, vector<8x8xf32> -> vector<8x8xf32>
    %cst_29 = arith.constant dense<0xFF800000> : vector<8xf32>
    %74 = vector.multi_reduction <maximumf>, %73, %cst_29 [1] : vector<8x8xf32> to vector<8xf32>
    %75 = vector.shape_cast %74 : vector<8xf32> to vector<8x1xf32>
    %76 = vector.broadcast %75 : vector<8x1xf32> to vector<8x8xf32>
    %77 = arith.subf %73, %76 : vector<8x8xf32>
    %78 = math.exp %77 : vector<8x8xf32>
    %cst_30 = arith.constant dense<0.000000e+00> : vector<8xf32>
    %79 = vector.multi_reduction <add>, %78, %cst_30 [1] : vector<8x8xf32> to vector<8xf32>
    %80 = vector.shape_cast %79 : vector<8xf32> to vector<8x1xf32>
    %81 = tpu.reciprocal %80 {approx = true} : vector<8x1xf32> -> vector<8x1xf32>
    %82 = vector.broadcast %81 : vector<8x1xf32> to vector<8x8xf32>
    %83 = arith.mulf %78, %82 : vector<8x8xf32>
    %84 = arith.truncf %83 : vector<8x8xf32> to vector<8x8xbf16>
    %85 = vector.extract_strided_slice %19 {offsets = [0, 24], sizes = [8, 8], strides = [1, 1]} : vector<8x32xbf16> to vector<8x8xbf16>
    %cst_31 = arith.constant dense<0.000000e+00> : vector<8x8xf32>
    %86 = tpu.matmul %84, %85, %cst_31 {dimension_numbers = #tpu.dot_dimension_numbers<[1], [0], [0], [1], [0, 0, 1, 1], [], []>} : vector<8x8xbf16>, vector<8x8xbf16>, vector<8x8xf32> -> vector<8x8xf32>
    %c0_32 = arith.constant 0 : index
    %c24 = arith.constant 24 : index
    %87 = vector.load %arg30[%c0_32, %c24] : memref<8x32xf32, #tpu.memory_space<vmem>>, vector<8x8xf32>
    tpu.vector_store %arg30[%c0_32, %c24], %86 {strides = array<i32>} : memref<8x32xf32, #tpu.memory_space<vmem>>, vector<8x8xf32>,
    %c0_33 = arith.constant 0 : index
    %c0_34 = arith.constant 0 : index
    %88 = vector.load %arg30[%c0_33, %c0_34] : memref<8x32xf32, #tpu.memory_space<vmem>>, vector<8x32xf32>
    %89 = arith.truncf %88 : vector<8x32xf32> to vector<8x32xbf16>
    %cst_35 = arith.constant dense<0.000000e+00> : vector<8x32xf32>
    %90 = tpu.matmul %89, %11, %cst_35 {dimension_numbers = #tpu.dot_dimension_numbers<[1], [0], [0], [1], [0, 0, 1, 1], [], []>} : vector<8x32xbf16>, vector<32x32xbf16>, vector<8x32xf32> -> vector<8x32xf32>
    %91 = vector.broadcast %12 : vector<1x32xf32> to vector<8x32xf32>
    %92 = arith.addf %90, %91 : vector<8x32xf32>
    %93 = arith.addf %7, %92 : vector<8x32xf32>
    %c0_36 = arith.constant 0 : index
    %c0_37 = arith.constant 0 : index
    %94 = vector.load %arg20[%c0_36, %c0_37] : memref<1x32xf32, #tpu.memory_space<vmem>>, vector<1x32xf32>
    %c0_38 = arith.constant 0 : index
    %c0_39 = arith.constant 0 : index
    %95 = vector.load %arg21[%c0_38, %c0_39] : memref<1x32xf32, #tpu.memory_space<vmem>>, vector<1x32xf32>
    %cst_40 = arith.constant dense<0.000000e+00> : vector<8xf32>
    %96 = vector.multi_reduction <add>, %93, %cst_40 [1] : vector<8x32xf32> to vector<8xf32>
    %97 = vector.shape_cast %96 : vector<8xf32> to vector<8x1xf32>
    %cst_41 = arith.constant 3.200000e+01 : f32
    %98 = vector.broadcast %cst_41 : f32 to vector<8x1xf32>
    %99 = arith.divf %97, %98 : vector<8x1xf32>
    %100 = vector.broadcast %99 : vector<8x1xf32> to vector<8x32xf32>
    %101 = arith.subf %93, %100 : vector<8x32xf32>
    %102 = arith.mulf %101, %101 : vector<8x32xf32>
    %cst_42 = arith.constant dense<0.000000e+00> : vector<8xf32>
    %103 = vector.multi_reduction <add>, %102, %cst_42 [1] : vector<8x32xf32> to vector<8xf32>
    %104 = vector.shape_cast %103 : vector<8xf32> to vector<8x1xf32>
    %cst_43 = arith.constant 3.200000e+01 : f32
    %105 = vector.broadcast %cst_43 : f32 to vector<8x1xf32>
    %106 = arith.divf %104, %105 : vector<8x1xf32>
    %cst_44 = arith.constant 9.99999974E-6 : f32
    %107 = vector.broadcast %cst_44 : f32 to vector<8x1xf32>
    %108 = arith.addf %106, %107 : vector<8x1xf32>
    %109 = math.rsqrt %108 : vector<8x1xf32>
    %110 = vector.broadcast %109 : vector<8x1xf32> to vector<8x32xf32>
    %111 = arith.mulf %101, %110 : vector<8x32xf32>
    %112 = vector.broadcast %94 : vector<1x32xf32> to vector<8x32xf32>
    %113 = arith.mulf %111, %112 : vector<8x32xf32>
    %114 = vector.broadcast %95 : vector<1x32xf32> to vector<8x32xf32>
    %115 = arith.addf %113, %114 : vector<8x32xf32>
    %c0_45 = arith.constant 0 : index
    %c0_46 = arith.constant 0 : index
    %116 = vector.load %arg29[%c0_45, %c0_46] : memref<16x64xbf16, #tpu.memory_space<vmem>>, vector<16x64xbf16>
    %c0_47 = arith.constant 0 : index
    %c0_48 = arith.constant 0 : index
    %117 = vector.load %arg10[%c0_47, %c0_48] : memref<32x32xbf16, #tpu.memory_space<vmem>>, vector<32x32xbf16>
    %c0_49 = arith.constant 0 : index
    %c0_50 = arith.constant 0 : index
    %118 = vector.load %arg11[%c0_49, %c0_50] : memref<1x32xf32, #tpu.memory_space<vmem>>, vector<1x32xf32>
    %c0_51 = arith.constant 0 : index
    %c0_52 = arith.constant 0 : index
    %119 = vector.load %arg14[%c0_51, %c0_52] : memref<32x32xbf16, #tpu.memory_space<vmem>>, vector<32x32xbf16>
    %c0_53 = arith.constant 0 : index
    %c0_54 = arith.constant 0 : index
    %120 = vector.load %arg15[%c0_53, %c0_54] : memref<1x32xf32, #tpu.memory_space<vmem>>, vector<1x32xf32>
    %121 = arith.truncf %115 : vector<8x32xf32> to vector<8x32xbf16>
    %cst_55 = arith.constant dense<0.000000e+00> : vector<8x32xf32>
    %122 = tpu.matmul %121, %117, %cst_55 {dimension_numbers = #tpu.dot_dimension_numbers<[1], [0], [0], [1], [0, 0, 1, 1], [], []>} : vector<8x32xbf16>, vector<32x32xbf16>, vector<8x32xf32> -> vector<8x32xf32>
    %123 = vector.broadcast %118 : vector<1x32xf32> to vector<8x32xf32>
    %124 = arith.addf %122, %123 : vector<8x32xf32>
    %125 = arith.truncf %124 : vector<8x32xf32> to vector<8x32xbf16>
    %126 = vector.extract_strided_slice %116 {offsets = [0, 0], sizes = [16, 32], strides = [1, 1]} : vector<16x64xbf16> to vector<16x32xbf16>
    %127 = vector.extract_strided_slice %116 {offsets = [0, 32], sizes = [16, 32], strides = [1, 1]} : vector<16x64xbf16> to vector<16x32xbf16>
    %128 = vector.extract_strided_slice %125 {offsets = [0, 0], sizes = [8, 8], strides = [1, 1]} : vector<8x32xbf16> to vector<8x8xbf16>
    %129 = vector.extract_strided_slice %126 {offsets = [0, 0], sizes = [16, 8], strides = [1, 1]} : vector<16x32xbf16> to vector<16x8xbf16>
    %cst_56 = arith.constant dense<0.000000e+00> : vector<8x16xf32>
    %130 = tpu.matmul %128, %129, %cst_56 {dimension_numbers = #tpu.dot_dimension_numbers<[1], [1], [0], [0], [0, 0, 1, 0], [], []>} : vector<8x8xbf16>, vector<16x8xbf16>, vector<8x16xf32> -> vector<8x16xf32>
    %cst_57 = arith.constant dense<0xFF800000> : vector<8xf32>
    %131 = vector.multi_reduction <maximumf>, %130, %cst_57 [1] : vector<8x16xf32> to vector<8xf32>
    %132 = vector.shape_cast %131 : vector<8xf32> to vector<8x1xf32>
    %133 = vector.broadcast %132 : vector<8x1xf32> to vector<8x16xf32>
    %134 = arith.subf %130, %133 : vector<8x16xf32>
    %135 = math.exp %134 : vector<8x16xf32>
    %cst_58 = arith.constant dense<0.000000e+00> : vector<8xf32>
    %136 = vector.multi_reduction <add>, %135, %cst_58 [1] : vector<8x16xf32> to vector<8xf32>
    %137 = vector.shape_cast %136 : vector<8xf32> to vector<8x1xf32>
    %138 = vector.broadcast %137 : vector<8x1xf32> to vector<8x16xf32>
    %139 = arith.divf %135, %138 : vector<8x16xf32>
    %140 = arith.truncf %139 : vector<8x16xf32> to vector<8x16xbf16>
    %141 = vector.extract_strided_slice %127 {offsets = [0, 0], sizes = [16, 8], strides = [1, 1]} : vector<16x32xbf16> to vector<16x8xbf16>
    %cst_59 = arith.constant dense<0.000000e+00> : vector<8x8xf32>
    %142 = tpu.matmul %140, %141, %cst_59 {dimension_numbers = #tpu.dot_dimension_numbers<[1], [0], [0], [1], [0, 0, 1, 1], [], []>} : vector<8x16xbf16>, vector<16x8xbf16>, vector<8x8xf32> -> vector<8x8xf32>
    %c0_60 = arith.constant 0 : index
    %c0_61 = arith.constant 0 : index
    %143 = vector.load %arg30[%c0_60, %c0_61] : memref<8x32xf32, #tpu.memory_space<vmem>>, vector<8x8xf32>
    tpu.vector_store %arg30[%c0_60, %c0_61], %142 {strides = array<i32>} : memref<8x32xf32, #tpu.memory_space<vmem>>, vector<8x8xf32>,
    %144 = vector.extract_strided_slice %125 {offsets = [0, 8], sizes = [8, 8], strides = [1, 1]} : vector<8x32xbf16> to vector<8x8xbf16>
    %145 = vector.extract_strided_slice %126 {offsets = [0, 8], sizes = [16, 8], strides = [1, 1]} : vector<16x32xbf16> to vector<16x8xbf16>
    %cst_62 = arith.constant dense<0.000000e+00> : vector<8x16xf32>
    %146 = tpu.matmul %144, %145, %cst_62 {dimension_numbers = #tpu.dot_dimension_numbers<[1], [1], [0], [0], [0, 0, 1, 0], [], []>} : vector<8x8xbf16>, vector<16x8xbf16>, vector<8x16xf32> -> vector<8x16xf32>
    %cst_63 = arith.constant dense<0xFF800000> : vector<8xf32>
    %147 = vector.multi_reduction <maximumf>, %146, %cst_63 [1] : vector<8x16xf32> to vector<8xf32>
    %148 = vector.shape_cast %147 : vector<8xf32> to vector<8x1xf32>
    %149 = vector.broadcast %148 : vector<8x1xf32> to vector<8x16xf32>
    %150 = arith.subf %146, %149 : vector<8x16xf32>
    %151 = math.exp %150 : vector<8x16xf32>
    %cst_64 = arith.constant dense<0.000000e+00> : vector<8xf32>
    %152 = vector.multi_reduction <add>, %151, %cst_64 [1] : vector<8x16xf32> to vector<8xf32>
    %153 = vector.shape_cast %152 : vector<8xf32> to vector<8x1xf32>
    %154 = vector.broadcast %153 : vector<8x1xf32> to vector<8x16xf32>
    %155 = arith.divf %151, %154 : vector<8x16xf32>
    %156 = arith.addf %139, %155 : vector<8x16xf32>
    %157 = arith.truncf %155 : vector<8x16xf32> to vector<8x16xbf16>
    %158 = vector.extract_strided_slice %127 {offsets = [0, 8], sizes = [16, 8], strides = [1, 1]} : vector<16x32xbf16> to vector<16x8xbf16>
    %cst_65 = arith.constant dense<0.000000e+00> : vector<8x8xf32>
    %159 = tpu.matmul %157, %158, %cst_65 {dimension_numbers = #tpu.dot_dimension_numbers<[1], [0], [0], [1], [0, 0, 1, 1], [], []>} : vector<8x16xbf16>, vector<16x8xbf16>, vector<8x8xf32> -> vector<8x8xf32>
    %c0_66 = arith.constant 0 : index
    %c8_67 = arith.constant 8 : index
    %160 = vector.load %arg30[%c0_66, %c8_67] : memref<8x32xf32, #tpu.memory_space<vmem>>, vector<8x8xf32>
    tpu.vector_store %arg30[%c0_66, %c8_67], %159 {strides = array<i32>} : memref<8x32xf32, #tpu.memory_space<vmem>>, vector<8x8xf32>,
    %161 = vector.extract_strided_slice %125 {offsets = [0, 16], sizes = [8, 8], strides = [1, 1]} : vector<8x32xbf16> to vector<8x8xbf16>
    %162 = vector.extract_strided_slice %126 {offsets = [0, 16], sizes = [16, 8], strides = [1, 1]} : vector<16x32xbf16> to vector<16x8xbf16>
    %cst_68 = arith.constant dense<0.000000e+00> : vector<8x16xf32>
    %163 = tpu.matmul %161, %162, %cst_68 {dimension_numbers = #tpu.dot_dimension_numbers<[1], [1], [0], [0], [0, 0, 1, 0], [], []>} : vector<8x8xbf16>, vector<16x8xbf16>, vector<8x16xf32> -> vector<8x16xf32>
    %cst_69 = arith.constant dense<0xFF800000> : vector<8xf32>
    %164 = vector.multi_reduction <maximumf>, %163, %cst_69 [1] : vector<8x16xf32> to vector<8xf32>
    %165 = vector.shape_cast %164 : vector<8xf32> to vector<8x1xf32>
    %166 = vector.broadcast %165 : vector<8x1xf32> to vector<8x16xf32>
    %167 = arith.subf %163, %166 : vector<8x16xf32>
    %168 = math.exp %167 : vector<8x16xf32>
    %cst_70 = arith.constant dense<0.000000e+00> : vector<8xf32>
    %169 = vector.multi_reduction <add>, %168, %cst_70 [1] : vector<8x16xf32> to vector<8xf32>
    %170 = vector.shape_cast %169 : vector<8xf32> to vector<8x1xf32>
    %171 = vector.broadcast %170 : vector<8x1xf32> to vector<8x16xf32>
    %172 = arith.divf %168, %171 : vector<8x16xf32>
    %173 = arith.addf %156, %172 : vector<8x16xf32>
    %174 = arith.truncf %172 : vector<8x16xf32> to vector<8x16xbf16>
    %175 = vector.extract_strided_slice %127 {offsets = [0, 16], sizes = [16, 8], strides = [1, 1]} : vector<16x32xbf16> to vector<16x8xbf16>
    %cst_71 = arith.constant dense<0.000000e+00> : vector<8x8xf32>
    %176 = tpu.matmul %174, %175, %cst_71 {dimension_numbers = #tpu.dot_dimension_numbers<[1], [0], [0], [1], [0, 0, 1, 1], [], []>} : vector<8x16xbf16>, vector<16x8xbf16>, vector<8x8xf32> -> vector<8x8xf32>
    %c0_72 = arith.constant 0 : index
    %c16_73 = arith.constant 16 : index
    %177 = vector.load %arg30[%c0_72, %c16_73] : memref<8x32xf32, #tpu.memory_space<vmem>>, vector<8x8xf32>
    tpu.vector_store %arg30[%c0_72, %c16_73], %176 {strides = array<i32>} : memref<8x32xf32, #tpu.memory_space<vmem>>, vector<8x8xf32>,
    %178 = vector.extract_strided_slice %125 {offsets = [0, 24], sizes = [8, 8], strides = [1, 1]} : vector<8x32xbf16> to vector<8x8xbf16>
    %179 = vector.extract_strided_slice %126 {offsets = [0, 24], sizes = [16, 8], strides = [1, 1]} : vector<16x32xbf16> to vector<16x8xbf16>
    %cst_74 = arith.constant dense<0.000000e+00> : vector<8x16xf32>
    %180 = tpu.matmul %178, %179, %cst_74 {dimension_numbers = #tpu.dot_dimension_numbers<[1], [1], [0], [0], [0, 0, 1, 0], [], []>} : vector<8x8xbf16>, vector<16x8xbf16>, vector<8x16xf32> -> vector<8x16xf32>
    %cst_75 = arith.constant dense<0xFF800000> : vector<8xf32>
    %181 = vector.multi_reduction <maximumf>, %180, %cst_75 [1] : vector<8x16xf32> to vector<8xf32>
    %182 = vector.shape_cast %181 : vector<8xf32> to vector<8x1xf32>
    %183 = vector.broadcast %182 : vector<8x1xf32> to vector<8x16xf32>
    %184 = arith.subf %180, %183 : vector<8x16xf32>
    %185 = math.exp %184 : vector<8x16xf32>
    %cst_76 = arith.constant dense<0.000000e+00> : vector<8xf32>
    %186 = vector.multi_reduction <add>, %185, %cst_76 [1] : vector<8x16xf32> to vector<8xf32>
    %187 = vector.shape_cast %186 : vector<8xf32> to vector<8x1xf32>
    %188 = vector.broadcast %187 : vector<8x1xf32> to vector<8x16xf32>
    %189 = arith.divf %185, %188 : vector<8x16xf32>
    %190 = arith.addf %173, %189 : vector<8x16xf32>
    %191 = arith.truncf %189 : vector<8x16xf32> to vector<8x16xbf16>
    %192 = vector.extract_strided_slice %127 {offsets = [0, 24], sizes = [16, 8], strides = [1, 1]} : vector<16x32xbf16> to vector<16x8xbf16>
    %cst_77 = arith.constant dense<0.000000e+00> : vector<8x8xf32>
    %193 = tpu.matmul %191, %192, %cst_77 {dimension_numbers = #tpu.dot_dimension_numbers<[1], [0], [0], [1], [0, 0, 1, 1], [], []>} : vector<8x16xbf16>, vector<16x8xbf16>, vector<8x8xf32> -> vector<8x8xf32>
    %c0_78 = arith.constant 0 : index
    %c24_79 = arith.constant 24 : index
    %194 = vector.load %arg30[%c0_78, %c24_79] : memref<8x32xf32, #tpu.memory_space<vmem>>, vector<8x8xf32>
    tpu.vector_store %arg30[%c0_78, %c24_79], %193 {strides = array<i32>} : memref<8x32xf32, #tpu.memory_space<vmem>>, vector<8x8xf32>,
    %c0_80 = arith.constant 0 : index
    %c0_81 = arith.constant 0 : index
    %195 = vector.load %arg30[%c0_80, %c0_81] : memref<8x32xf32, #tpu.memory_space<vmem>>, vector<8x32xf32>
    %196 = arith.truncf %195 : vector<8x32xf32> to vector<8x32xbf16>
    %cst_82 = arith.constant dense<0.000000e+00> : vector<8x32xf32>
    %197 = tpu.matmul %196, %119, %cst_82 {dimension_numbers = #tpu.dot_dimension_numbers<[1], [0], [0], [1], [0, 0, 1, 1], [], []>} : vector<8x32xbf16>, vector<32x32xbf16>, vector<8x32xf32> -> vector<8x32xf32>
    %198 = vector.broadcast %120 : vector<1x32xf32> to vector<8x32xf32>
    %199 = arith.addf %197, %198 : vector<8x32xf32>
    %cst_83 = arith.constant 2.500000e-01 : f32
    %200 = vector.broadcast %cst_83 : f32 to vector<8x16xf32>
    %201 = arith.mulf %190, %200 : vector<8x16xf32>
    %202 = arith.addf %115, %199 : vector<8x32xf32>
    %c0_84 = arith.constant 0 : index
    %c0_85 = arith.constant 0 : index
    %203 = vector.load %arg22[%c0_84, %c0_85] : memref<1x32xf32, #tpu.memory_space<vmem>>, vector<1x32xf32>
    %c0_86 = arith.constant 0 : index
    %c0_87 = arith.constant 0 : index
    %204 = vector.load %arg23[%c0_86, %c0_87] : memref<1x32xf32, #tpu.memory_space<vmem>>, vector<1x32xf32>
    %cst_88 = arith.constant dense<0.000000e+00> : vector<8xf32>
    %205 = vector.multi_reduction <add>, %202, %cst_88 [1] : vector<8x32xf32> to vector<8xf32>
    %206 = vector.shape_cast %205 : vector<8xf32> to vector<8x1xf32>
    %cst_89 = arith.constant 3.200000e+01 : f32
    %207 = vector.broadcast %cst_89 : f32 to vector<8x1xf32>
    %208 = arith.divf %206, %207 : vector<8x1xf32>
    %209 = vector.broadcast %208 : vector<8x1xf32> to vector<8x32xf32>
    %210 = arith.subf %202, %209 : vector<8x32xf32>
    %211 = arith.mulf %210, %210 : vector<8x32xf32>
    %cst_90 = arith.constant dense<0.000000e+00> : vector<8xf32>
    %212 = vector.multi_reduction <add>, %211, %cst_90 [1] : vector<8x32xf32> to vector<8xf32>
    %213 = vector.shape_cast %212 : vector<8xf32> to vector<8x1xf32>
    %cst_91 = arith.constant 3.200000e+01 : f32
    %214 = vector.broadcast %cst_91 : f32 to vector<8x1xf32>
    %215 = arith.divf %213, %214 : vector<8x1xf32>
    %cst_92 = arith.constant 9.99999974E-6 : f32
    %216 = vector.broadcast %cst_92 : f32 to vector<8x1xf32>
    %217 = arith.addf %215, %216 : vector<8x1xf32>
    %218 = math.rsqrt %217 : vector<8x1xf32>
    %219 = vector.broadcast %218 : vector<8x1xf32> to vector<8x32xf32>
    %220 = arith.mulf %210, %219 : vector<8x32xf32>
    %221 = vector.broadcast %203 : vector<1x32xf32> to vector<8x32xf32>
    %222 = arith.mulf %220, %221 : vector<8x32xf32>
    %223 = vector.broadcast %204 : vector<1x32xf32> to vector<8x32xf32>
    %224 = arith.addf %222, %223 : vector<8x32xf32>
    %225 = arith.truncf %224 : vector<8x32xf32> to vector<8x32xbf16>
    %c0_93 = arith.constant 0 : index
    %c0_94 = arith.constant 0 : index
    %226 = vector.load %arg16[%c0_93, %c0_94] : memref<32x64xbf16, #tpu.memory_space<vmem>>, vector<32x64xbf16>
    %cst_95 = arith.constant dense<0.000000e+00> : vector<8x64xf32>
    %227 = tpu.matmul %225, %226, %cst_95 {dimension_numbers = #tpu.dot_dimension_numbers<[1], [0], [0], [1], [0, 0, 1, 1], [], []>} : vector<8x32xbf16>, vector<32x64xbf16>, vector<8x64xf32> -> vector<8x64xf32>
    %c0_96 = arith.constant 0 : index
    %c0_97 = arith.constant 0 : index
    %228 = vector.load %arg17[%c0_96, %c0_97] : memref<1x64xf32, #tpu.memory_space<vmem>>, vector<1x64xf32>
    %229 = vector.broadcast %228 : vector<1x64xf32> to vector<8x64xf32>
    %230 = arith.addf %227, %229 : vector<8x64xf32>
    %cst_98 = arith.constant 0.000000e+00 : f32
    %231 = vector.broadcast %cst_98 : f32 to vector<8x64xf32>
    %232 = arith.maximumf %230, %231 : vector<8x64xf32>
    %233 = arith.truncf %232 : vector<8x64xf32> to vector<8x64xbf16>
    %c0_99 = arith.constant 0 : index
    %c0_100 = arith.constant 0 : index
    %234 = vector.load %arg18[%c0_99, %c0_100] : memref<64x32xbf16, #tpu.memory_space<vmem>>, vector<64x32xbf16>
    %cst_101 = arith.constant dense<0.000000e+00> : vector<8x32xf32>
    %235 = tpu.matmul %233, %234, %cst_101 {dimension_numbers = #tpu.dot_dimension_numbers<[1], [0], [0], [1], [0, 0, 1, 1], [], []>} : vector<8x64xbf16>, vector<64x32xbf16>, vector<8x32xf32> -> vector<8x32xf32>
    %c0_102 = arith.constant 0 : index
    %c0_103 = arith.constant 0 : index
    %236 = vector.load %arg19[%c0_102, %c0_103] : memref<1x32xf32, #tpu.memory_space<vmem>>, vector<1x32xf32>
    %237 = vector.broadcast %236 : vector<1x32xf32> to vector<8x32xf32>
    %238 = arith.addf %235, %237 : vector<8x32xf32>
    %239 = arith.addf %224, %238 : vector<8x32xf32>
    %c0_104 = arith.constant 0 : index
    %c0_105 = arith.constant 0 : index
    %240 = vector.load %arg24[%c0_104, %c0_105] : memref<1x32xf32, #tpu.memory_space<vmem>>, vector<1x32xf32>
    %c0_106 = arith.constant 0 : index
    %c0_107 = arith.constant 0 : index
    %241 = vector.load %arg25[%c0_106, %c0_107] : memref<1x32xf32, #tpu.memory_space<vmem>>, vector<1x32xf32>
    %cst_108 = arith.constant dense<0.000000e+00> : vector<8xf32>
    %242 = vector.multi_reduction <add>, %239, %cst_108 [1] : vector<8x32xf32> to vector<8xf32>
    %243 = vector.shape_cast %242 : vector<8xf32> to vector<8x1xf32>
    %cst_109 = arith.constant 3.200000e+01 : f32
    %244 = vector.broadcast %cst_109 : f32 to vector<8x1xf32>
    %245 = arith.divf %243, %244 : vector<8x1xf32>
    %246 = vector.broadcast %245 : vector<8x1xf32> to vector<8x32xf32>
    %247 = arith.subf %239, %246 : vector<8x32xf32>
    %248 = arith.mulf %247, %247 : vector<8x32xf32>
    %cst_110 = arith.constant dense<0.000000e+00> : vector<8xf32>
    %249 = vector.multi_reduction <add>, %248, %cst_110 [1] : vector<8x32xf32> to vector<8xf32>
    %250 = vector.shape_cast %249 : vector<8xf32> to vector<8x1xf32>
    %cst_111 = arith.constant 3.200000e+01 : f32
    %251 = vector.broadcast %cst_111 : f32 to vector<8x1xf32>
    %252 = arith.divf %250, %251 : vector<8x1xf32>
    %cst_112 = arith.constant 9.99999974E-6 : f32
    %253 = vector.broadcast %cst_112 : f32 to vector<8x1xf32>
    %254 = arith.addf %252, %253 : vector<8x1xf32>
    %255 = math.rsqrt %254 : vector<8x1xf32>
    %256 = vector.broadcast %255 : vector<8x1xf32> to vector<8x32xf32>
    %257 = arith.mulf %247, %256 : vector<8x32xf32>
    %258 = vector.broadcast %240 : vector<1x32xf32> to vector<8x32xf32>
    %259 = arith.mulf %257, %258 : vector<8x32xf32>
    %260 = vector.broadcast %241 : vector<1x32xf32> to vector<8x32xf32>
    %261 = arith.addf %259, %260 : vector<8x32xf32>
    %c0_113 = arith.constant 0 : index
    %c0_114 = arith.constant 0 : index
    %c0_115 = arith.constant 0 : index
    %262 = vector.load %arg26[%c0_113, %c0_114, %c0_115] : memref<1x8x32xf32, #tpu.memory_space<vmem>>, vector<1x8x32xf32>
    %263 = vector.shape_cast %262 : vector<1x8x32xf32> to vector<8x32xf32>
    %264 = vector.shape_cast %261 : vector<8x32xf32> to vector<1x8x32xf32>
    tpu.vector_store %arg26[%c0_113, %c0_114, %c0_115], %264 {strides = array<i32>} : memref<1x8x32xf32, #tpu.memory_space<vmem>>, vector<1x8x32xf32>,
    %c0_116 = arith.constant 0 : index
    %c0_117 = arith.constant 0 : index
    %c0_118 = arith.constant 0 : index
    %265 = vector.load %arg27[%c0_116, %c0_117, %c0_118] : memref<1x8x16xf32, #tpu.memory_space<vmem>>, vector<1x8x16xf32>
    %266 = vector.shape_cast %265 : vector<1x8x16xf32> to vector<8x16xf32>
    %267 = vector.shape_cast %201 : vector<8x16xf32> to vector<1x8x16xf32>
    tpu.vector_store %arg27[%c0_116, %c0_117, %c0_118], %267 {strides = array<i32>} : memref<1x8x16xf32, #tpu.memory_space<vmem>>, vector<1x8x16xf32>,
    return
  }
  func.func @transform_0(%arg0: i32, %arg1: i32) -> (i32, i32, i32) {
    %c0_i32 = arith.constant 0 : i32
    %c0_i32_0 = arith.constant 0 : i32
    %c0_i32_1 = arith.constant 0 : i32
    return %arg0, %c0_i32, %c0_i32_0 : i32, i32, i32
  }
  func.func @transform_1(%arg0: i32, %arg1: i32) -> (i32, i32, i32) {
    %c0_i32 = arith.constant 0 : i32
    %c0_i32_0 = arith.constant 0 : i32
    %c0_i32_1 = arith.constant 0 : i32
    return %arg0, %c0_i32, %c0_i32_0 : i32, i32, i32
  }
  func.func @transform_2(%arg0: i32, %arg1: i32) -> (i32, i32) {
    %c0_i32 = arith.constant 0 : i32
    %c0_i32_0 = arith.constant 0 : i32
    %c0_i32_1 = arith.constant 0 : i32
    return %c0_i32, %c0_i32_0 : i32, i32
  }
  func.func @transform_3(%arg0: i32, %arg1: i32) -> (i32, i32) {
    %c0_i32 = arith.constant 0 : i32
    %c0_i32_0 = arith.constant 0 : i32
    %c0_i32_1 = arith.constant 0 : i32
    return %c0_i32, %c0_i32_0 : i32, i32
  }
  func.func @transform_4(%arg0: i32, %arg1: i32) -> (i32, i32) {
    %c0_i32 = arith.constant 0 : i32
    %c0_i32_0 = arith.constant 0 : i32
    %c0_i32_1 = arith.constant 0 : i32
    return %c0_i32, %c0_i32_0 : i32, i32
  }
  func.func @transform_5(%arg0: i32, %arg1: i32) -> (i32, i32) {
    %c0_i32 = arith.constant 0 : i32
    %c0_i32_0 = arith.constant 0 : i32
    %c0_i32_1 = arith.constant 0 : i32
    return %c0_i32, %c0_i32_0 : i32, i32
  }
  func.func @transform_6(%arg0: i32, %arg1: i32) -> (i32, i32) {
    %c0_i32 = arith.constant 0 : i32
    %c0_i32_0 = arith.constant 0 : i32
    %c0_i32_1 = arith.constant 0 : i32
    return %c0_i32, %c0_i32_0 : i32, i32
  }
  func.func @transform_7(%arg0: i32, %arg1: i32) -> (i32, i32) {
    %c0_i32 = arith.constant 0 : i32
    %c0_i32_0 = arith.constant 0 : i32
    %c0_i32_1 = arith.constant 0 : i32
    return %c0_i32, %c0_i32_0 : i32, i32
  }
  func.func @transform_8(%arg0: i32, %arg1: i32) -> (i32, i32) {
    %c0_i32 = arith.constant 0 : i32
    %c0_i32_0 = arith.constant 0 : i32
    %c0_i32_1 = arith.constant 0 : i32
    return %c0_i32, %c0_i32_0 : i32, i32
  }
  func.func @transform_9(%arg0: i32, %arg1: i32) -> (i32, i32) {
    %c0_i32 = arith.constant 0 : i32
    %c0_i32_0 = arith.constant 0 : i32
    %c0_i32_1 = arith.constant 0 : i32
    return %c0_i32, %c0_i32_0 : i32, i32
  }
  func.func @transform_10(%arg0: i32, %arg1: i32) -> (i32, i32) {
    %c0_i32 = arith.constant 0 : i32
    %c0_i32_0 = arith.constant 0 : i32
    %c0_i32_1 = arith.constant 0 : i32
    return %c0_i32, %c0_i32_0 : i32, i32
  }
  func.func @transform_11(%arg0: i32, %arg1: i32) -> (i32, i32) {
    %c0_i32 = arith.constant 0 : i32
    %c0_i32_0 = arith.constant 0 : i32
    %c0_i32_1 = arith.constant 0 : i32
    return %c0_i32, %c0_i32_0 : i32, i32
  }
  func.func @transform_12(%arg0: i32, %arg1: i32) -> (i32, i32) {
    %c0_i32 = arith.constant 0 : i32
    %c0_i32_0 = arith.constant 0 : i32
    %c0_i32_1 = arith.constant 0 : i32
    return %c0_i32, %c0_i32_0 : i32, i32
  }
  func.func @transform_13(%arg0: i32, %arg1: i32) -> (i32, i32) {
    %c0_i32 = arith.constant 0 : i32
    %c0_i32_0 = arith.constant 0 : i32
    %c0_i32_1 = arith.constant 0 : i32
    return %c0_i32, %c0_i32_0 : i32, i32
  }
  func.func @transform_14(%arg0: i32, %arg1: i32) -> (i32, i32) {
    %c0_i32 = arith.constant 0 : i32
    %c0_i32_0 = arith.constant 0 : i32
    %c0_i32_1 = arith.constant 0 : i32
    return %c0_i32, %c0_i32_0 : i32, i32
  }
  func.func @transform_15(%arg0: i32, %arg1: i32) -> (i32, i32) {
    %c0_i32 = arith.constant 0 : i32
    %c0_i32_0 = arith.constant 0 : i32
    %c0_i32_1 = arith.constant 0 : i32
    return %c0_i32, %c0_i32_0 : i32, i32
  }
  func.func @transform_16(%arg0: i32, %arg1: i32) -> (i32, i32) {
    %c0_i32 = arith.constant 0 : i32
    %c0_i32_0 = arith.constant 0 : i32
    %c0_i32_1 = arith.constant 0 : i32
    return %c0_i32, %c0_i32_0 : i32, i32
  }
  func.func @transform_17(%arg0: i32, %arg1: i32) -> (i32, i32) {
    %c0_i32 = arith.constant 0 : i32
    %c0_i32_0 = arith.constant 0 : i32
    %c0_i32_1 = arith.constant 0 : i32
    return %c0_i32, %c0_i32_0 : i32, i32
  }
  func.func @transform_18(%arg0: i32, %arg1: i32) -> (i32, i32) {
    %c0_i32 = arith.constant 0 : i32
    %c0_i32_0 = arith.constant 0 : i32
    %c0_i32_1 = arith.constant 0 : i32
    return %c0_i32, %c0_i32_0 : i32, i32
  }
  func.func @transform_19(%arg0: i32, %arg1: i32) -> (i32, i32) {
    %c0_i32 = arith.constant 0 : i32
    %c0_i32_0 = arith.constant 0 : i32
    %c0_i32_1 = arith.constant 0 : i32
    return %c0_i32, %c0_i32_0 : i32, i32
  }
  func.func @transform_20(%arg0: i32, %arg1: i32) -> (i32, i32) {
    %c0_i32 = arith.constant 0 : i32
    %c0_i32_0 = arith.constant 0 : i32
    %c0_i32_1 = arith.constant 0 : i32
    return %c0_i32, %c0_i32_0 : i32, i32
  }
  func.func @transform_21(%arg0: i32, %arg1: i32) -> (i32, i32) {
    %c0_i32 = arith.constant 0 : i32
    %c0_i32_0 = arith.constant 0 : i32
    %c0_i32_1 = arith.constant 0 : i32
    return %c0_i32, %c0_i32_0 : i32, i32
  }
  func.func @transform_22(%arg0: i32, %arg1: i32) -> (i32, i32) {
    %c0_i32 = arith.constant 0 : i32
    %c0_i32_0 = arith.constant 0 : i32
    %c0_i32_1 = arith.constant 0 : i32
    return %c0_i32, %c0_i32_0 : i32, i32
  }
  func.func @transform_23(%arg0: i32, %arg1: i32) -> (i32, i32) {
    %c0_i32 = arith.constant 0 : i32
    %c0_i32_0 = arith.constant 0 : i32
    %c0_i32_1 = arith.constant 0 : i32
    return %c0_i32, %c0_i32_0 : i32, i32
  }
  func.func @transform_24(%arg0: i32, %arg1: i32) -> (i32, i32, i32) {
    %c0_i32 = arith.constant 0 : i32
    %c0_i32_0 = arith.constant 0 : i32
    return %arg0, %arg1, %c0_i32 : i32, i32, i32
  }
  func.func @transform_25(%arg0: i32, %arg1: i32) -> (i32, i32, i32) {
    %c0_i32 = arith.constant 0 : i32
    %c0_i32_0 = arith.constant 0 : i32
    return %arg0, %arg1, %c0_i32 : i32, i32, i32
  }
}

</mosaic_0001>

<llo_original>
// kernel: tpu_custom_call.1
$region0: #{tpu_custom_call.1}
  #allocation0 [shape = 'u32[]', space=smem, size = 0x4, offset = 0x4, fixed_abs, tag = 'smem constant byte address 0x4 - core index']
  #allocation1 [shape = 'u32[144,128]{1,0:T(1,128)}', space=vmem, size = 0x12000, scoped, tag = 'internal scratch']
  #allocation2 [shape = 'bf16[8,64]{1,0:T(8,128)(2,1)}', space=vmem, size = 0x800, scoped, tag = 'scratch operand']
  #allocation3 [shape = 'bf16[16,64]{1,0:T(8,128)(2,1)}', space=vmem, size = 0x1000, scoped, tag = 'scratch operand']
  #allocation4 [shape = 'f32[8,32]{1,0:T(8,128)}', space=vmem, size = 0x1000, scoped, tag = 'scratch operand']
  %s0 = inlined_call_operand.vmem [shape: f32[2,8,32], index: 0, kind: input, shape index: {}]
  %s1 = inlined_call_operand.vmem [shape: f32[2,16,32], index: 1, kind: input, shape index: {}]
  %s2 = inlined_call_operand.hbm [shape: bf16[32,32], index: 2, kind: input, shape index: {}]
  %s3 = inlined_call_operand.vmem [shape: f32[1,32], index: 3, kind: input, shape index: {}]
  %s4 = inlined_call_operand.hbm [shape: bf16[32,64], index: 4, kind: input, shape index: {}]
  %s5 = inlined_call_operand.vmem [shape: f32[1,64], index: 5, kind: input, shape index: {}]
  %s6 = inlined_call_operand.hbm [shape: bf16[32,32], index: 6, kind: input, shape index: {}]
  %s7 = inlined_call_operand.vmem [shape: f32[1,32], index: 7, kind: input, shape index: {}]
  %s8 = inlined_call_operand.hbm [shape: bf16[32,32], index: 8, kind: input, shape index: {}]
  %s9 = inlined_call_operand.vmem [shape: f32[1,32], index: 9, kind: input, shape index: {}]
  %s10 = inlined_call_operand.hbm [shape: bf16[32,64], index: 10, kind: input, shape index: {}]
  %s11 = inlined_call_operand.vmem [shape: f32[1,64], index: 11, kind: input, shape index: {}]
  %s12 = inlined_call_operand.hbm [shape: bf16[32,32], index: 12, kind: input, shape index: {}]
  %s13 = inlined_call_operand.vmem [shape: f32[1,32], index: 13, kind: input, shape index: {}]
  %s14 = inlined_call_operand.hbm [shape: bf16[32,64], index: 14, kind: input, shape index: {}]
  %s15 = inlined_call_operand.vmem [shape: f32[1,64], index: 15, kind: input, shape index: {}]
  %s16 = inlined_call_operand.vmem [shape: bf16[64,32], index: 16, kind: input, shape index: {}]
  %s17 = inlined_call_operand.vmem [shape: f32[1,32], index: 17, kind: input, shape index: {}]
  %s18 = inlined_call_operand.vmem [shape: f32[1,32], index: 18, kind: input, shape index: {}]
  %s19 = inlined_call_operand.vmem [shape: f32[1,32], index: 19, kind: input, shape index: {}]
  %s20 = inlined_call_operand.vmem [shape: f32[1,32], index: 20, kind: input, shape index: {}]
  %s21 = inlined_call_operand.vmem [shape: f32[1,32], index: 21, kind: input, shape index: {}]
  %s22 = inlined_call_operand.vmem [shape: f32[1,32], index: 22, kind: input, shape index: {}]
  %s23 = inlined_call_operand.vmem [shape: f32[1,32], index: 23, kind: input, shape index: {}]
  %s24 = inlined_call_operand.hbm [shape: f32[2,8,32], index: 24, kind: output, shape index: {0}]
  %s25 = inlined_call_operand.hbm [shape: f32[2,8,16], index: 25, kind: output, shape index: {1}]
  %26 = xla_tuple %s24, %s25
  %s27 = sld [smem:[#allocation0]]
  $region169: #{tpu_custom_call.1} parent=0
    _
  %s29 = ssub.s32 1, %s27
  %s30 = scalar_select 0, %s29, %s27
  $region1: #{tpu_custom_call.1} parent=0
    #allocation5 [shape = 'u8[8192]{0}', space=vmem, size = 0x2000, scoped, tag = 'input window, operand 2, single buffered']
    #allocation6 [shape = 's32[2]{0}', space=sflag, size = 0x8, scoped, tag = 'scoped memory for tpu_custom_call.1']
    #allocation7 [shape = 's32[2]{0}', space=sflag, size = 0x8, scoped, tag = 'scoped memory for tpu_custom_call.1']
    #allocation8 [shape = 'u8[8192]{0}', space=vmem, size = 0x2000, scoped, tag = 'input window, operand 4, single buffered']
    #allocation9 [shape = 's32[1]{0}', space=sflag, size = 0x4, scoped, tag = 'scoped memory for tpu_custom_call.1']
    #allocation10 [shape = 'u8[8192]{0}', space=vmem, size = 0x2000, scoped, tag = 'input window, operand 6, single buffered']
    #allocation11 [shape = 'u8[8192]{0}', space=vmem, size = 0x2000, scoped, tag = 'input window, operand 8, single buffered']
    #allocation12 [shape = 's32[1]{0}', space=sflag, size = 0x4, scoped, tag = 'scoped memory for tpu_custom_call.1']
    #allocation13 [shape = 'u8[8192]{0}', space=vmem, size = 0x2000, scoped, tag = 'input window, operand 10, single buffered']
    #allocation14 [shape = 'u8[8192]{0}', space=vmem, size = 0x2000, scoped, tag = 'input window, operand 12, single buffered']
    #allocation15 [shape = 's32[1]{0}', space=sflag, size = 0x4, scoped, tag = 'scoped memory for tpu_custom_call.1']
    #allocation16 [shape = 'u8[8192]{0}', space=vmem, size = 0x2000, scoped, tag = 'input window, operand 14, single buffered']
    #allocation17 [shape = 'u8[8192]{0}', space=vmem, size = 0x2000, scoped, tag = 'output window, operand 0']
    #allocation18 [shape = 'u8[8192]{0}', space=vmem, size = 0x2000, scoped, tag = 'output window, operand 1']
    #allocation19 [shape = 's32[2]{0}', space=sflag, size = 0x8, scoped, tag = 'scoped memory for tpu_custom_call.1']
    %31 = vsyncpa [#allocation6], 0
    %32 = vsyncpa [#allocation9], 0
    %33 = vsyncpa [#allocation12], 0
    %34 = vsyncpa [#allocation15], 0
    %35 = vsyncpa [#allocation7], 0
    %s36 = scalar_lea.sflag [#allocation7], 1
    %37 = vsyncpa %s36, 0
    %38 = vsyncpa [#allocation19], 0
    %s39 = scalar_lea.sflag [#allocation19], 1
    %40 = vsyncpa %s39, 0
    loop: start=0, step=1, limit=4
    $region2: #{tpu_custom_call.1} parent=1 // loop_pre_header
      _
    $region3: #{tpu_custom_call.1} parent=1 // loop_header
      %s42 = sphi 0, %s46
      %p43 = scmp.ge.s32.totalorder %s42, 4
      %s49 = sphi 0, %s61
      %s50 = sphi 0, %s57
      %s51 = sphi 0, %s49
      %s52 = sphi 0, %s50
      %s53 = sphi 0, %s51
      %s54 = sphi 0, %s52
      %s64 = sphi 0, %s66
      %s67 = sphi 0, %s64
      %s68 = sphi 0, %s67
      %s84 = sphi 0, %s68
      %s90 = sphi 0, %s92
      %s93 = sphi 0, %s90
      %s94 = sphi 0, %s93
      %s110 = sphi 0, %s94
      %s114 = sphi 0, %s114
      %s116 = sphi 0, %s114
      %s117 = sphi 0, %s116
      %s131 = sphi 0, %s117
      %s135 = sphi 0, %s135
      %s137 = sphi 0, %s135
      %s138 = sphi 0, %s137
      %s152 = sphi 0, %s138
      %s156 = sphi 0, %s156
      %s158 = sphi 0, %s156
      %s159 = sphi 0, %s158
      %s173 = sphi 0, %s159
      %s177 = sphi 0, %s177
      %s179 = sphi 0, %s177
      %s180 = sphi 0, %s179
      %s194 = sphi 0, %s180
      %s198 = sphi 0, %s198
      %s200 = sphi 0, %s198
      %s201 = sphi 0, %s200
      %s215 = sphi 0, %s201
      %s219 = sphi 0, %s219
      %s221 = sphi 0, %s219
      %s222 = sphi 0, %s221
      %s236 = sphi 0, %s222
      %s240 = sphi 0, %s240
      %s242 = sphi 0, %s240
      %s243 = sphi 0, %s242
      %s257 = sphi 0, %s243
      %s261 = sphi 0, %s261
      %s263 = sphi 0, %s261
      %s264 = sphi 0, %s263
      %s278 = sphi 0, %s264
      %s282 = sphi 0, %s282
      %s284 = sphi 0, %s282
      %s285 = sphi 0, %s284
      %s299 = sphi 0, %s285
      %s303 = sphi 0, %s303
      %s305 = sphi 0, %s303
      %s306 = sphi 0, %s305
      %s320 = sphi 0, %s306
      %s324 = sphi 0, %s324
      %s326 = sphi 0, %s324
      %s327 = sphi 0, %s326
      %s341 = sphi 0, %s327
      %s345 = sphi 0, %s345
      %s347 = sphi 0, %s345
      %s348 = sphi 0, %s347
      %s362 = sphi 0, %s348
      %s366 = sphi 0, %s366
      %s368 = sphi 0, %s366
      %s369 = sphi 0, %s368
      %s383 = sphi 0, %s369
      %s387 = sphi 0, %s387
      %s389 = sphi 0, %s387
      %s390 = sphi 0, %s389
      %s404 = sphi 0, %s390
      %s408 = sphi 0, %s408
      %s410 = sphi 0, %s408
      %s411 = sphi 0, %s410
      %s425 = sphi 0, %s411
      %s429 = sphi 0, %s429
      %s431 = sphi 0, %s429
      %s432 = sphi 0, %s431
      %s446 = sphi 0, %s432
      %s450 = sphi 0, %s450
      %s452 = sphi 0, %s450
      %s453 = sphi 0, %s452
      %s467 = sphi 0, %s453
      %s471 = sphi 0, %s471
      %s473 = sphi 0, %s471
      %s474 = sphi 0, %s473
      %s488 = sphi 0, %s474
      %s492 = sphi 0, %s492
      %s494 = sphi 0, %s492
      %s495 = sphi 0, %s494
      %s509 = sphi 0, %s495
      %s513 = sphi 0, %s513
      %s515 = sphi 0, %s513
      %s516 = sphi 0, %s515
      %s530 = sphi 0, %s516
      %s534 = sphi 0, %s534
      %s536 = sphi 0, %s534
      %s537 = sphi 0, %s536
      %s551 = sphi 0, %s537
      %s555 = sphi 0, %s555
      %s557 = sphi 0, %s555
      %s558 = sphi 0, %s557
      %s572 = sphi 0, %s558
      %s580 = sphi 0, %s582
      %s583 = sphi 0, %s580
      %s584 = sphi 0, %s583
      %s600 = sphi 0, %s584
      %s608 = sphi 0, %s610
      %s611 = sphi 0, %s608
      %s612 = sphi 0, %s611
      %s628 = sphi 0, %s612
    $region4: #{tpu_custom_call.1} parent=1 // loop_header_branch
      %45 = sbr.rel (%p43) target = $region8
    $region5: #{tpu_custom_call.1} parent=1 // loop_body
      %s47 = ssub.s32 %s42, 1
      %s48 = ssub.s32 %s42, 2
      %s55 = sadd.s32 1, %s50
      %p56 = scmp.ge.s32.totalorder %s55, 1
      %s57 = scalar_select %p56, 0, %s55
      %s58 = sadd.s32 1, %s49
      %s59 = scalar_select %p56, %s58, %s49
      %p60 = scmp.ge.s32.totalorder %s59, 2
      %s61 = scalar_select %p60, 0, %s59
      %s62 = ssub.s32 %s49, %s61
      %p63 = scmp.eq.s32.totalorder %s62, 0
      %s65 = sadd.s32 %s64, 1
      %s66 = scalar_select %p63, %s64, %s65
      %p69 = pneg %p63
      %p70 = scmp.eq.s32.totalorder %s42, 1
      %p71 = por %p69, %p70
      %p72 = scmp.ne.s32.totalorder %s64, %s67
      %p73 = scmp.eq.s32.totalorder %s42, 0
      %p74 = por %p72, %p73
      %p75 = scmp.ne.s32.totalorder %s64, %s67
      %p76 = scmp.eq.s32.totalorder %s47, 1
      %p77 = por %p75, %p76
      %p78 = scmp.ne.s32.totalorder %s67, %s68
      %p79 = scmp.eq.s32.totalorder %s47, 0
      %p80 = por %p78, %p79
      %p81 = scmp.ne.s32.totalorder %s67, %s68
      %p82 = scmp.eq.s32.totalorder %s48, 1
      %p83 = por %p81, %p82
      %p85 = scmp.ne.s32.totalorder %s68, %s84
      %p86 = scmp.eq.s32.totalorder %s48, 0
      %p87 = por %p85, %p86
      %s88 = ssub.s32 %s49, %s61
      %p89 = scmp.eq.s32.totalorder %s88, 0
      %s91 = sadd.s32 %s90, 1
      %s92 = scalar_select %p89, %s90, %s91
      %p95 = pneg %p89
      %p96 = scmp.eq.s32.totalorder %s42, 1
      %p97 = por %p95, %p96
      %p98 = scmp.ne.s32.totalorder %s90, %s93
      %p99 = scmp.eq.s32.totalorder %s42, 0
      %p100 = por %p98, %p99
      %p101 = scmp.ne.s32.totalorder %s90, %s93
      %p102 = scmp.eq.s32.totalorder %s47, 1
      %p103 = por %p101, %p102
      %p104 = scmp.ne.s32.totalorder %s93, %s94
      %p105 = scmp.eq.s32.totalorder %s47, 0
      %p106 = por %p104, %p105
      %p107 = scmp.ne.s32.totalorder %s93, %s94
      %p108 = scmp.eq.s32.totalorder %s48, 1
      %p109 = por %p107, %p108
      %p111 = scmp.ne.s32.totalorder %s94, %s110
      %p112 = scmp.eq.s32.totalorder %s48, 0
      %p113 = por %p111, %p112
      %s115 = sadd.s32 %s114, 1
      %p118 = scmp.eq.s32.totalorder %s42, 1
      %p119 = scmp.ne.s32.totalorder %s114, %s116
      %p120 = scmp.eq.s32.totalorder %s42, 0
      %p121 = por %p119, %p120
      %p122 = scmp.ne.s32.totalorder %s114, %s116
      %p123 = scmp.eq.s32.totalorder %s47, 1
      %p124 = por %p122, %p123
      %p125 = scmp.ne.s32.totalorder %s116, %s117
      %p126 = scmp.eq.s32.totalorder %s47, 0
      %p127 = por %p125, %p126
      %p128 = scmp.ne.s32.totalorder %s116, %s117
      %p129 = scmp.eq.s32.totalorder %s48, 1
      %p130 = por %p128, %p129
      %p132 = scmp.ne.s32.totalorder %s117, %s131
      %p133 = scmp.eq.s32.totalorder %s48, 0
      %p134 = por %p132, %p133
      %s136 = sadd.s32 %s135, 1
      %p139 = scmp.eq.s32.totalorder %s42, 1
      %p140 = scmp.ne.s32.totalorder %s135, %s137
      %p141 = scmp.eq.s32.totalorder %s42, 0
      %p142 = por %p140, %p141
      %p143 = scmp.ne.s32.totalorder %s135, %s137
      %p144 = scmp.eq.s32.totalorder %s47, 1
      %p145 = por %p143, %p144
      %p146 = scmp.ne.s32.totalorder %s137, %s138
      %p147 = scmp.eq.s32.totalorder %s47, 0
      %p148 = por %p146, %p147
      %p149 = scmp.ne.s32.totalorder %s137, %s138
      %p150 = scmp.eq.s32.totalorder %s48, 1
      %p151 = por %p149, %p150
      %p153 = scmp.ne.s32.totalorder %s138, %s152
      %p154 = scmp.eq.s32.totalorder %s48, 0
      %p155 = por %p153, %p154
      %s157 = sadd.s32 %s156, 1
      %p160 = scmp.eq.s32.totalorder %s42, 1
      %p161 = scmp.ne.s32.totalorder %s156, %s158
      %p162 = scmp.eq.s32.totalorder %s42, 0
      %p163 = por %p161, %p162
      %p164 = scmp.ne.s32.totalorder %s156, %s158
      %p165 = scmp.eq.s32.totalorder %s47, 1
      %p166 = por %p164, %p165
      %p167 = scmp.ne.s32.totalorder %s158, %s159
      %p168 = scmp.eq.s32.totalorder %s47, 0
      %p169 = por %p167, %p168
      %p170 = scmp.ne.s32.totalorder %s158, %s159
      %p171 = scmp.eq.s32.totalorder %s48, 1
      %p172 = por %p170, %p171
      %p174 = scmp.ne.s32.totalorder %s159, %s173
      %p175 = scmp.eq.s32.totalorder %s48, 0
      %p176 = por %p174, %p175
      %s178 = sadd.s32 %s177, 1
      %p181 = scmp.eq.s32.totalorder %s42, 1
      %p182 = scmp.ne.s32.totalorder %s177, %s179
      %p183 = scmp.eq.s32.totalorder %s42, 0
      %p184 = por %p182, %p183
      %p185 = scmp.ne.s32.totalorder %s177, %s179
      %p186 = scmp.eq.s32.totalorder %s47, 1
      %p187 = por %p185, %p186
      %p188 = scmp.ne.s32.totalorder %s179, %s180
      %p189 = scmp.eq.s32.totalorder %s47, 0
      %p190 = por %p188, %p189
      %p191 = scmp.ne.s32.totalorder %s179, %s180
      %p192 = scmp.eq.s32.totalorder %s48, 1
      %p193 = por %p191, %p192
      %p195 = scmp.ne.s32.totalorder %s180, %s194
      %p196 = scmp.eq.s32.totalorder %s48, 0
      %p197 = por %p195, %p196
      %s199 = sadd.s32 %s198, 1
      %p202 = scmp.eq.s32.totalorder %s42, 1
      %p203 = scmp.ne.s32.totalorder %s198, %s200
      %p204 = scmp.eq.s32.totalorder %s42, 0
      %p205 = por %p203, %p204
      %p206 = scmp.ne.s32.totalorder %s198, %s200
      %p207 = scmp.eq.s32.totalorder %s47, 1
      %p208 = por %p206, %p207
      %p209 = scmp.ne.s32.totalorder %s200, %s201
      %p210 = scmp.eq.s32.totalorder %s47, 0
      %p211 = por %p209, %p210
      %p212 = scmp.ne.s32.totalorder %s200, %s201
      %p213 = scmp.eq.s32.totalorder %s48, 1
      %p214 = por %p212, %p213
      %p216 = scmp.ne.s32.totalorder %s201, %s215
      %p217 = scmp.eq.s32.totalorder %s48, 0
      %p218 = por %p216, %p217
      %s220 = sadd.s32 %s219, 1
      %p223 = scmp.eq.s32.totalorder %s42, 1
      %p224 = scmp.ne.s32.totalorder %s219, %s221
      %p225 = scmp.eq.s32.totalorder %s42, 0
      %p226 = por %p224, %p225
      %p227 = scmp.ne.s32.totalorder %s219, %s221
      %p228 = scmp.eq.s32.totalorder %s47, 1
      %p229 = por %p227, %p228
      %p230 = scmp.ne.s32.totalorder %s221, %s222
      %p231 = scmp.eq.s32.totalorder %s47, 0
      %p232 = por %p230, %p231
      %p233 = scmp.ne.s32.totalorder %s221, %s222
      %p234 = scmp.eq.s32.totalorder %s48, 1
      %p235 = por %p233, %p234
      %p237 = scmp.ne.s32.totalorder %s222, %s236
      %p238 = scmp.eq.s32.totalorder %s48, 0
      %p239 = por %p237, %p238
      %s241 = sadd.s32 %s240, 1
      %p244 = scmp.eq.s32.totalorder %s42, 1
      %p245 = scmp.ne.s32.totalorder %s240, %s242
      %p246 = scmp.eq.s32.totalorder %s42, 0
      %p247 = por %p245, %p246
      %p248 = scmp.ne.s32.totalorder %s240, %s242
      %p249 = scmp.eq.s32.totalorder %s47, 1
      %p250 = por %p248, %p249
      %p251 = scmp.ne.s32.totalorder %s242, %s243
      %p252 = scmp.eq.s32.totalorder %s47, 0
      %p253 = por %p251, %p252
      %p254 = scmp.ne.s32.totalorder %s242, %s243
      %p255 = scmp.eq.s32.totalorder %s48, 1
      %p256 = por %p254, %p255
      %p258 = scmp.ne.s32.totalorder %s243, %s257
      %p259 = scmp.eq.s32.totalorder %s48, 0
      %p260 = por %p258, %p259
      %s262 = sadd.s32 %s261, 1
      %p265 = scmp.eq.s32.totalorder %s42, 1
      %p266 = scmp.ne.s32.totalorder %s261, %s263
      %p267 = scmp.eq.s32.totalorder %s42, 0
      %p268 = por %p266, %p267
      %p269 = scmp.ne.s32.totalorder %s261, %s263
      %p270 = scmp.eq.s32.totalorder %s47, 1
      %p271 = por %p269, %p270
      %p272 = scmp.ne.s32.totalorder %s263, %s264
      %p273 = scmp.eq.s32.totalorder %s47, 0
      %p274 = por %p272, %p273
      %p275 = scmp.ne.s32.totalorder %s263, %s264
      %p276 = scmp.eq.s32.totalorder %s48, 1
      %p277 = por %p275, %p276
      %p279 = scmp.ne.s32.totalorder %s264, %s278
      %p280 = scmp.eq.s32.totalorder %s48, 0
      %p281 = por %p279, %p280
      %s283 = sadd.s32 %s282, 1
      %p286 = scmp.eq.s32.totalorder %s42, 1
      %p287 = scmp.ne.s32.totalorder %s282, %s284
      %p288 = scmp.eq.s32.totalorder %s42, 0
      %p289 = por %p287, %p288
      %p290 = scmp.ne.s32.totalorder %s282, %s284
      %p291 = scmp.eq.s32.totalorder %s47, 1
      %p292 = por %p290, %p291
      %p293 = scmp.ne.s32.totalorder %s284, %s285
      %p294 = scmp.eq.s32.totalorder %s47, 0
      %p295 = por %p293, %p294
      %p296 = scmp.ne.s32.totalorder %s284, %s285
      %p297 = scmp.eq.s32.totalorder %s48, 1
      %p298 = por %p296, %p297
      %p300 = scmp.ne.s32.totalorder %s285, %s299
      %p301 = scmp.eq.s32.totalorder %s48, 0
      %p302 = por %p300, %p301
      %s304 = sadd.s32 %s303, 1
      %p307 = scmp.eq.s32.totalorder %s42, 1
      %p308 = scmp.ne.s32.totalorder %s303, %s305
      %p309 = scmp.eq.s32.totalorder %s42, 0
      %p310 = por %p308, %p309
      %p311 = scmp.ne.s32.totalorder %s303, %s305
      %p312 = scmp.eq.s32.totalorder %s47, 1
      %p313 = por %p311, %p312
      %p314 = scmp.ne.s32.totalorder %s305, %s306
      %p315 = scmp.eq.s32.totalorder %s47, 0
      %p316 = por %p314, %p315
      %p317 = scmp.ne.s32.totalorder %s305, %s306
      %p318 = scmp.eq.s32.totalorder %s48, 1
      %p319 = por %p317, %p318
      %p321 = scmp.ne.s32.totalorder %s306, %s320
      %p322 = scmp.eq.s32.totalorder %s48, 0
      %p323 = por %p321, %p322
      %s325 = sadd.s32 %s324, 1
      %p328 = scmp.eq.s32.totalorder %s42, 1
      %p329 = scmp.ne.s32.totalorder %s324, %s326
      %p330 = scmp.eq.s32.totalorder %s42, 0
      %p331 = por %p329, %p330
      %p332 = scmp.ne.s32.totalorder %s324, %s326
      %p333 = scmp.eq.s32.totalorder %s47, 1
      %p334 = por %p332, %p333
      %p335 = scmp.ne.s32.totalorder %s326, %s327
      %p336 = scmp.eq.s32.totalorder %s47, 0
      %p337 = por %p335, %p336
      %p338 = scmp.ne.s32.totalorder %s326, %s327
      %p339 = scmp.eq.s32.totalorder %s48, 1
      %p340 = por %p338, %p339
      %p342 = scmp.ne.s32.totalorder %s327, %s341
      %p343 = scmp.eq.s32.totalorder %s48, 0
      %p344 = por %p342, %p343
      %s346 = sadd.s32 %s345, 1
      %p349 = scmp.eq.s32.totalorder %s42, 1
      %p350 = scmp.ne.s32.totalorder %s345, %s347
      %p351 = scmp.eq.s32.totalorder %s42, 0
      %p352 = por %p350, %p351
      %p353 = scmp.ne.s32.totalorder %s345, %s347
      %p354 = scmp.eq.s32.totalorder %s47, 1
      %p355 = por %p353, %p354
      %p356 = scmp.ne.s32.totalorder %s347, %s348
      %p357 = scmp.eq.s32.totalorder %s47, 0
      %p358 = por %p356, %p357
      %p359 = scmp.ne.s32.totalorder %s347, %s348
      %p360 = scmp.eq.s32.totalorder %s48, 1
      %p361 = por %p359, %p360
      %p363 = scmp.ne.s32.totalorder %s348, %s362
      %p364 = scmp.eq.s32.totalorder %s48, 0
      %p365 = por %p363, %p364
      %s367 = sadd.s32 %s366, 1
      %p370 = scmp.eq.s32.totalorder %s42, 1
      %p371 = scmp.ne.s32.totalorder %s366, %s368
      %p372 = scmp.eq.s32.totalorder %s42, 0
      %p373 = por %p371, %p372
      %p374 = scmp.ne.s32.totalorder %s366, %s368
      %p375 = scmp.eq.s32.totalorder %s47, 1
      %p376 = por %p374, %p375
      %p377 = scmp.ne.s32.totalorder %s368, %s369
      %p378 = scmp.eq.s32.totalorder %s47, 0
      %p379 = por %p377, %p378
      %p380 = scmp.ne.s32.totalorder %s368, %s369
      %p381 = scmp.eq.s32.totalorder %s48, 1
      %p382 = por %p380, %p381
      %p384 = scmp.ne.s32.totalorder %s369, %s383
      %p385 = scmp.eq.s32.totalorder %s48, 0
      %p386 = por %p384, %p385
      %s388 = sadd.s32 %s387, 1
      %p391 = scmp.eq.s32.totalorder %s42, 1
      %p392 = scmp.ne.s32.totalorder %s387, %s389
      %p393 = scmp.eq.s32.totalorder %s42, 0
      %p394 = por %p392, %p393
      %p395 = scmp.ne.s32.totalorder %s387, %s389
      %p396 = scmp.eq.s32.totalorder %s47, 1
      %p397 = por %p395, %p396
      %p398 = scmp.ne.s32.totalorder %s389, %s390
      %p399 = scmp.eq.s32.totalorder %s47, 0
      %p400 = por %p398, %p399
      %p401 = scmp.ne.s32.totalorder %s389, %s390
      %p402 = scmp.eq.s32.totalorder %s48, 1
      %p403 = por %p401, %p402
      %p405 = scmp.ne.s32.totalorder %s390, %s404
      %p406 = scmp.eq.s32.totalorder %s48, 0
      %p407 = por %p405, %p406
      %s409 = sadd.s32 %s408, 1
      %p412 = scmp.eq.s32.totalorder %s42, 1
      %p413 = scmp.ne.s32.totalorder %s408, %s410
      %p414 = scmp.eq.s32.totalorder %s42, 0
      %p415 = por %p413, %p414
      %p416 = scmp.ne.s32.totalorder %s408, %s410
      %p417 = scmp.eq.s32.totalorder %s47, 1
      %p418 = por %p416, %p417
      %p419 = scmp.ne.s32.totalorder %s410, %s411
      %p420 = scmp.eq.s32.totalorder %s47, 0
      %p421 = por %p419, %p420
      %p422 = scmp.ne.s32.totalorder %s410, %s411
      %p423 = scmp.eq.s32.totalorder %s48, 1
      %p424 = por %p422, %p423
      %p426 = scmp.ne.s32.totalorder %s411, %s425
      %p427 = scmp.eq.s32.totalorder %s48, 0
      %p428 = por %p426, %p427
      %s430 = sadd.s32 %s429, 1
      %p433 = scmp.eq.s32.totalorder %s42, 1
      %p434 = scmp.ne.s32.totalorder %s429, %s431
      %p435 = scmp.eq.s32.totalorder %s42, 0
      %p436 = por %p434, %p435
      %p437 = scmp.ne.s32.totalorder %s429, %s431
      %p438 = scmp.eq.s32.totalorder %s47, 1
      %p439 = por %p437, %p438
      %p440 = scmp.ne.s32.totalorder %s431, %s432
      %p441 = scmp.eq.s32.totalorder %s47, 0
      %p442 = por %p440, %p441
      %p443 = scmp.ne.s32.totalorder %s431, %s432
      %p444 = scmp.eq.s32.totalorder %s48, 1
      %p445 = por %p443, %p444
      %p447 = scmp.ne.s32.totalorder %s432, %s446
      %p448 = scmp.eq.s32.totalorder %s48, 0
      %p449 = por %p447, %p448
      %s451 = sadd.s32 %s450, 1
      %p454 = scmp.eq.s32.totalorder %s42, 1
      %p455 = scmp.ne.s32.totalorder %s450, %s452
      %p456 = scmp.eq.s32.totalorder %s42, 0
      %p457 = por %p455, %p456
      %p458 = scmp.ne.s32.totalorder %s450, %s452
      %p459 = scmp.eq.s32.totalorder %s47, 1
      %p460 = por %p458, %p459
      %p461 = scmp.ne.s32.totalorder %s452, %s453
      %p462 = scmp.eq.s32.totalorder %s47, 0
      %p463 = por %p461, %p462
      %p464 = scmp.ne.s32.totalorder %s452, %s453
      %p465 = scmp.eq.s32.totalorder %s48, 1
      %p466 = por %p464, %p465
      %p468 = scmp.ne.s32.totalorder %s453, %s467
      %p469 = scmp.eq.s32.totalorder %s48, 0
      %p470 = por %p468, %p469
      %s472 = sadd.s32 %s471, 1
      %p475 = scmp.eq.s32.totalorder %s42, 1
      %p476 = scmp.ne.s32.totalorder %s471, %s473
      %p477 = scmp.eq.s32.totalorder %s42, 0
      %p478 = por %p476, %p477
      %p479 = scmp.ne.s32.totalorder %s471, %s473
      %p480 = scmp.eq.s32.totalorder %s47, 1
      %p481 = por %p479, %p480
      %p482 = scmp.ne.s32.totalorder %s473, %s474
      %p483 = scmp.eq.s32.totalorder %s47, 0
      %p484 = por %p482, %p483
      %p485 = scmp.ne.s32.totalorder %s473, %s474
      %p486 = scmp.eq.s32.totalorder %s48, 1
      %p487 = por %p485, %p486
      %p489 = scmp.ne.s32.totalorder %s474, %s488
      %p490 = scmp.eq.s32.totalorder %s48, 0
      %p491 = por %p489, %p490
      %s493 = sadd.s32 %s492, 1
      %p496 = scmp.eq.s32.totalorder %s42, 1
      %p497 = scmp.ne.s32.totalorder %s492, %s494
      %p498 = scmp.eq.s32.totalorder %s42, 0
      %p499 = por %p497, %p498
      %p500 = scmp.ne.s32.totalorder %s492, %s494
      %p501 = scmp.eq.s32.totalorder %s47, 1
      %p502 = por %p500, %p501
      %p503 = scmp.ne.s32.totalorder %s494, %s495
      %p504 = scmp.eq.s32.totalorder %s47, 0
      %p505 = por %p503, %p504
      %p506 = scmp.ne.s32.totalorder %s494, %s495
      %p507 = scmp.eq.s32.totalorder %s48, 1
      %p508 = por %p506, %p507
      %p510 = scmp.ne.s32.totalorder %s495, %s509
      %p511 = scmp.eq.s32.totalorder %s48, 0
      %p512 = por %p510, %p511
      %s514 = sadd.s32 %s513, 1
      %p517 = scmp.eq.s32.totalorder %s42, 1
      %p518 = scmp.ne.s32.totalorder %s513, %s515
      %p519 = scmp.eq.s32.totalorder %s42, 0
      %p520 = por %p518, %p519
      %p521 = scmp.ne.s32.totalorder %s513, %s515
      %p522 = scmp.eq.s32.totalorder %s47, 1
      %p523 = por %p521, %p522
      %p524 = scmp.ne.s32.totalorder %s515, %s516
      %p525 = scmp.eq.s32.totalorder %s47, 0
      %p526 = por %p524, %p525
      %p527 = scmp.ne.s32.totalorder %s515, %s516
      %p528 = scmp.eq.s32.totalorder %s48, 1
      %p529 = por %p527, %p528
      %p531 = scmp.ne.s32.totalorder %s516, %s530
      %p532 = scmp.eq.s32.totalorder %s48, 0
      %p533 = por %p531, %p532
      %s535 = sadd.s32 %s534, 1
      %p538 = scmp.eq.s32.totalorder %s42, 1
      %p539 = scmp.ne.s32.totalorder %s534, %s536
      %p540 = scmp.eq.s32.totalorder %s42, 0
      %p541 = por %p539, %p540
      %p542 = scmp.ne.s32.totalorder %s534, %s536
      %p543 = scmp.eq.s32.totalorder %s47, 1
      %p544 = por %p542, %p543
      %p545 = scmp.ne.s32.totalorder %s536, %s537
      %p546 = scmp.eq.s32.totalorder %s47, 0
      %p547 = por %p545, %p546
      %p548 = scmp.ne.s32.totalorder %s536, %s537
      %p549 = scmp.eq.s32.totalorder %s48, 1
      %p550 = por %p548, %p549
      %p552 = scmp.ne.s32.totalorder %s537, %s551
      %p553 = scmp.eq.s32.totalorder %s48, 0
      %p554 = por %p552, %p553
      %s556 = sadd.s32 %s555, 1
      %p559 = scmp.eq.s32.totalorder %s42, 1
      %p560 = scmp.ne.s32.totalorder %s555, %s557
      %p561 = scmp.eq.s32.totalorder %s42, 0
      %p562 = por %p560, %p561
      %p563 = scmp.ne.s32.totalorder %s555, %s557
      %p564 = scmp.eq.s32.totalorder %s47, 1
      %p565 = por %p563, %p564
      %p566 = scmp.ne.s32.totalorder %s557, %s558
      %p567 = scmp.eq.s32.totalorder %s47, 0
      %p568 = por %p566, %p567
      %p569 = scmp.ne.s32.totalorder %s557, %s558
      %p570 = scmp.eq.s32.totalorder %s48, 1
      %p571 = por %p569, %p570
      %p573 = scmp.ne.s32.totalorder %s558, %s572
      %p574 = scmp.eq.s32.totalorder %s48, 0
      %p575 = por %p573, %p574
      %s576 = ssub.s32 %s49, %s61
      %s577 = ssub.s32 %s50, %s57
      %s578 = sor.u32 %s576, %s577
      %p579 = scmp.eq.s32.totalorder %s578, 0
      %s581 = sadd.s32 %s580, 1
      %s582 = scalar_select %p579, %s580, %s581
      %p585 = pneg %p579
      %p586 = scmp.eq.s32.totalorder %s42, 1
      %p587 = por %p585, %p586
      %p588 = scmp.ne.s32.totalorder %s580, %s583
      %p589 = scmp.eq.s32.totalorder %s42, 0
      %p590 = por %p588, %p589
      %p591 = scmp.ne.s32.totalorder %s580, %s583
      %p592 = scmp.eq.s32.totalorder %s47, 1
      %p593 = por %p591, %p592
      %p594 = scmp.ne.s32.totalorder %s583, %s584
      %p595 = scmp.eq.s32.totalorder %s47, 0
      %p596 = por %p594, %p595
      %p597 = scmp.ne.s32.totalorder %s583, %s584
      %p598 = scmp.eq.s32.totalorder %s48, 1
      %p599 = por %p597, %p598
      %p601 = scmp.ne.s32.totalorder %s584, %s600
      %p602 = scmp.eq.s32.totalorder %s48, 0
      %p603 = por %p601, %p602
      %s604 = ssub.s32 %s49, %s61
      %s605 = ssub.s32 %s50, %s57
      %s606 = sor.u32 %s604, %s605
      %p607 = scmp.eq.s32.totalorder %s606, 0
      %s609 = sadd.s32 %s608, 1
      %s610 = scalar_select %p607, %s608, %s609
      %p613 = pneg %p607
      %p614 = scmp.eq.s32.totalorder %s42, 1
      %p615 = por %p613, %p614
      %p616 = scmp.ne.s32.totalorder %s608, %s611
      %p617 = scmp.eq.s32.totalorder %s42, 0
      %p618 = por %p616, %p617
      %p619 = scmp.ne.s32.totalorder %s608, %s611
      %p620 = scmp.eq.s32.totalorder %s47, 1
      %p621 = por %p619, %p620
      %p622 = scmp.ne.s32.totalorder %s611, %s612
      %p623 = scmp.eq.s32.totalorder %s47, 0
      %p624 = por %p622, %p623
      %p625 = scmp.ne.s32.totalorder %s611, %s612
      %p626 = scmp.eq.s32.totalorder %s48, 1
      %p627 = por %p625, %p626
      %p629 = scmp.ne.s32.totalorder %s612, %s628
      %p630 = scmp.eq.s32.totalorder %s48, 0
      %p631 = por %p629, %p630
      %p632 = scmp.le.s32.totalorder 1, %s42
      %p633 = scmp.lt.s32.totalorder %s42, 3
      %p634 = pnand %p632, %p633
      %p635 = pneg %p634
      // Predicated region
      $region9: #{tpu_custom_call.1} parent=5 // pred_check
        _
      $region10: #{tpu_custom_call.1} parent=5 // pred_check_branch
        %637 = sbr.rel (%p634) target = $region12
      $region11: #{tpu_custom_call.1} parent=5 // pred_region
        %s638 = ssub.s32 %s42, 1
        // Predicated region
        $region13: #{tpu_custom_call.1} parent=11 // pred_check
          %p639 = pneg %p127
        $region14: #{tpu_custom_call.1} parent=11 // pred_check_branch
          %641 = sbr.rel (%p639) target = $region16
        $region15: #{tpu_custom_call.1} parent=11 // pred_region
          %s643 = ssub.s32 256, 256
          %644 = vsyncadd [#allocation6], %s643
          %s645 = sshll.u32 [#allocation5], 4
          %s646 = int_to_ptr.vmem [resolvable:$true] %s645
          %651 = dma.hbm_to_vmem [thread:$0]  %s2, 256, %s646, [#allocation6], 64, 64, 4
        $region16: #{tpu_custom_call.1} parent=11 // pred_fallthru
          _
        // Predicated region
        $region17: #{tpu_custom_call.1} parent=11 // pred_check
          %p652 = pneg %p148
        $region18: #{tpu_custom_call.1} parent=11 // pred_check_branch
          %654 = sbr.rel (%p652) target = $region20
        $region19: #{tpu_custom_call.1} parent=11 // pred_region
          _
        $region20: #{tpu_custom_call.1} parent=11 // pred_fallthru
          _
        // Predicated region
        $region21: #{tpu_custom_call.1} parent=11 // pred_check
          %p655 = pneg %p169
        $region22: #{tpu_custom_call.1} parent=11 // pred_check_branch
          %657 = sbr.rel (%p655) target = $region24
        $region23: #{tpu_custom_call.1} parent=11 // pred_region
          %s659 = ssub.s32 256, 256
          %660 = vsyncadd [#allocation9], %s659
          %s661 = sshll.u32 [#allocation8], 4
          %s662 = int_to_ptr.vmem [resolvable:$true] %s661
          %667 = dma.hbm_to_vmem [thread:$0]  %s4, 256, %s662, [#allocation9], 64, 64, 4
        $region24: #{tpu_custom_call.1} parent=11 // pred_fallthru
          _
        // Predicated region
        $region25: #{tpu_custom_call.1} parent=11 // pred_check
          %p668 = pneg %p190
        $region26: #{tpu_custom_call.1} parent=11 // pred_check_branch
          %670 = sbr.rel (%p668) target = $region28
        $region27: #{tpu_custom_call.1} parent=11 // pred_region
          _
        $region28: #{tpu_custom_call.1} parent=11 // pred_fallthru
          _
        // Predicated region
        $region29: #{tpu_custom_call.1} parent=11 // pred_check
          %p671 = pneg %p211
        $region30: #{tpu_custom_call.1} parent=11 // pred_check_branch
          %673 = sbr.rel (%p671) target = $region32
        $region31: #{tpu_custom_call.1} parent=11 // pred_region
          %s675 = ssub.s32 256, 256
          %676 = vsyncadd [#allocation9], %s675
          %s677 = sshll.u32 [#allocation10], 4
          %s678 = int_to_ptr.vmem [resolvable:$true] %s677
          %683 = dma.hbm_to_vmem [thread:$0]  %s6, 256, %s678, [#allocation9], 64, 64, 4
        $region32: #{tpu_custom_call.1} parent=11 // pred_fallthru
          _
        // Predicated region
        $region33: #{tpu_custom_call.1} parent=11 // pred_check
          %p684 = pneg %p232
        $region34: #{tpu_custom_call.1} parent=11 // pred_check_branch
          %686 = sbr.rel (%p684) target = $region36
        $region35: #{tpu_custom_call.1} parent=11 // pred_region
          _
        $region36: #{tpu_custom_call.1} parent=11 // pred_fallthru
          _
        // Predicated region
        $region37: #{tpu_custom_call.1} parent=11 // pred_check
          %p687 = pneg %p253
        $region38: #{tpu_custom_call.1} parent=11 // pred_check_branch
          %689 = sbr.rel (%p687) target = $region40
        $region39: #{tpu_custom_call.1} parent=11 // pred_region
          %s691 = ssub.s32 256, 256
          %692 = vsyncadd [#allocation12], %s691
          %s693 = sshll.u32 [#allocation11], 4
          %s694 = int_to_ptr.vmem [resolvable:$true] %s693
          %699 = dma.hbm_to_vmem [thread:$0]  %s8, 256, %s694, [#allocation12], 64, 64, 4
        $region40: #{tpu_custom_call.1} parent=11 // pred_fallthru
          _
        // Predicated region
        $region41: #{tpu_custom_call.1} parent=11 // pred_check
          %p700 = pneg %p274
        $region42: #{tpu_custom_call.1} parent=11 // pred_check_branch
          %702 = sbr.rel (%p700) target = $region44
        $region43: #{tpu_custom_call.1} parent=11 // pred_region
          _
        $region44: #{tpu_custom_call.1} parent=11 // pred_fallthru
          _
        // Predicated region
        $region45: #{tpu_custom_call.1} parent=11 // pred_check
          %p703 = pneg %p295
        $region46: #{tpu_custom_call.1} parent=11 // pred_check_branch
          %705 = sbr.rel (%p703) target = $region48
        $region47: #{tpu_custom_call.1} parent=11 // pred_region
          %s707 = ssub.s32 256, 256
          %708 = vsyncadd [#allocation12], %s707
          %s709 = sshll.u32 [#allocation13], 4
          %s710 = int_to_ptr.vmem [resolvable:$true] %s709
          %715 = dma.hbm_to_vmem [thread:$0]  %s10, 256, %s710, [#allocation12], 64, 64, 4
        $region48: #{tpu_custom_call.1} parent=11 // pred_fallthru
          _
        // Predicated region
        $region49: #{tpu_custom_call.1} parent=11 // pred_check
          %p716 = pneg %p316
        $region50: #{tpu_custom_call.1} parent=11 // pred_check_branch
          %718 = sbr.rel (%p716) target = $region52
        $region51: #{tpu_custom_call.1} parent=11 // pred_region
          _
        $region52: #{tpu_custom_call.1} parent=11 // pred_fallthru
          _
        // Predicated region
        $region53: #{tpu_custom_call.1} parent=11 // pred_check
          %p719 = pneg %p337
        $region54: #{tpu_custom_call.1} parent=11 // pred_check_branch
          %721 = sbr.rel (%p719) target = $region56
        $region55: #{tpu_custom_call.1} parent=11 // pred_region
          %s723 = ssub.s32 256, 256
          %724 = vsyncadd [#allocation15], %s723
          %s725 = sshll.u32 [#allocation14], 4
          %s726 = int_to_ptr.vmem [resolvable:$true] %s725
          %731 = dma.hbm_to_vmem [thread:$0]  %s12, 256, %s726, [#allocation15], 64, 64, 4
        $region56: #{tpu_custom_call.1} parent=11 // pred_fallthru
          _
        // Predicated region
        $region57: #{tpu_custom_call.1} parent=11 // pred_check
          %p732 = pneg %p358
        $region58: #{tpu_custom_call.1} parent=11 // pred_check_branch
          %734 = sbr.rel (%p732) target = $region60
        $region59: #{tpu_custom_call.1} parent=11 // pred_region
          _
        $region60: #{tpu_custom_call.1} parent=11 // pred_fallthru
          _
        // Predicated region
        $region61: #{tpu_custom_call.1} parent=11 // pred_check
          %p735 = pneg %p379
        $region62: #{tpu_custom_call.1} parent=11 // pred_check_branch
          %737 = sbr.rel (%p735) target = $region64
        $region63: #{tpu_custom_call.1} parent=11 // pred_region
          %s739 = ssub.s32 256, 256
          %740 = vsyncadd [#allocation15], %s739
          %s741 = sshll.u32 [#allocation16], 4
          %s742 = int_to_ptr.vmem [resolvable:$true] %s741
          %747 = dma.hbm_to_vmem [thread:$0]  %s14, 256, %s742, [#allocation15], 64, 64, 4
        $region64: #{tpu_custom_call.1} parent=11 // pred_fallthru
          _
        // Predicated region
        $region65: #{tpu_custom_call.1} parent=11 // pred_check
          %p748 = pneg %p400
        $region66: #{tpu_custom_call.1} parent=11 // pred_check_branch
          %750 = sbr.rel (%p748) target = $region68
        $region67: #{tpu_custom_call.1} parent=11 // pred_region
          _
        $region68: #{tpu_custom_call.1} parent=11 // pred_fallthru
          _
        // Predicated region
        $region69: #{tpu_custom_call.1} parent=11 // pred_check
          %p751 = pneg %p421
        $region70: #{tpu_custom_call.1} parent=11 // pred_check_branch
          %753 = sbr.rel (%p751) target = $region72
        $region71: #{tpu_custom_call.1} parent=11 // pred_region
          _
        $region72: #{tpu_custom_call.1} parent=11 // pred_fallthru
          _
        // Predicated region
        $region73: #{tpu_custom_call.1} parent=11 // pred_check
          %p754 = pneg %p442
        $region74: #{tpu_custom_call.1} parent=11 // pred_check_branch
          %756 = sbr.rel (%p754) target = $region76
        $region75: #{tpu_custom_call.1} parent=11 // pred_region
          _
        $region76: #{tpu_custom_call.1} parent=11 // pred_fallthru
          _
        // Predicated region
        $region77: #{tpu_custom_call.1} parent=11 // pred_check
          %p757 = pneg %p463
        $region78: #{tpu_custom_call.1} parent=11 // pred_check_branch
          %759 = sbr.rel (%p757) target = $region80
        $region79: #{tpu_custom_call.1} parent=11 // pred_region
          _
        $region80: #{tpu_custom_call.1} parent=11 // pred_fallthru
          _
        // Predicated region
        $region81: #{tpu_custom_call.1} parent=11 // pred_check
          %p760 = pneg %p484
        $region82: #{tpu_custom_call.1} parent=11 // pred_check_branch
          %762 = sbr.rel (%p760) target = $region84
        $region83: #{tpu_custom_call.1} parent=11 // pred_region
          _
        $region84: #{tpu_custom_call.1} parent=11 // pred_fallthru
          _
        // Predicated region
        $region85: #{tpu_custom_call.1} parent=11 // pred_check
          %p763 = pneg %p505
        $region86: #{tpu_custom_call.1} parent=11 // pred_check_branch
          %765 = sbr.rel (%p763) target = $region88
        $region87: #{tpu_custom_call.1} parent=11 // pred_region
          _
        $region88: #{tpu_custom_call.1} parent=11 // pred_fallthru
          _
        // Predicated region
        $region89: #{tpu_custom_call.1} parent=11 // pred_check
          %p766 = pneg %p526
        $region90: #{tpu_custom_call.1} parent=11 // pred_check_branch
          %768 = sbr.rel (%p766) target = $region92
        $region91: #{tpu_custom_call.1} parent=11 // pred_region
          _
        $region92: #{tpu_custom_call.1} parent=11 // pred_fallthru
          _
        // Predicated region
        $region93: #{tpu_custom_call.1} parent=11 // pred_check
          %p769 = pneg %p547
        $region94: #{tpu_custom_call.1} parent=11 // pred_check_branch
          %771 = sbr.rel (%p769) target = $region96
        $region95: #{tpu_custom_call.1} parent=11 // pred_region
          _
        $region96: #{tpu_custom_call.1} parent=11 // pred_fallthru
          _
        // Predicated region
        $region97: #{tpu_custom_call.1} parent=11 // pred_check
          %p772 = pneg %p568
        $region98: #{tpu_custom_call.1} parent=11 // pred_check_branch
          %774 = sbr.rel (%p772) target = $region100
        $region99: #{tpu_custom_call.1} parent=11 // pred_region
          _
        $region100: #{tpu_custom_call.1} parent=11 // pred_fallthru
          _
      $region12: #{tpu_custom_call.1} parent=5 // pred_fallthru
        _
      %p775 = scmp.lt.s32.totalorder %s42, 2
      // Predicated region
      $region101: #{tpu_custom_call.1} parent=5 // pred_check
        %p776 = pneg %p775
      $region102: #{tpu_custom_call.1} parent=5 // pred_check_branch
        %778 = sbr.rel (%p776) target = $region104
      $region103: #{tpu_custom_call.1} parent=5 // pred_region
        // Predicated region
        $region105: #{tpu_custom_call.1} parent=103 // pred_check
          %p779 = pneg %p74
        $region106: #{tpu_custom_call.1} parent=103 // pred_check_branch
          %781 = sbr.rel (%p779) target = $region108
        $region107: #{tpu_custom_call.1} parent=103 // pred_region
          %p782 = scmp.lt.s32.totalorder %s49, 1
          %s783 = scalar_select %p782, %s49, 1
          %s784 = smul.addr %s783, 8
          %s785 = scalar_lea.vmem %s0, %s784
        $region108: #{tpu_custom_call.1} parent=103 // pred_fallthru
          _
        // Predicated region
        $region109: #{tpu_custom_call.1} parent=103 // pred_check
          %p786 = pneg %p100
        $region110: #{tpu_custom_call.1} parent=103 // pred_check_branch
          %788 = sbr.rel (%p786) target = $region112
        $region111: #{tpu_custom_call.1} parent=103 // pred_region
          %p789 = scmp.lt.s32.totalorder %s49, 1
          %s790 = scalar_select %p789, %s49, 1
          %s791 = smul.addr %s790, 2
          %s792 = smul.addr %s791, 8
          %s793 = scalar_lea.vmem %s1, %s792
        $region112: #{tpu_custom_call.1} parent=103 // pred_fallthru
          _
      $region104: #{tpu_custom_call.1} parent=5 // pred_fallthru
        _
      %p794 = scmp.le.s32.totalorder 1, %s42
      %p795 = scmp.lt.s32.totalorder %s42, 3
      %p796 = pnand %p794, %p795
      %p797 = pneg %p796
      // Predicated region
      $region113: #{tpu_custom_call.1} parent=5 // pred_check
        _
      $region114: #{tpu_custom_call.1} parent=5 // pred_check_branch
        %799 = sbr.rel (%p796) target = $region116
      $region115: #{tpu_custom_call.1} parent=5 // pred_region
        %s800 = ssub.s32 %s42, 1
        // Predicated region
        $region117: #{tpu_custom_call.1} parent=115 // pred_check
          %p801 = pneg %p127
        $region118: #{tpu_custom_call.1} parent=115 // pred_check_branch
          %803 = sbr.rel (%p801) target = $region120
        $region119: #{tpu_custom_call.1} parent=115 // pred_region
          %804 = dma.done [#allocation6], 256
        $region120: #{tpu_custom_call.1} parent=115 // pred_fallthru
          _
        // Predicated region
        $region121: #{tpu_custom_call.1} parent=115 // pred_check
          %p805 = pneg %p169
        $region122: #{tpu_custom_call.1} parent=115 // pred_check_branch
          %807 = sbr.rel (%p805) target = $region124
        $region123: #{tpu_custom_call.1} parent=115 // pred_region
          %808 = dma.done [#allocation9], 256
        $region124: #{tpu_custom_call.1} parent=115 // pred_fallthru
          _
        // Predicated region
        $region125: #{tpu_custom_call.1} parent=115 // pred_check
          %p809 = pneg %p211
        $region126: #{tpu_custom_call.1} parent=115 // pred_check_branch
          %811 = sbr.rel (%p809) target = $region128
        $region127: #{tpu_custom_call.1} parent=115 // pred_region
          %812 = dma.done [#allocation9], 256
        $region128: #{tpu_custom_call.1} parent=115 // pred_fallthru
          _
        // Predicated region
        $region129: #{tpu_custom_call.1} parent=115 // pred_check
          %p813 = pneg %p253
        $region130: #{tpu_custom_call.1} parent=115 // pred_check_branch
          %815 = sbr.rel (%p813) target = $region132
        $region131: #{tpu_custom_call.1} parent=115 // pred_region
          %816 = dma.done [#allocation12], 256
        $region132: #{tpu_custom_call.1} parent=115 // pred_fallthru
          _
        // Predicated region
        $region133: #{tpu_custom_call.1} parent=115 // pred_check
          %p817 = pneg %p295
        $region134: #{tpu_custom_call.1} parent=115 // pred_check_branch
          %819 = sbr.rel (%p817) target = $region136
        $region135: #{tpu_custom_call.1} parent=115 // pred_region
          %820 = dma.done [#allocation12], 256
        $region136: #{tpu_custom_call.1} parent=115 // pred_fallthru
          _
        // Predicated region
        $region137: #{tpu_custom_call.1} parent=115 // pred_check
          %p821 = pneg %p337
        $region138: #{tpu_custom_call.1} parent=115 // pred_check_branch
          %823 = sbr.rel (%p821) target = $region140
        $region139: #{tpu_custom_call.1} parent=115 // pred_region
          %824 = dma.done [#allocation15], 256
        $region140: #{tpu_custom_call.1} parent=115 // pred_fallthru
          _
        // Predicated region
        $region141: #{tpu_custom_call.1} parent=115 // pred_check
          %p825 = pneg %p379
        $region142: #{tpu_custom_call.1} parent=115 // pred_check_branch
          %827 = sbr.rel (%p825) target = $region144
        $region143: #{tpu_custom_call.1} parent=115 // pred_region
          %828 = dma.done [#allocation15], 256
        $region144: #{tpu_custom_call.1} parent=115 // pred_fallthru
          _
        %p829 = scmp.lt.s32.totalorder %s51, 1
        %s830 = scalar_select %p829, %s51, 1
        %s831 = smul.addr %s830, 8
        %s832 = scalar_lea.vmem %s0, %s831
        %p833 = pneg %p80
        %p834 = pneg %p77
        %p835 = scmp.lt.s32.totalorder %s51, 1
        %s836 = scalar_select %p835, %s51, 1
        %s837 = smul.addr %s836, 2
        %s838 = smul.addr %s837, 8
        %s839 = scalar_lea.vmem %s1, %s838
        %p840 = pneg %p106
        %p841 = pneg %p103
        %p842 = pneg %p127
        %p843 = pneg %p124
        %p844 = pneg %p148
        %p845 = pneg %p145
        %p846 = pneg %p169
        %p847 = pneg %p166
        %p848 = pneg %p190
        %p849 = pneg %p187
        %p850 = pneg %p211
        %p851 = pneg %p208
        %p852 = pneg %p232
        %p853 = pneg %p229
        %p854 = pneg %p253
        %p855 = pneg %p250
        %p856 = pneg %p274
        %p857 = pneg %p271
        %p858 = pneg %p295
        %p859 = pneg %p292
        %p860 = pneg %p316
        %p861 = pneg %p313
        %p862 = pneg %p337
        %p863 = pneg %p334
        %p864 = pneg %p358
        %p865 = pneg %p355
        %p866 = pneg %p379
        %p867 = pneg %p376
        %p868 = pneg %p400
        %p869 = pneg %p397
        %p870 = pneg %p421
        %p871 = pneg %p418
        %p872 = pneg %p442
        %p873 = pneg %p439
        %p874 = pneg %p463
        %p875 = pneg %p460
        %p876 = pneg %p484
        %p877 = pneg %p481
        %p878 = pneg %p505
        %p879 = pneg %p502
        %p880 = pneg %p526
        %p881 = pneg %p523
        %p882 = pneg %p547
        %p883 = pneg %p544
        %p884 = pneg %p568
        %p885 = pneg %p565
        %p886 = pneg %p596
        %p887 = pneg %p593
        %s888 = sand.u32 %s583, 1
        %s889 = scalar_lea.sflag [#allocation7], %s888
        %s890 = sand.u32 %s583, 1
        %s891 = smul.addr %s890, 8
        %s892 = scalar_lea.vmem [#allocation17], %s891
        %p893 = pneg %p624
        %p894 = pneg %p621
        %s895 = sand.u32 %s611, 1
        %s896 = scalar_lea.sflag [#allocation19], %s895
        %s897 = sand.u32 %s611, 1
        %s898 = smul.addr %s897, 8
        %s899 = scalar_lea.vmem [#allocation18], %s898
        %p900 = scmp.lt.s32.totalorder %s51, 1
        %s901 = scalar_select %p900, %s51, 1
        %s902 = smul.addr %s901, 8
        %s903 = scalar_lea.vmem %s0, %s902
        %p904 = scmp.lt.s32.totalorder %s51, 1
        %s905 = scalar_select %p904, %s51, 1
        %s906 = smul.addr %s905, 2
        %s907 = smul.addr %s906, 8
        %s908 = scalar_lea.vmem %s1, %s907
        %p910 = scmp.eq.s32.totalorder %s52, 0
        // Predicated region
        $region145: #{tpu_custom_call.1} parent=115 // pred_check
          %p911 = pneg %p910
        $region146: #{tpu_custom_call.1} parent=115 // pred_check_branch
          %913 = sbr.rel (%p911) target = $region148
        $region147: #{tpu_custom_call.1} parent=115 // pred_region
          %v914 = vld [vmem:[%s903] sm:$0xff]
          %v915 = vpack.c.bf16 %v914, %v914
          %v916 = vld [vmem:[#allocation8] sm:$0xf]
          %v917 = vld [vmem:[#allocation8 + $0x4] sm:$0xf]
          %v918 = vld [vmem:[#allocation8 + $0x8] sm:$0xf]
          %v919 = vld [vmem:[#allocation8 + $0xc] sm:$0xf]
          %v920 = vld [vmem:[%s5] sm:$0x1]
          %v922 = vlaneseq
          %v923 = vshrl.u32 %v922, 7
          %v924 = vsub.s32 0, %v923
          %v925 = vrot.slane %v920, %v924
          %v931 = vunpack.c.l.b16 %v916
          %v932 = vunpack.c.l.b16 %v917
          %v933 = vunpack.c.l.b16 %v918
          %v934 = vunpack.c.l.b16 %v919
          %v935 = vpack.c.b16 %v932, %v931
          %v936 = vpack.c.b16 %v934, %v933
          %vm939 = vcmask 261120
          %v941 = vsel %vm939, %v915, 0
          %943 = vmatprep.subr.bf16.mxu0 0
          %944 = vmatpush1.bf16.msra.mxu0 0
          %945 = vmatprep.subr.bf16.mxu0 0
          %946 = vmatpush1.bf16.msra.mxu0 0
          %947 = vmatprep.subr.bf16.mxu0 0
          %948 = vmatpush1.bf16.msra.mxu0 0
          %949 = vmatprep.subr.bf16.mxu0 0
          %950 = vmatpush1.bf16.msra.mxu0 0
          %951 = vmatprep.subr.bf16.mxu0 0
          %952 = vmatpush1.bf16.msra.mxu0 0
          %953 = vmatprep.subr.bf16.mxu0 0
          %954 = vmatpush1.bf16.msra.mxu0 0
          %955 = vmatprep.subr.bf16.mxu0 0
          %956 = vmatpush1.bf16.msra.mxu0 %v936
          %957 = vmatprep.subr.bf16.mxu0 0
          %958 = vmatpush1.bf16.msra.mxu0 %v935
          %959 = vmatprep.subr.bf16.mxu0 0
          %960 = vmatpush2.bf16.msra.mxu0 0
          %961 = vmatprep.subr.bf16.mxu0 0
          %962 = vmatpush2.bf16.msra.mxu0 0
          %963 = vmatprep.subr.bf16.mxu0 0
          %964 = vmatpush2.bf16.msra.mxu0 0
          %965 = vmatprep.subr.bf16.mxu0 0
          %966 = vmatpush2.bf16.msra.mxu0 0
          %967 = vmatprep.subr.bf16.mxu0 0
          %968 = vmatpush2.bf16.msra.mxu0 0
          %969 = vmatprep.subr.bf16.mxu0 0
          %970 = vmatpush2.bf16.msra.mxu0 0
          %971 = vmatprep.subr.bf16.mxu0 0
          %972 = vmatpush2.bf16.msra.mxu0 0
          %973 = vmatprep.subr.bf16.mxu0 0
          %974 = vmatpush2.bf16.msra.mxu0 0
          %975 = vmatprep.mubr.bf16.mxu0 0
          %976 = vmatmul.mubr.bf16.gmra.mxu0 %v941
          %v977 = vpop.f32.mrf.mxu0
          %v978 = vadd.f32 %v925, %v977
          %v979 = vpop.f32.mrf.mxu0
          %v980 = vpop.f32.mrf.mxu0
          %v981 = vpop.f32.mrf.mxu0
          %982 = vdwg.mxu0
          %v983 = vpack.c.bf16 %v978, %v978
          %vm984 = vcmask 519168
          %985 = vst.msk [vmem:[#allocation2] sm:$0xf] %vm984, %v983
          %v986 = vld [vmem:[%s908] sm:$0xff]
          %v987 = vld [vmem:[%s908 + $0x8] sm:$0xff]
          %v988 = vpack.c.bf16 %v987, %v986
          %v989 = vld [vmem:[#allocation13] sm:$0xf]
          %v990 = vld [vmem:[#allocation13 + $0x4] sm:$0xf]
          %v991 = vld [vmem:[#allocation13 + $0x8] sm:$0xf]
          %v992 = vld [vmem:[#allocation13 + $0xc] sm:$0xf]
          %v993 = vld [vmem:[%s11] sm:$0x1]
          %v995 = vlaneseq
          %v996 = vshrl.u32 %v995, 7
          %v997 = vsub.s32 0, %v996
          %v998 = vrot.slane %v993, %v997
          %v1004 = vunpack.c.l.b16 %v989
          %v1005 = vunpack.c.l.b16 %v990
          %v1006 = vunpack.c.l.b16 %v991
          %v1007 = vunpack.c.l.b16 %v992
          %v1008 = vpack.c.b16 %v1005, %v1004
          %v1009 = vpack.c.b16 %v1007, %v1006
          %v1013 = vsel %vm939, %v988, 0
          %1015 = vmatprep.subr.bf16.mxu0 0
          %1016 = vmatpush1.bf16.msra.mxu0 0
          %1017 = vmatprep.subr.bf16.mxu0 0
          %1018 = vmatpush1.bf16.msra.mxu0 0
          %1019 = vmatprep.subr.bf16.mxu0 0
          %1020 = vmatpush1.bf16.msra.mxu0 0
          %1021 = vmatprep.subr.bf16.mxu0 0
          %1022 = vmatpush1.bf16.msra.mxu0 0
          %1023 = vmatprep.subr.bf16.mxu0 0
          %1024 = vmatpush1.bf16.msra.mxu0 0
          %1025 = vmatprep.subr.bf16.mxu0 0
          %1026 = vmatpush1.bf16.msra.mxu0 0
          %1027 = vmatprep.subr.bf16.mxu0 0
          %1028 = vmatpush1.bf16.msra.mxu0 %v1009
          %1029 = vmatprep.subr.bf16.mxu0 0
          %1030 = vmatpush1.bf16.msra.mxu0 %v1008
          %1031 = vmatprep.subr.bf16.mxu0 0
          %1032 = vmatpush2.bf16.msra.mxu0 0
          %1033 = vmatprep.subr.bf16.mxu0 0
          %1034 = vmatpush2.bf16.msra.mxu0 0
          %1035 = vmatprep.subr.bf16.mxu0 0
          %1036 = vmatpush2.bf16.msra.mxu0 0
          %1037 = vmatprep.subr.bf16.mxu0 0
          %1038 = vmatpush2.bf16.msra.mxu0 0
          %1039 = vmatprep.subr.bf16.mxu0 0
          %1040 = vmatpush2.bf16.msra.mxu0 0
          %1041 = vmatprep.subr.bf16.mxu0 0
          %1042 = vmatpush2.bf16.msra.mxu0 0
          %1043 = vmatprep.subr.bf16.mxu0 0
          %1044 = vmatpush2.bf16.msra.mxu0 0
          %1045 = vmatprep.subr.bf16.mxu0 0
          %1046 = vmatpush2.bf16.msra.mxu0 0
          %1047 = vmatprep.mubr.bf16.mxu0 0
          %1048 = vmatmul.mubr.bf16.gmra.mxu0 %v1013
          %v1049 = vpop.f32.mrf.mxu0
          %v1050 = vadd.f32 %v998, %v1049
          %v1051 = vpop.f32.mrf.mxu0
          %v1052 = vpop.f32.mrf.mxu0
          %v1053 = vadd.f32 %v998, %v1052
          %v1054 = vpop.f32.mrf.mxu0
          %1055 = vdwg.mxu0
          %v1056 = vpack.c.bf16 %v1053, %v1050
          %v1058 = vunpack.c.l.b16 %v1056
          %v1059 = vunpack.c.h.b16 %v1056
          %v1060 = vpack.c.b16 %v1058, %v1058
          %v1061 = vpack.c.b16 %v1059, %v1059
          %1064 = vst.msk [vmem:[#allocation3] sm:$0xf] %vm984, %v1060
          %1065 = vst.msk [vmem:[#allocation3 + $0x4] sm:$0xf] %vm984, %v1061
        $region148: #{tpu_custom_call.1} parent=115 // pred_fallthru
          _
        %s1066 = smul.u32 %s52, 8
        %s1067 = scalar_lea.vmem %s903, %s1066
        %v1068 = vld [vmem:[%s1067] sm:$0xff]
        %v1069 = vld [vmem:[#allocation2] sm:$0xf]
        %v1070 = vld [vmem:[#allocation5] sm:$0xf]
        %v1071 = vld [vmem:[#allocation5 + $0x4] sm:$0xf]
        %v1072 = vld [vmem:[#allocation5 + $0x8] sm:$0xf]
        %v1073 = vld [vmem:[#allocation5 + $0xc] sm:$0xf]
        %v1074 = vld [vmem:[%s3] sm:$0x1]
        %v1075 = vld [vmem:[#allocation10] sm:$0xf]
        %v1076 = vld [vmem:[#allocation10 + $0x4] sm:$0xf]
        %v1077 = vld [vmem:[#allocation10 + $0x8] sm:$0xf]
        %v1078 = vld [vmem:[#allocation10 + $0xc] sm:$0xf]
        %v1079 = vld [vmem:[%s7] sm:$0x1]
        %v1080 = vpack.c.bf16 %v1068, %v1068
        %v1082 = vlaneseq
        %v1083 = vshrl.u32 %v1082, 7
        %v1084 = vsub.s32 0, %v1083
        %v1085 = vrot.slane %v1074, %v1084
        %v1091 = vunpack.c.l.b16 %v1070
        %v1092 = vunpack.c.l.b16 %v1071
        %v1093 = vunpack.c.l.b16 %v1072
        %v1094 = vunpack.c.l.b16 %v1073
        %v1095 = vpack.c.b16 %v1092, %v1091
        %v1096 = vpack.c.b16 %v1094, %v1093
        %vm1099 = vcmask 261120
        %v1101 = vsel %vm1099, %v1080, 0
        %1103 = vmatprep.subr.bf16.mxu0 0
        %1104 = vmatpush1.bf16.msra.mxu0 0
        %1105 = vmatprep.subr.bf16.mxu0 0
        %1106 = vmatpush1.bf16.msra.mxu0 0
        %1107 = vmatprep.subr.bf16.mxu0 0
        %1108 = vmatpush1.bf16.msra.mxu0 0
        %1109 = vmatprep.subr.bf16.mxu0 0
        %1110 = vmatpush1.bf16.msra.mxu0 0
        %1111 = vmatprep.subr.bf16.mxu0 0
        %1112 = vmatpush1.bf16.msra.mxu0 0
        %1113 = vmatprep.subr.bf16.mxu0 0
        %1114 = vmatpush1.bf16.msra.mxu0 0
        %1115 = vmatprep.subr.bf16.mxu0 0
        %1116 = vmatpush1.bf16.msra.mxu0 %v1096
        %1117 = vmatprep.subr.bf16.mxu0 0
        %1118 = vmatpush1.bf16.msra.mxu0 %v1095
        %1119 = vmatprep.subr.bf16.mxu0 0
        %1120 = vmatpush2.bf16.msra.mxu0 0
        %1121 = vmatprep.subr.bf16.mxu0 0
        %1122 = vmatpush2.bf16.msra.mxu0 0
        %1123 = vmatprep.subr.bf16.mxu0 0
        %1124 = vmatpush2.bf16.msra.mxu0 0
        %1125 = vmatprep.subr.bf16.mxu0 0
        %1126 = vmatpush2.bf16.msra.mxu0 0
        %1127 = vmatprep.subr.bf16.mxu0 0
        %1128 = vmatpush2.bf16.msra.mxu0 0
        %1129 = vmatprep.subr.bf16.mxu0 0
        %1130 = vmatpush2.bf16.msra.mxu0 0
        %1131 = vmatprep.subr.bf16.mxu0 0
        %1132 = vmatpush2.bf16.msra.mxu0 0
        %1133 = vmatprep.subr.bf16.mxu0 0
        %1134 = vmatpush2.bf16.msra.mxu0 0
        %1135 = vmatprep.mubr.bf16.mxu0 0
        %1136 = vmatmul.mubr.bf16.gmra.mxu0 %v1101
        %v1137 = vpop.f32.mrf.mxu0
        %v1138 = vadd.f32 %v1085, %v1137
        %v1139 = vpop.f32.mrf.mxu0
        %v1140 = vpop.f32.mrf.mxu0
        %v1141 = vpop.f32.mrf.mxu0
        %1142 = vdwg.mxu0
        %v1143 = vpack.c.bf16 %v1138, %v1138
        %vm1144 = vcmask 64512
        %v1146 = vsel %vm1144, %v1143, 0
        %v1149 = vsel %vm1144, %v1069, 0
        %1151 = vmatprep.subr.bf16.mxu0 0
        %1152 = vmatpush1.bf16.xpose.msra.mxu0 0
        %1153 = vmatprep.subr.bf16.mxu0 0
        %1154 = vmatpush1.bf16.xpose.msra.mxu0 0
        %1155 = vmatprep.subr.bf16.mxu0 0
        %1156 = vmatpush1.bf16.xpose.msra.mxu0 0
        %1157 = vmatprep.subr.bf16.mxu0 0
        %1158 = vmatpush1.bf16.xpose.msra.mxu0 0
        %1159 = vmatprep.subr.bf16.mxu0 0
        %1160 = vmatpush1.bf16.xpose.msra.mxu0 0
        %1161 = vmatprep.subr.bf16.mxu0 0
        %1162 = vmatpush1.bf16.xpose.msra.mxu0 0
        %1163 = vmatprep.subr.bf16.mxu0 0
        %1164 = vmatpush1.bf16.xpose.msra.mxu0 0
        %1165 = vmatprep.subr.bf16.mxu0 0
        %1166 = vmatpush1.bf16.xpose.msra.mxu0 %v1149
        %1167 = vmatprep.subr.bf16.mxu0 0
        %1168 = vmatpush2.bf16.xpose.msra.mxu0 0
        %1169 = vmatprep.subr.bf16.mxu0 0
        %1170 = vmatpush2.bf16.xpose.msra.mxu0 0
        %1171 = vmatprep.subr.bf16.mxu0 0
        %1172 = vmatpush2.bf16.xpose.msra.mxu0 0
        %1173 = vmatprep.subr.bf16.mxu0 0
        %1174 = vmatpush2.bf16.xpose.msra.mxu0 0
        %1175 = vmatprep.subr.bf16.mxu0 0
        %1176 = vmatpush2.bf16.xpose.msra.mxu0 0
        %1177 = vmatprep.subr.bf16.mxu0 0
        %1178 = vmatpush2.bf16.xpose.msra.mxu0 0
        %1179 = vmatprep.subr.bf16.mxu0 0
        %1180 = vmatpush2.bf16.xpose.msra.mxu0 0
        %1181 = vmatprep.subr.bf16.mxu0 0
        %1182 = vmatpush2.bf16.xpose.msra.mxu0 0
        %1183 = vmatprep.mubr.bf16.mxu0 0
        %1184 = vmatmul.mubr.bf16.gmra.mxu0 %v1146
        %v1185 = vpop.f32.mrf.mxu0
        %v1186 = vadd.f32 0.0, %v1185
        %v1187 = vpop.f32.mrf.mxu0
        %v1188 = vpop.f32.mrf.mxu0
        %v1189 = vpop.f32.mrf.mxu0
        %1190 = vdwg.mxu0
        %v1191 = vsel %vm1144, %v1186, -inf
        %1192 = vmax.xlane.f32.xlu0 %v1191
        %v1193 = vpop.xlane.xlu0 %1192
        %v1194 = vsub.f32 %v1186, %v1193
        %v1195 = vmul.f32 %v1194, 1.442695
        %v1196 = vpow.pop %v1195
        %v1197 = vsel %vm1144, %v1196, 0.0
        %1198 = vadd.xlane.f32.xlu0 %v1197
        %v1199 = vpop.xlane.xlu0 %1198
        %v1200 = vrcp.pop %v1199
        %v1201 = vmul.f32 %v1196, %v1200
        %v1202 = vpack.c.bf16 %v1201, %v1201
        %v1204 = vunpack.c.l.b16 %v1069
        %v1205 = vpack.c.b16 %v1204, %v1204
        %1206 = vrot.lane.b32.xlu0 %v1205, 96
        %v1207 = vpop.permute.xlu0 %1206
        %v1209 = vsel %vm1144, %v1202, 0
        %vm1211 = vcmask 1043456
        %v1213 = vsel %vm1211, %v1207, 0
        %1215 = vmatprep.subr.bf16.mxu0 0
        %1216 = vmatpush1.bf16.msra.mxu0 0
        %1217 = vmatprep.subr.bf16.mxu0 0
        %1218 = vmatpush1.bf16.msra.mxu0 0
        %1219 = vmatprep.subr.bf16.mxu0 0
        %1220 = vmatpush1.bf16.msra.mxu0 0
        %1221 = vmatprep.subr.bf16.mxu0 0
        %1222 = vmatpush1.bf16.msra.mxu0 0
        %1223 = vmatprep.subr.bf16.mxu0 0
        %1224 = vmatpush1.bf16.msra.mxu0 0
        %1225 = vmatprep.subr.bf16.mxu0 0
        %1226 = vmatpush1.bf16.msra.mxu0 0
        %1227 = vmatprep.subr.bf16.mxu0 0
        %1228 = vmatpush1.bf16.msra.mxu0 0
        %1229 = vmatprep.subr.bf16.mxu0 0
        %1230 = vmatpush1.bf16.msra.mxu0 %v1213
        %1231 = vmatprep.subr.bf16.mxu0 0
        %1232 = vmatpush2.bf16.msra.mxu0 0
        %1233 = vmatprep.subr.bf16.mxu0 0
        %1234 = vmatpush2.bf16.msra.mxu0 0
        %1235 = vmatprep.subr.bf16.mxu0 0
        %1236 = vmatpush2.bf16.msra.mxu0 0
        %1237 = vmatprep.subr.bf16.mxu0 0
        %1238 = vmatpush2.bf16.msra.mxu0 0
        %1239 = vmatprep.subr.bf16.mxu0 0
        %1240 = vmatpush2.bf16.msra.mxu0 0
        %1241 = vmatprep.subr.bf16.mxu0 0
        %1242 = vmatpush2.bf16.msra.mxu0 0
        %1243 = vmatprep.subr.bf16.mxu0 0
        %1244 = vmatpush2.bf16.msra.mxu0 0
        %1245 = vmatprep.subr.bf16.mxu0 0
        %1246 = vmatpush2.bf16.msra.mxu0 0
        %1247 = vmatprep.mubr.bf16.mxu0 0
        %1248 = vmatmul.mubr.bf16.gmra.mxu0 %v1209
        %v1249 = vpop.f32.mrf.mxu0
        %v1250 = vadd.f32 0.0, %v1249
        %v1251 = vpop.f32.mrf.mxu0
        %v1252 = vpop.f32.mrf.mxu0
        %v1253 = vpop.f32.mrf.mxu0
        %1254 = vdwg.mxu0
        %1255 = vst.msk [vmem:[#allocation4] sm:$0xff] %vm1144, %v1250
        %1257 = vrot.lane.b32.xlu0 %v1143, 120
        %v1258 = vpop.permute.xlu0 %1257
        %1259 = vrot.lane.b32.xlu0 %v1205, 120
        %v1260 = vpop.permute.xlu0 %1259
        %v1262 = vsel %vm1144, %v1258, 0
        %v1265 = vsel %vm1144, %v1260, 0
        %1267 = vmatprep.subr.bf16.mxu0 0
        %1268 = vmatpush1.bf16.xpose.msra.mxu0 0
        %1269 = vmatprep.subr.bf16.mxu0 0
        %1270 = vmatpush1.bf16.xpose.msra.mxu0 0
        %1271 = vmatprep.subr.bf16.mxu0 0
        %1272 = vmatpush1.bf16.xpose.msra.mxu0 0
        %1273 = vmatprep.subr.bf16.mxu0 0
        %1274 = vmatpush1.bf16.xpose.msra.mxu0 0
        %1275 = vmatprep.subr.bf16.mxu0 0
        %1276 = vmatpush1.bf16.xpose.msra.mxu0 0
        %1277 = vmatprep.subr.bf16.mxu0 0
        %1278 = vmatpush1.bf16.xpose.msra.mxu0 0
        %1279 = vmatprep.subr.bf16.mxu0 0
        %1280 = vmatpush1.bf16.xpose.msra.mxu0 0
        %1281 = vmatprep.subr.bf16.mxu0 0
        %1282 = vmatpush1.bf16.xpose.msra.mxu0 %v1265
        %1283 = vmatprep.subr.bf16.mxu0 0
        %1284 = vmatpush2.bf16.xpose.msra.mxu0 0
        %1285 = vmatprep.subr.bf16.mxu0 0
        %1286 = vmatpush2.bf16.xpose.msra.mxu0 0
        %1287 = vmatprep.subr.bf16.mxu0 0
        %1288 = vmatpush2.bf16.xpose.msra.mxu0 0
        %1289 = vmatprep.subr.bf16.mxu0 0
        %1290 = vmatpush2.bf16.xpose.msra.mxu0 0
        %1291 = vmatprep.subr.bf16.mxu0 0
        %1292 = vmatpush2.bf16.xpose.msra.mxu0 0
        %1293 = vmatprep.subr.bf16.mxu0 0
        %1294 = vmatpush2.bf16.xpose.msra.mxu0 0
        %1295 = vmatprep.subr.bf16.mxu0 0
        %1296 = vmatpush2.bf16.xpose.msra.mxu0 0
        %1297 = vmatprep.subr.bf16.mxu0 0
        %1298 = vmatpush2.bf16.xpose.msra.mxu0 0
        %1299 = vmatprep.mubr.bf16.mxu0 0
        %1300 = vmatmul.mubr.bf16.gmra.mxu0 %v1262
        %v1301 = vpop.f32.mrf.mxu0
        %v1302 = vadd.f32 0.0, %v1301
        %v1303 = vpop.f32.mrf.mxu0
        %v1304 = vpop.f32.mrf.mxu0
        %v1305 = vpop.f32.mrf.mxu0
        %1306 = vdwg.mxu0
        %v1307 = vsel %vm1144, %v1302, -inf
        %1308 = vmax.xlane.f32.xlu0 %v1307
        %v1309 = vpop.xlane.xlu0 %1308
        %v1310 = vsub.f32 %v1302, %v1309
        %v1311 = vmul.f32 %v1310, 1.442695
        %v1312 = vpow.pop %v1311
        %v1313 = vsel %vm1144, %v1312, 0.0
        %1314 = vadd.xlane.f32.xlu0 %v1313
        %v1315 = vpop.xlane.xlu0 %1314
        %v1316 = vrcp.pop %v1315
        %v1317 = vmul.f32 %v1312, %v1316
        %v1318 = vpack.c.bf16 %v1317, %v1317
        %1319 = vrot.lane.b32.xlu0 %v1205, 88
        %v1320 = vpop.permute.xlu0 %1319
        %v1322 = vsel %vm1144, %v1318, 0
        %v1325 = vsel %vm1211, %v1320, 0
        %1327 = vmatprep.subr.bf16.mxu0 0
        %1328 = vmatpush1.bf16.msra.mxu0 0
        %1329 = vmatprep.subr.bf16.mxu0 0
        %1330 = vmatpush1.bf16.msra.mxu0 0
        %1331 = vmatprep.subr.bf16.mxu0 0
        %1332 = vmatpush1.bf16.msra.mxu0 0
        %1333 = vmatprep.subr.bf16.mxu0 0
        %1334 = vmatpush1.bf16.msra.mxu0 0
        %1335 = vmatprep.subr.bf16.mxu0 0
        %1336 = vmatpush1.bf16.msra.mxu0 0
        %1337 = vmatprep.subr.bf16.mxu0 0
        %1338 = vmatpush1.bf16.msra.mxu0 0
        %1339 = vmatprep.subr.bf16.mxu0 0
        %1340 = vmatpush1.bf16.msra.mxu0 0
        %1341 = vmatprep.subr.bf16.mxu0 0
        %1342 = vmatpush1.bf16.msra.mxu0 %v1325
        %1343 = vmatprep.subr.bf16.mxu0 0
        %1344 = vmatpush2.bf16.msra.mxu0 0
        %1345 = vmatprep.subr.bf16.mxu0 0
        %1346 = vmatpush2.bf16.msra.mxu0 0
        %1347 = vmatprep.subr.bf16.mxu0 0
        %1348 = vmatpush2.bf16.msra.mxu0 0
        %1349 = vmatprep.subr.bf16.mxu0 0
        %1350 = vmatpush2.bf16.msra.mxu0 0
        %1351 = vmatprep.subr.bf16.mxu0 0
        %1352 = vmatpush2.bf16.msra.mxu0 0
        %1353 = vmatprep.subr.bf16.mxu0 0
        %1354 = vmatpush2.bf16.msra.mxu0 0
        %1355 = vmatprep.subr.bf16.mxu0 0
        %1356 = vmatpush2.bf16.msra.mxu0 0
        %1357 = vmatprep.subr.bf16.mxu0 0
        %1358 = vmatpush2.bf16.msra.mxu0 0
        %1359 = vmatprep.mubr.bf16.mxu0 0
        %1360 = vmatmul.mubr.bf16.gmra.mxu0 %v1322
        %v1361 = vpop.f32.mrf.mxu0
        %v1362 = vadd.f32 0.0, %v1361
        %v1363 = vpop.f32.mrf.mxu0
        %v1364 = vpop.f32.mrf.mxu0
        %v1365 = vpop.f32.mrf.mxu0
        %1366 = vdwg.mxu0
        %1368 = vrot.lane.b32.xlu0 %v1362, 8
        %v1369 = vpop.permute.xlu0 %1368
        %vm1371 = vcmask 130112
        %1372 = vst.msk [vmem:[#allocation4] sm:$0xff] %vm1371, %v1369
        %1373 = vrot.lane.b32.xlu0 %v1143, 112
        %v1374 = vpop.permute.xlu0 %1373
        %1375 = vrot.lane.b32.xlu0 %v1205, 112
        %v1376 = vpop.permute.xlu0 %1375
        %v1378 = vsel %vm1144, %v1374, 0
        %v1381 = vsel %vm1144, %v1376, 0
        %1383 = vmatprep.subr.bf16.mxu0 0
        %1384 = vmatpush1.bf16.xpose.msra.mxu0 0
        %1385 = vmatprep.subr.bf16.mxu0 0
        %1386 = vmatpush1.bf16.xpose.msra.mxu0 0
        %1387 = vmatprep.subr.bf16.mxu0 0
        %1388 = vmatpush1.bf16.xpose.msra.mxu0 0
        %1389 = vmatprep.subr.bf16.mxu0 0
        %1390 = vmatpush1.bf16.xpose.msra.mxu0 0
        %1391 = vmatprep.subr.bf16.mxu0 0
        %1392 = vmatpush1.bf16.xpose.msra.mxu0 0
        %1393 = vmatprep.subr.bf16.mxu0 0
        %1394 = vmatpush1.bf16.xpose.msra.mxu0 0
        %1395 = vmatprep.subr.bf16.mxu0 0
        %1396 = vmatpush1.bf16.xpose.msra.mxu0 0
        %1397 = vmatprep.subr.bf16.mxu0 0
        %1398 = vmatpush1.bf16.xpose.msra.mxu0 %v1381
        %1399 = vmatprep.subr.bf16.mxu0 0
        %1400 = vmatpush2.bf16.xpose.msra.mxu0 0
        %1401 = vmatprep.subr.bf16.mxu0 0
        %1402 = vmatpush2.bf16.xpose.msra.mxu0 0
        %1403 = vmatprep.subr.bf16.mxu0 0
        %1404 = vmatpush2.bf16.xpose.msra.mxu0 0
        %1405 = vmatprep.subr.bf16.mxu0 0
        %1406 = vmatpush2.bf16.xpose.msra.mxu0 0
        %1407 = vmatprep.subr.bf16.mxu0 0
        %1408 = vmatpush2.bf16.xpose.msra.mxu0 0
        %1409 = vmatprep.subr.bf16.mxu0 0
        %1410 = vmatpush2.bf16.xpose.msra.mxu0 0
        %1411 = vmatprep.subr.bf16.mxu0 0
        %1412 = vmatpush2.bf16.xpose.msra.mxu0 0
        %1413 = vmatprep.subr.bf16.mxu0 0
        %1414 = vmatpush2.bf16.xpose.msra.mxu0 0
        %1415 = vmatprep.mubr.bf16.mxu0 0
        %1416 = vmatmul.mubr.bf16.gmra.mxu0 %v1378
        %v1417 = vpop.f32.mrf.mxu0
        %v1418 = vadd.f32 0.0, %v1417
        %v1419 = vpop.f32.mrf.mxu0
        %v1420 = vpop.f32.mrf.mxu0
        %v1421 = vpop.f32.mrf.mxu0
        %1422 = vdwg.mxu0
        %v1423 = vsel %vm1144, %v1418, -inf
        %1424 = vmax.xlane.f32.xlu0 %v1423
        %v1425 = vpop.xlane.xlu0 %1424
        %v1426 = vsub.f32 %v1418, %v1425
        %v1427 = vmul.f32 %v1426, 1.442695
        %v1428 = vpow.pop %v1427
        %v1429 = vsel %vm1144, %v1428, 0.0
        %1430 = vadd.xlane.f32.xlu0 %v1429
        %v1431 = vpop.xlane.xlu0 %1430
        %v1432 = vrcp.pop %v1431
        %v1433 = vmul.f32 %v1428, %v1432
        %v1434 = vpack.c.bf16 %v1433, %v1433
        %1435 = vrot.lane.b32.xlu0 %v1205, 80
        %v1436 = vpop.permute.xlu0 %1435
        %v1438 = vsel %vm1144, %v1434, 0
        %v1441 = vsel %vm1211, %v1436, 0
        %1443 = vmatprep.subr.bf16.mxu0 0
        %1444 = vmatpush1.bf16.msra.mxu0 0
        %1445 = vmatprep.subr.bf16.mxu0 0
        %1446 = vmatpush1.bf16.msra.mxu0 0
        %1447 = vmatprep.subr.bf16.mxu0 0
        %1448 = vmatpush1.bf16.msra.mxu0 0
        %1449 = vmatprep.subr.bf16.mxu0 0
        %1450 = vmatpush1.bf16.msra.mxu0 0
        %1451 = vmatprep.subr.bf16.mxu0 0
        %1452 = vmatpush1.bf16.msra.mxu0 0
        %1453 = vmatprep.subr.bf16.mxu0 0
        %1454 = vmatpush1.bf16.msra.mxu0 0
        %1455 = vmatprep.subr.bf16.mxu0 0
        %1456 = vmatpush1.bf16.msra.mxu0 0
        %1457 = vmatprep.subr.bf16.mxu0 0
        %1458 = vmatpush1.bf16.msra.mxu0 %v1441
        %1459 = vmatprep.subr.bf16.mxu0 0
        %1460 = vmatpush2.bf16.msra.mxu0 0
        %1461 = vmatprep.subr.bf16.mxu0 0
        %1462 = vmatpush2.bf16.msra.mxu0 0
        %1463 = vmatprep.subr.bf16.mxu0 0
        %1464 = vmatpush2.bf16.msra.mxu0 0
        %1465 = vmatprep.subr.bf16.mxu0 0
        %1466 = vmatpush2.bf16.msra.mxu0 0
        %1467 = vmatprep.subr.bf16.mxu0 0
        %1468 = vmatpush2.bf16.msra.mxu0 0
        %1469 = vmatprep.subr.bf16.mxu0 0
        %1470 = vmatpush2.bf16.msra.mxu0 0
        %1471 = vmatprep.subr.bf16.mxu0 0
        %1472 = vmatpush2.bf16.msra.mxu0 0
        %1473 = vmatprep.subr.bf16.mxu0 0
        %1474 = vmatpush2.bf16.msra.mxu0 0
        %1475 = vmatprep.mubr.bf16.mxu0 0
        %1476 = vmatmul.mubr.bf16.gmra.mxu0 %v1438
        %v1477 = vpop.f32.mrf.mxu0
        %v1478 = vadd.f32 0.0, %v1477
        %v1479 = vpop.f32.mrf.mxu0
        %v1480 = vpop.f32.mrf.mxu0
        %v1481 = vpop.f32.mrf.mxu0
        %1482 = vdwg.mxu0
        %1484 = vrot.lane.b32.xlu0 %v1478, 16
        %v1485 = vpop.permute.xlu0 %1484
        %vm1487 = vcmask 195712
        %1488 = vst.msk [vmem:[#allocation4] sm:$0xff] %vm1487, %v1485
        %1489 = vrot.lane.b32.xlu0 %v1143, 104
        %v1490 = vpop.permute.xlu0 %1489
        %1491 = vrot.lane.b32.xlu0 %v1205, 104
        %v1492 = vpop.permute.xlu0 %1491
        %v1494 = vsel %vm1144, %v1490, 0
        %v1497 = vsel %vm1144, %v1492, 0
        %1499 = vmatprep.subr.bf16.mxu0 0
        %1500 = vmatpush1.bf16.xpose.msra.mxu0 0
        %1501 = vmatprep.subr.bf16.mxu0 0
        %1502 = vmatpush1.bf16.xpose.msra.mxu0 0
        %1503 = vmatprep.subr.bf16.mxu0 0
        %1504 = vmatpush1.bf16.xpose.msra.mxu0 0
        %1505 = vmatprep.subr.bf16.mxu0 0
        %1506 = vmatpush1.bf16.xpose.msra.mxu0 0
        %1507 = vmatprep.subr.bf16.mxu0 0
        %1508 = vmatpush1.bf16.xpose.msra.mxu0 0
        %1509 = vmatprep.subr.bf16.mxu0 0
        %1510 = vmatpush1.bf16.xpose.msra.mxu0 0
        %1511 = vmatprep.subr.bf16.mxu0 0
        %1512 = vmatpush1.bf16.xpose.msra.mxu0 0
        %1513 = vmatprep.subr.bf16.mxu0 0
        %1514 = vmatpush1.bf16.xpose.msra.mxu0 %v1497
        %1515 = vmatprep.subr.bf16.mxu0 0
        %1516 = vmatpush2.bf16.xpose.msra.mxu0 0
        %1517 = vmatprep.subr.bf16.mxu0 0
        %1518 = vmatpush2.bf16.xpose.msra.mxu0 0
        %1519 = vmatprep.subr.bf16.mxu0 0
        %1520 = vmatpush2.bf16.xpose.msra.mxu0 0
        %1521 = vmatprep.subr.bf16.mxu0 0
        %1522 = vmatpush2.bf16.xpose.msra.mxu0 0
        %1523 = vmatprep.subr.bf16.mxu0 0
        %1524 = vmatpush2.bf16.xpose.msra.mxu0 0
        %1525 = vmatprep.subr.bf16.mxu0 0
        %1526 = vmatpush2.bf16.xpose.msra.mxu0 0
        %1527 = vmatprep.subr.bf16.mxu0 0
        %1528 = vmatpush2.bf16.xpose.msra.mxu0 0
        %1529 = vmatprep.subr.bf16.mxu0 0
        %1530 = vmatpush2.bf16.xpose.msra.mxu0 0
        %1531 = vmatprep.mubr.bf16.mxu0 0
        %1532 = vmatmul.mubr.bf16.gmra.mxu0 %v1494
        %v1533 = vpop.f32.mrf.mxu0
        %v1534 = vadd.f32 0.0, %v1533
        %v1535 = vpop.f32.mrf.mxu0
        %v1536 = vpop.f32.mrf.mxu0
        %v1537 = vpop.f32.mrf.mxu0
        %1538 = vdwg.mxu0
        %v1539 = vsel %vm1144, %v1534, -inf
        %1540 = vmax.xlane.f32.xlu0 %v1539
        %v1541 = vpop.xlane.xlu0 %1540
        %v1542 = vsub.f32 %v1534, %v1541
        %v1543 = vmul.f32 %v1542, 1.442695
        %v1544 = vpow.pop %v1543
        %v1545 = vsel %vm1144, %v1544, 0.0
        %1546 = vadd.xlane.f32.xlu0 %v1545
        %v1547 = vpop.xlane.xlu0 %1546
        %v1548 = vrcp.pop %v1547
        %v1549 = vmul.f32 %v1544, %v1548
        %v1550 = vpack.c.bf16 %v1549, %v1549
        %1551 = vrot.lane.b32.xlu0 %v1205, 72
        %v1552 = vpop.permute.xlu0 %1551
        %v1554 = vsel %vm1144, %v1550, 0
        %v1557 = vsel %vm1211, %v1552, 0
        %1559 = vmatprep.subr.bf16.mxu0 0
        %1560 = vmatpush1.bf16.msra.mxu0 0
        %1561 = vmatprep.subr.bf16.mxu0 0
        %1562 = vmatpush1.bf16.msra.mxu0 0
        %1563 = vmatprep.subr.bf16.mxu0 0
        %1564 = vmatpush1.bf16.msra.mxu0 0
        %1565 = vmatprep.subr.bf16.mxu0 0
        %1566 = vmatpush1.bf16.msra.mxu0 0
        %1567 = vmatprep.subr.bf16.mxu0 0
        %1568 = vmatpush1.bf16.msra.mxu0 0
        %1569 = vmatprep.subr.bf16.mxu0 0
        %1570 = vmatpush1.bf16.msra.mxu0 0
        %1571 = vmatprep.subr.bf16.mxu0 0
        %1572 = vmatpush1.bf16.msra.mxu0 0
        %1573 = vmatprep.subr.bf16.mxu0 0
        %1574 = vmatpush1.bf16.msra.mxu0 %v1557
        %1575 = vmatprep.subr.bf16.mxu0 0
        %1576 = vmatpush2.bf16.msra.mxu0 0
        %1577 = vmatprep.subr.bf16.mxu0 0
        %1578 = vmatpush2.bf16.msra.mxu0 0
        %1579 = vmatprep.subr.bf16.mxu0 0
        %1580 = vmatpush2.bf16.msra.mxu0 0
        %1581 = vmatprep.subr.bf16.mxu0 0
        %1582 = vmatpush2.bf16.msra.mxu0 0
        %1583 = vmatprep.subr.bf16.mxu0 0
        %1584 = vmatpush2.bf16.msra.mxu0 0
        %1585 = vmatprep.subr.bf16.mxu0 0
        %1586 = vmatpush2.bf16.msra.mxu0 0
        %1587 = vmatprep.subr.bf16.mxu0 0
        %1588 = vmatpush2.bf16.msra.mxu0 0
        %1589 = vmatprep.subr.bf16.mxu0 0
        %1590 = vmatpush2.bf16.msra.mxu0 0
        %1591 = vmatprep.mubr.bf16.mxu0 0
        %1592 = vmatmul.mubr.bf16.gmra.mxu0 %v1554
        %v1593 = vpop.f32.mrf.mxu0
        %v1594 = vadd.f32 0.0, %v1593
        %v1595 = vpop.f32.mrf.mxu0
        %v1596 = vpop.f32.mrf.mxu0
        %v1597 = vpop.f32.mrf.mxu0
        %1598 = vdwg.mxu0
        %1600 = vrot.lane.b32.xlu0 %v1594, 24
        %v1601 = vpop.permute.xlu0 %1600
        %vm1603 = vcmask 261312
        %1604 = vst.msk [vmem:[#allocation4] sm:$0xff] %vm1603, %v1601
        %v1605 = vld [vmem:[#allocation4] sm:$0xff]
        %v1606 = vpack.c.bf16 %v1605, %v1605
        %v1608 = vlaneseq
        %v1609 = vshrl.u32 %v1608, 7
        %v1610 = vsub.s32 0, %v1609
        %v1611 = vrot.slane %v1079, %v1610
        %v1617 = vunpack.c.l.b16 %v1075
        %v1618 = vunpack.c.l.b16 %v1076
        %v1619 = vunpack.c.l.b16 %v1077
        %v1620 = vunpack.c.l.b16 %v1078
        %v1621 = vpack.c.b16 %v1618, %v1617
        %v1622 = vpack.c.b16 %v1620, %v1619
        %v1626 = vsel %vm1099, %v1606, 0
        %1628 = vmatprep.subr.bf16.mxu0 0
        %1629 = vmatpush1.bf16.msra.mxu0 0
        %1630 = vmatprep.subr.bf16.mxu0 0
        %1631 = vmatpush1.bf16.msra.mxu0 0
        %1632 = vmatprep.subr.bf16.mxu0 0
        %1633 = vmatpush1.bf16.msra.mxu0 0
        %1634 = vmatprep.subr.bf16.mxu0 0
        %1635 = vmatpush1.bf16.msra.mxu0 0
        %1636 = vmatprep.subr.bf16.mxu0 0
        %1637 = vmatpush1.bf16.msra.mxu0 0
        %1638 = vmatprep.subr.bf16.mxu0 0
        %1639 = vmatpush1.bf16.msra.mxu0 0
        %1640 = vmatprep.subr.bf16.mxu0 0
        %1641 = vmatpush1.bf16.msra.mxu0 %v1622
        %1642 = vmatprep.subr.bf16.mxu0 0
        %1643 = vmatpush1.bf16.msra.mxu0 %v1621
        %1644 = vmatprep.subr.bf16.mxu0 0
        %1645 = vmatpush2.bf16.msra.mxu0 0
        %1646 = vmatprep.subr.bf16.mxu0 0
        %1647 = vmatpush2.bf16.msra.mxu0 0
        %1648 = vmatprep.subr.bf16.mxu0 0
        %1649 = vmatpush2.bf16.msra.mxu0 0
        %1650 = vmatprep.subr.bf16.mxu0 0
        %1651 = vmatpush2.bf16.msra.mxu0 0
        %1652 = vmatprep.subr.bf16.mxu0 0
        %1653 = vmatpush2.bf16.msra.mxu0 0
        %1654 = vmatprep.subr.bf16.mxu0 0
        %1655 = vmatpush2.bf16.msra.mxu0 0
        %1656 = vmatprep.subr.bf16.mxu0 0
        %1657 = vmatpush2.bf16.msra.mxu0 0
        %1658 = vmatprep.subr.bf16.mxu0 0
        %1659 = vmatpush2.bf16.msra.mxu0 0
        %1660 = vmatprep.mubr.bf16.mxu0 0
        %1661 = vmatmul.mubr.bf16.gmra.mxu0 %v1626
        %v1662 = vpop.f32.mrf.mxu0
        %v1663 = vadd.f32 %v1611, %v1662
        %v1664 = vpop.f32.mrf.mxu0
        %v1665 = vpop.f32.mrf.mxu0
        %v1666 = vpop.f32.mrf.mxu0
        %1667 = vdwg.mxu0
        %v1668 = vadd.f32 %v1068, %v1663
        %v1669 = vld [vmem:[%s18] sm:$0x1]
        %v1670 = vld [vmem:[%s19] sm:$0x1]
        %v1671 = vsel %vm1099, %v1668, 0.0
        %1672 = vadd.xlane.f32.xlu0 %v1671
        %v1673 = vpop.xlane.xlu0 %1672
        %v1674 = vrcp.pop 32.0
        %v1675 = vmul.f32 %v1673, %v1674
        %v1676 = vsub.f32 %v1668, %v1675
        %v1677 = vmul.f32 %v1676, %v1676
        %v1678 = vsel %vm1099, %v1677, 0.0
        %1679 = vadd.xlane.f32.xlu0 %v1678
        %v1680 = vpop.xlane.xlu0 %1679
        %v1681 = vmul.f32 %v1680, %v1674
        %v1682 = vadd.f32 %v1681, 1e-05
        %v1683 = vrsqrt.pop %v1682
        %v1684 = vmul.f32 %v1676, %v1683
        %v1686 = vlaneseq
        %v1687 = vshrl.u32 %v1686, 7
        %v1688 = vsub.s32 0, %v1687
        %v1689 = vrot.slane %v1669, %v1688
        %v1691 = vmul.f32 %v1684, %v1689
        %v1693 = vlaneseq
        %v1694 = vshrl.u32 %v1693, 7
        %v1695 = vsub.s32 0, %v1694
        %v1696 = vrot.slane %v1670, %v1695
        %v1698 = vadd.f32 %v1691, %v1696
        %v1699 = vld [vmem:[#allocation3] sm:$0xf]
        %v1700 = vld [vmem:[#allocation3 + $0x4] sm:$0xf]
        %v1701 = vld [vmem:[#allocation11] sm:$0xf]
        %v1702 = vld [vmem:[#allocation11 + $0x4] sm:$0xf]
        %v1703 = vld [vmem:[#allocation11 + $0x8] sm:$0xf]
        %v1704 = vld [vmem:[#allocation11 + $0xc] sm:$0xf]
        %v1705 = vld [vmem:[%s9] sm:$0x1]
        %v1706 = vld [vmem:[#allocation14] sm:$0xf]
        %v1707 = vld [vmem:[#allocation14 + $0x4] sm:$0xf]
        %v1708 = vld [vmem:[#allocation14 + $0x8] sm:$0xf]
        %v1709 = vld [vmem:[#allocation14 + $0xc] sm:$0xf]
        %v1710 = vld [vmem:[%s13] sm:$0x1]
        %v1711 = vpack.c.bf16 %v1698, %v1698
        %v1713 = vlaneseq
        %v1714 = vshrl.u32 %v1713, 7
        %v1715 = vsub.s32 0, %v1714
        %v1716 = vrot.slane %v1705, %v1715
        %v1722 = vunpack.c.l.b16 %v1701
        %v1723 = vunpack.c.l.b16 %v1702
        %v1724 = vunpack.c.l.b16 %v1703
        %v1725 = vunpack.c.l.b16 %v1704
        %v1726 = vpack.c.b16 %v1723, %v1722
        %v1727 = vpack.c.b16 %v1725, %v1724
        %v1731 = vsel %vm1099, %v1711, 0
        %1733 = vmatprep.subr.bf16.mxu0 0
        %1734 = vmatpush1.bf16.msra.mxu0 0
        %1735 = vmatprep.subr.bf16.mxu0 0
        %1736 = vmatpush1.bf16.msra.mxu0 0
        %1737 = vmatprep.subr.bf16.mxu0 0
        %1738 = vmatpush1.bf16.msra.mxu0 0
        %1739 = vmatprep.subr.bf16.mxu0 0
        %1740 = vmatpush1.bf16.msra.mxu0 0
        %1741 = vmatprep.subr.bf16.mxu0 0
        %1742 = vmatpush1.bf16.msra.mxu0 0
        %1743 = vmatprep.subr.bf16.mxu0 0
        %1744 = vmatpush1.bf16.msra.mxu0 0
        %1745 = vmatprep.subr.bf16.mxu0 0
        %1746 = vmatpush1.bf16.msra.mxu0 %v1727
        %1747 = vmatprep.subr.bf16.mxu0 0
        %1748 = vmatpush1.bf16.msra.mxu0 %v1726
        %1749 = vmatprep.subr.bf16.mxu0 0
        %1750 = vmatpush2.bf16.msra.mxu0 0
        %1751 = vmatprep.subr.bf16.mxu0 0
        %1752 = vmatpush2.bf16.msra.mxu0 0
        %1753 = vmatprep.subr.bf16.mxu0 0
        %1754 = vmatpush2.bf16.msra.mxu0 0
        %1755 = vmatprep.subr.bf16.mxu0 0
        %1756 = vmatpush2.bf16.msra.mxu0 0
        %1757 = vmatprep.subr.bf16.mxu0 0
        %1758 = vmatpush2.bf16.msra.mxu0 0
        %1759 = vmatprep.subr.bf16.mxu0 0
        %1760 = vmatpush2.bf16.msra.mxu0 0
        %1761 = vmatprep.subr.bf16.mxu0 0
        %1762 = vmatpush2.bf16.msra.mxu0 0
        %1763 = vmatprep.subr.bf16.mxu0 0
        %1764 = vmatpush2.bf16.msra.mxu0 0
        %1765 = vmatprep.mubr.bf16.mxu0 0
        %1766 = vmatmul.mubr.bf16.gmra.mxu0 %v1731
        %v1767 = vpop.f32.mrf.mxu0
        %v1768 = vadd.f32 %v1716, %v1767
        %v1769 = vpop.f32.mrf.mxu0
        %v1770 = vpop.f32.mrf.mxu0
        %v1771 = vpop.f32.mrf.mxu0
        %1772 = vdwg.mxu0
        %v1773 = vpack.c.bf16 %v1768, %v1768
        %v1776 = vunpack.c.l.b16 %v1699
        %v1777 = vunpack.c.l.b16 %v1700
        %v1778 = vpack.c.b16 %v1777, %v1776
        %v1780 = vsel %vm1144, %v1773, 0
        %v1783 = vsel %vm1144, %v1778, 0
        %1785 = vmatprep.subr.bf16.mxu0 0
        %1786 = vmatpush1.bf16.xpose.msra.mxu0 0
        %1787 = vmatprep.subr.bf16.mxu0 0
        %1788 = vmatpush1.bf16.xpose.msra.mxu0 0
        %1789 = vmatprep.subr.bf16.mxu0 0
        %1790 = vmatpush1.bf16.xpose.msra.mxu0 0
        %1791 = vmatprep.subr.bf16.mxu0 0
        %1792 = vmatpush1.bf16.xpose.msra.mxu0 0
        %1793 = vmatprep.subr.bf16.mxu0 0
        %1794 = vmatpush1.bf16.xpose.msra.mxu0 0
        %1795 = vmatprep.subr.bf16.mxu0 0
        %1796 = vmatpush1.bf16.xpose.msra.mxu0 0
        %1797 = vmatprep.subr.bf16.mxu0 0
        %1798 = vmatpush1.bf16.xpose.msra.mxu0 0
        %1799 = vmatprep.subr.bf16.mxu0 0
        %1800 = vmatpush1.bf16.xpose.msra.mxu0 %v1783
        %1801 = vmatprep.subr.bf16.mxu0 0
        %1802 = vmatpush2.bf16.xpose.msra.mxu0 0
        %1803 = vmatprep.subr.bf16.mxu0 0
        %1804 = vmatpush2.bf16.xpose.msra.mxu0 0
        %1805 = vmatprep.subr.bf16.mxu0 0
        %1806 = vmatpush2.bf16.xpose.msra.mxu0 0
        %1807 = vmatprep.subr.bf16.mxu0 0
        %1808 = vmatpush2.bf16.xpose.msra.mxu0 0
        %1809 = vmatprep.subr.bf16.mxu0 0
        %1810 = vmatpush2.bf16.xpose.msra.mxu0 0
        %1811 = vmatprep.subr.bf16.mxu0 0
        %1812 = vmatpush2.bf16.xpose.msra.mxu0 0
        %1813 = vmatprep.subr.bf16.mxu0 0
        %1814 = vmatpush2.bf16.xpose.msra.mxu0 0
        %1815 = vmatprep.subr.bf16.mxu0 0
        %1816 = vmatpush2.bf16.xpose.msra.mxu0 0
        %1817 = vmatprep.mubr.bf16.mxu0 0
        %1818 = vmatmul.mubr.bf16.gmra.mxu0 %v1780
        %v1819 = vpop.f32.mrf.mxu0
        %v1820 = vadd.f32 0.0, %v1819
        %v1821 = vpop.f32.mrf.mxu0
        %v1822 = vpop.f32.mrf.mxu0
        %v1823 = vpop.f32.mrf.mxu0
        %1824 = vdwg.mxu0
        %vm1825 = vcmask 130048
        %v1826 = vsel %vm1825, %v1820, -inf
        %1827 = vmax.xlane.f32.xlu0 %v1826
        %v1828 = vpop.xlane.xlu0 %1827
        %v1829 = vsub.f32 %v1820, %v1828
        %v1830 = vmul.f32 %v1829, 1.442695
        %v1831 = vpow.pop %v1830
        %v1832 = vsel %vm1825, %v1831, 0.0
        %1833 = vadd.xlane.f32.xlu0 %v1832
        %v1834 = vpop.xlane.xlu0 %1833
        %v1835 = vrcp.pop %v1834
        %v1836 = vmul.f32 %v1831, %v1835
        %v1837 = vpack.c.bf16 %v1836, %v1836
        %1838 = vrot.lane.b32.xlu0 %v1778, 96
        %v1839 = vpop.permute.xlu0 %1838
        %v1842 = vsel %vm1825, %v1837, 0
        %1844 = vmatprep.subr.bf16.mxu0 0
        %1845 = vmatpush1.bf16.msra.mxu0 0
        %1846 = vmatprep.subr.bf16.mxu0 0
        %1847 = vmatpush1.bf16.msra.mxu0 0
        %1848 = vmatprep.subr.bf16.mxu0 0
        %1849 = vmatpush1.bf16.msra.mxu0 0
        %1850 = vmatprep.subr.bf16.mxu0 0
        %1851 = vmatpush1.bf16.msra.mxu0 0
        %1852 = vmatprep.subr.bf16.mxu0 0
        %1853 = vmatpush1.bf16.msra.mxu0 0
        %1854 = vmatprep.subr.bf16.mxu0 0
        %1855 = vmatpush1.bf16.msra.mxu0 0
        %1856 = vmatprep.subr.bf16.mxu0 0
        %1857 = vmatpush1.bf16.msra.mxu0 0
        %1858 = vmatprep.subr.bf16.mxu0 0
        %1859 = vmatpush1.bf16.msra.mxu0 %v1839
        %1860 = vmatprep.subr.bf16.mxu0 0
        %1861 = vmatpush2.bf16.msra.mxu0 0
        %1862 = vmatprep.subr.bf16.mxu0 0
        %1863 = vmatpush2.bf16.msra.mxu0 0
        %1864 = vmatprep.subr.bf16.mxu0 0
        %1865 = vmatpush2.bf16.msra.mxu0 0
        %1866 = vmatprep.subr.bf16.mxu0 0
        %1867 = vmatpush2.bf16.msra.mxu0 0
        %1868 = vmatprep.subr.bf16.mxu0 0
        %1869 = vmatpush2.bf16.msra.mxu0 0
        %1870 = vmatprep.subr.bf16.mxu0 0
        %1871 = vmatpush2.bf16.msra.mxu0 0
        %1872 = vmatprep.subr.bf16.mxu0 0
        %1873 = vmatpush2.bf16.msra.mxu0 0
        %1874 = vmatprep.subr.bf16.mxu0 0
        %1875 = vmatpush2.bf16.msra.mxu0 0
        %1876 = vmatprep.mubr.bf16.mxu0 0
        %1877 = vmatmul.mubr.bf16.gmra.mxu0 %v1842
        %v1878 = vpop.f32.mrf.mxu0
        %v1879 = vadd.f32 0.0, %v1878
        %v1880 = vpop.f32.mrf.mxu0
        %v1881 = vpop.f32.mrf.mxu0
        %v1882 = vpop.f32.mrf.mxu0
        %1883 = vdwg.mxu0
        %1884 = vst.msk [vmem:[#allocation4] sm:$0xff] %vm1144, %v1879
        %1886 = vrot.lane.b32.xlu0 %v1773, 120
        %v1887 = vpop.permute.xlu0 %1886
        %1888 = vrot.lane.b32.xlu0 %v1778, 120
        %v1889 = vpop.permute.xlu0 %1888
        %v1891 = vsel %vm1144, %v1887, 0
        %v1894 = vsel %vm1144, %v1889, 0
        %1896 = vmatprep.subr.bf16.mxu0 0
        %1897 = vmatpush1.bf16.xpose.msra.mxu0 0
        %1898 = vmatprep.subr.bf16.mxu0 0
        %1899 = vmatpush1.bf16.xpose.msra.mxu0 0
        %1900 = vmatprep.subr.bf16.mxu0 0
        %1901 = vmatpush1.bf16.xpose.msra.mxu0 0
        %1902 = vmatprep.subr.bf16.mxu0 0
        %1903 = vmatpush1.bf16.xpose.msra.mxu0 0
        %1904 = vmatprep.subr.bf16.mxu0 0
        %1905 = vmatpush1.bf16.xpose.msra.mxu0 0
        %1906 = vmatprep.subr.bf16.mxu0 0
        %1907 = vmatpush1.bf16.xpose.msra.mxu0 0
        %1908 = vmatprep.subr.bf16.mxu0 0
        %1909 = vmatpush1.bf16.xpose.msra.mxu0 0
        %1910 = vmatprep.subr.bf16.mxu0 0
        %1911 = vmatpush1.bf16.xpose.msra.mxu0 %v1894
        %1912 = vmatprep.subr.bf16.mxu0 0
        %1913 = vmatpush2.bf16.xpose.msra.mxu0 0
        %1914 = vmatprep.subr.bf16.mxu0 0
        %1915 = vmatpush2.bf16.xpose.msra.mxu0 0
        %1916 = vmatprep.subr.bf16.mxu0 0
        %1917 = vmatpush2.bf16.xpose.msra.mxu0 0
        %1918 = vmatprep.subr.bf16.mxu0 0
        %1919 = vmatpush2.bf16.xpose.msra.mxu0 0
        %1920 = vmatprep.subr.bf16.mxu0 0
        %1921 = vmatpush2.bf16.xpose.msra.mxu0 0
        %1922 = vmatprep.subr.bf16.mxu0 0
        %1923 = vmatpush2.bf16.xpose.msra.mxu0 0
        %1924 = vmatprep.subr.bf16.mxu0 0
        %1925 = vmatpush2.bf16.xpose.msra.mxu0 0
        %1926 = vmatprep.subr.bf16.mxu0 0
        %1927 = vmatpush2.bf16.xpose.msra.mxu0 0
        %1928 = vmatprep.mubr.bf16.mxu0 0
        %1929 = vmatmul.mubr.bf16.gmra.mxu0 %v1891
        %v1930 = vpop.f32.mrf.mxu0
        %v1931 = vadd.f32 0.0, %v1930
        %v1932 = vpop.f32.mrf.mxu0
        %v1933 = vpop.f32.mrf.mxu0
        %v1934 = vpop.f32.mrf.mxu0
        %1935 = vdwg.mxu0
        %v1936 = vsel %vm1825, %v1931, -inf
        %1937 = vmax.xlane.f32.xlu0 %v1936
        %v1938 = vpop.xlane.xlu0 %1937
        %v1939 = vsub.f32 %v1931, %v1938
        %v1940 = vmul.f32 %v1939, 1.442695
        %v1941 = vpow.pop %v1940
        %v1942 = vsel %vm1825, %v1941, 0.0
        %1943 = vadd.xlane.f32.xlu0 %v1942
        %v1944 = vpop.xlane.xlu0 %1943
        %v1945 = vrcp.pop %v1944
        %v1946 = vmul.f32 %v1941, %v1945
        %v1947 = vadd.f32 %v1836, %v1946
        %v1948 = vpack.c.bf16 %v1946, %v1946
        %1949 = vrot.lane.b32.xlu0 %v1778, 88
        %v1950 = vpop.permute.xlu0 %1949
        %v1953 = vsel %vm1825, %v1948, 0
        %1955 = vmatprep.subr.bf16.mxu0 0
        %1956 = vmatpush1.bf16.msra.mxu0 0
        %1957 = vmatprep.subr.bf16.mxu0 0
        %1958 = vmatpush1.bf16.msra.mxu0 0
        %1959 = vmatprep.subr.bf16.mxu0 0
        %1960 = vmatpush1.bf16.msra.mxu0 0
        %1961 = vmatprep.subr.bf16.mxu0 0
        %1962 = vmatpush1.bf16.msra.mxu0 0
        %1963 = vmatprep.subr.bf16.mxu0 0
        %1964 = vmatpush1.bf16.msra.mxu0 0
        %1965 = vmatprep.subr.bf16.mxu0 0
        %1966 = vmatpush1.bf16.msra.mxu0 0
        %1967 = vmatprep.subr.bf16.mxu0 0
        %1968 = vmatpush1.bf16.msra.mxu0 0
        %1969 = vmatprep.subr.bf16.mxu0 0
        %1970 = vmatpush1.bf16.msra.mxu0 %v1950
        %1971 = vmatprep.subr.bf16.mxu0 0
        %1972 = vmatpush2.bf16.msra.mxu0 0
        %1973 = vmatprep.subr.bf16.mxu0 0
        %1974 = vmatpush2.bf16.msra.mxu0 0
        %1975 = vmatprep.subr.bf16.mxu0 0
        %1976 = vmatpush2.bf16.msra.mxu0 0
        %1977 = vmatprep.subr.bf16.mxu0 0
        %1978 = vmatpush2.bf16.msra.mxu0 0
        %1979 = vmatprep.subr.bf16.mxu0 0
        %1980 = vmatpush2.bf16.msra.mxu0 0
        %1981 = vmatprep.subr.bf16.mxu0 0
        %1982 = vmatpush2.bf16.msra.mxu0 0
        %1983 = vmatprep.subr.bf16.mxu0 0
        %1984 = vmatpush2.bf16.msra.mxu0 0
        %1985 = vmatprep.subr.bf16.mxu0 0
        %1986 = vmatpush2.bf16.msra.mxu0 0
        %1987 = vmatprep.mubr.bf16.mxu0 0
        %1988 = vmatmul.mubr.bf16.gmra.mxu0 %v1953
        %v1989 = vpop.f32.mrf.mxu0
        %v1990 = vadd.f32 0.0, %v1989
        %v1991 = vpop.f32.mrf.mxu0
        %v1992 = vpop.f32.mrf.mxu0
        %v1993 = vpop.f32.mrf.mxu0
        %1994 = vdwg.mxu0
        %1996 = vrot.lane.b32.xlu0 %v1990, 8
        %v1997 = vpop.permute.xlu0 %1996
        %1999 = vst.msk [vmem:[#allocation4] sm:$0xff] %vm1371, %v1997
        %2000 = vrot.lane.b32.xlu0 %v1773, 112
        %v2001 = vpop.permute.xlu0 %2000
        %2002 = vrot.lane.b32.xlu0 %v1778, 112
        %v2003 = vpop.permute.xlu0 %2002
        %v2005 = vsel %vm1144, %v2001, 0
        %v2008 = vsel %vm1144, %v2003, 0
        %2010 = vmatprep.subr.bf16.mxu0 0
        %2011 = vmatpush1.bf16.xpose.msra.mxu0 0
        %2012 = vmatprep.subr.bf16.mxu0 0
        %2013 = vmatpush1.bf16.xpose.msra.mxu0 0
        %2014 = vmatprep.subr.bf16.mxu0 0
        %2015 = vmatpush1.bf16.xpose.msra.mxu0 0
        %2016 = vmatprep.subr.bf16.mxu0 0
        %2017 = vmatpush1.bf16.xpose.msra.mxu0 0
        %2018 = vmatprep.subr.bf16.mxu0 0
        %2019 = vmatpush1.bf16.xpose.msra.mxu0 0
        %2020 = vmatprep.subr.bf16.mxu0 0
        %2021 = vmatpush1.bf16.xpose.msra.mxu0 0
        %2022 = vmatprep.subr.bf16.mxu0 0
        %2023 = vmatpush1.bf16.xpose.msra.mxu0 0
        %2024 = vmatprep.subr.bf16.mxu0 0
        %2025 = vmatpush1.bf16.xpose.msra.mxu0 %v2008
        %2026 = vmatprep.subr.bf16.mxu0 0
        %2027 = vmatpush2.bf16.xpose.msra.mxu0 0
        %2028 = vmatprep.subr.bf16.mxu0 0
        %2029 = vmatpush2.bf16.xpose.msra.mxu0 0
        %2030 = vmatprep.subr.bf16.mxu0 0
        %2031 = vmatpush2.bf16.xpose.msra.mxu0 0
        %2032 = vmatprep.subr.bf16.mxu0 0
        %2033 = vmatpush2.bf16.xpose.msra.mxu0 0
        %2034 = vmatprep.subr.bf16.mxu0 0
        %2035 = vmatpush2.bf16.xpose.msra.mxu0 0
        %2036 = vmatprep.subr.bf16.mxu0 0
        %2037 = vmatpush2.bf16.xpose.msra.mxu0 0
        %2038 = vmatprep.subr.bf16.mxu0 0
        %2039 = vmatpush2.bf16.xpose.msra.mxu0 0
        %2040 = vmatprep.subr.bf16.mxu0 0
        %2041 = vmatpush2.bf16.xpose.msra.mxu0 0
        %2042 = vmatprep.mubr.bf16.mxu0 0
        %2043 = vmatmul.mubr.bf16.gmra.mxu0 %v2005
        %v2044 = vpop.f32.mrf.mxu0
        %v2045 = vadd.f32 0.0, %v2044
        %v2046 = vpop.f32.mrf.mxu0
        %v2047 = vpop.f32.mrf.mxu0
        %v2048 = vpop.f32.mrf.mxu0
        %2049 = vdwg.mxu0
        %v2050 = vsel %vm1825, %v2045, -inf
        %2051 = vmax.xlane.f32.xlu0 %v2050
        %v2052 = vpop.xlane.xlu0 %2051
        %v2053 = vsub.f32 %v2045, %v2052
        %v2054 = vmul.f32 %v2053, 1.442695
        %v2055 = vpow.pop %v2054
        %v2056 = vsel %vm1825, %v2055, 0.0
        %2057 = vadd.xlane.f32.xlu0 %v2056
        %v2058 = vpop.xlane.xlu0 %2057
        %v2059 = vrcp.pop %v2058
        %v2060 = vmul.f32 %v2055, %v2059
        %v2061 = vadd.f32 %v1947, %v2060
        %v2062 = vpack.c.bf16 %v2060, %v2060
        %2063 = vrot.lane.b32.xlu0 %v1778, 80
        %v2064 = vpop.permute.xlu0 %2063
        %v2067 = vsel %vm1825, %v2062, 0
        %2069 = vmatprep.subr.bf16.mxu0 0
        %2070 = vmatpush1.bf16.msra.mxu0 0
        %2071 = vmatprep.subr.bf16.mxu0 0
        %2072 = vmatpush1.bf16.msra.mxu0 0
        %2073 = vmatprep.subr.bf16.mxu0 0
        %2074 = vmatpush1.bf16.msra.mxu0 0
        %2075 = vmatprep.subr.bf16.mxu0 0
        %2076 = vmatpush1.bf16.msra.mxu0 0
        %2077 = vmatprep.subr.bf16.mxu0 0
        %2078 = vmatpush1.bf16.msra.mxu0 0
        %2079 = vmatprep.subr.bf16.mxu0 0
        %2080 = vmatpush1.bf16.msra.mxu0 0
        %2081 = vmatprep.subr.bf16.mxu0 0
        %2082 = vmatpush1.bf16.msra.mxu0 0
        %2083 = vmatprep.subr.bf16.mxu0 0
        %2084 = vmatpush1.bf16.msra.mxu0 %v2064
        %2085 = vmatprep.subr.bf16.mxu0 0
        %2086 = vmatpush2.bf16.msra.mxu0 0
        %2087 = vmatprep.subr.bf16.mxu0 0
        %2088 = vmatpush2.bf16.msra.mxu0 0
        %2089 = vmatprep.subr.bf16.mxu0 0
        %2090 = vmatpush2.bf16.msra.mxu0 0
        %2091 = vmatprep.subr.bf16.mxu0 0
        %2092 = vmatpush2.bf16.msra.mxu0 0
        %2093 = vmatprep.subr.bf16.mxu0 0
        %2094 = vmatpush2.bf16.msra.mxu0 0
        %2095 = vmatprep.subr.bf16.mxu0 0
        %2096 = vmatpush2.bf16.msra.mxu0 0
        %2097 = vmatprep.subr.bf16.mxu0 0
        %2098 = vmatpush2.bf16.msra.mxu0 0
        %2099 = vmatprep.subr.bf16.mxu0 0
        %2100 = vmatpush2.bf16.msra.mxu0 0
        %2101 = vmatprep.mubr.bf16.mxu0 0
        %2102 = vmatmul.mubr.bf16.gmra.mxu0 %v2067
        %v2103 = vpop.f32.mrf.mxu0
        %v2104 = vadd.f32 0.0, %v2103
        %v2105 = vpop.f32.mrf.mxu0
        %v2106 = vpop.f32.mrf.mxu0
        %v2107 = vpop.f32.mrf.mxu0
        %2108 = vdwg.mxu0
        %2110 = vrot.lane.b32.xlu0 %v2104, 16
        %v2111 = vpop.permute.xlu0 %2110
        %2113 = vst.msk [vmem:[#allocation4] sm:$0xff] %vm1487, %v2111
        %2114 = vrot.lane.b32.xlu0 %v1773, 104
        %v2115 = vpop.permute.xlu0 %2114
        %2116 = vrot.lane.b32.xlu0 %v1778, 104
        %v2117 = vpop.permute.xlu0 %2116
        %v2119 = vsel %vm1144, %v2115, 0
        %v2122 = vsel %vm1144, %v2117, 0
        %2124 = vmatprep.subr.bf16.mxu0 0
        %2125 = vmatpush1.bf16.xpose.msra.mxu0 0
        %2126 = vmatprep.subr.bf16.mxu0 0
        %2127 = vmatpush1.bf16.xpose.msra.mxu0 0
        %2128 = vmatprep.subr.bf16.mxu0 0
        %2129 = vmatpush1.bf16.xpose.msra.mxu0 0
        %2130 = vmatprep.subr.bf16.mxu0 0
        %2131 = vmatpush1.bf16.xpose.msra.mxu0 0
        %2132 = vmatprep.subr.bf16.mxu0 0
        %2133 = vmatpush1.bf16.xpose.msra.mxu0 0
        %2134 = vmatprep.subr.bf16.mxu0 0
        %2135 = vmatpush1.bf16.xpose.msra.mxu0 0
        %2136 = vmatprep.subr.bf16.mxu0 0
        %2137 = vmatpush1.bf16.xpose.msra.mxu0 0
        %2138 = vmatprep.subr.bf16.mxu0 0
        %2139 = vmatpush1.bf16.xpose.msra.mxu0 %v2122
        %2140 = vmatprep.subr.bf16.mxu0 0
        %2141 = vmatpush2.bf16.xpose.msra.mxu0 0
        %2142 = vmatprep.subr.bf16.mxu0 0
        %2143 = vmatpush2.bf16.xpose.msra.mxu0 0
        %2144 = vmatprep.subr.bf16.mxu0 0
        %2145 = vmatpush2.bf16.xpose.msra.mxu0 0
        %2146 = vmatprep.subr.bf16.mxu0 0
        %2147 = vmatpush2.bf16.xpose.msra.mxu0 0
        %2148 = vmatprep.subr.bf16.mxu0 0
        %2149 = vmatpush2.bf16.xpose.msra.mxu0 0
        %2150 = vmatprep.subr.bf16.mxu0 0
        %2151 = vmatpush2.bf16.xpose.msra.mxu0 0
        %2152 = vmatprep.subr.bf16.mxu0 0
        %2153 = vmatpush2.bf16.xpose.msra.mxu0 0
        %2154 = vmatprep.subr.bf16.mxu0 0
        %2155 = vmatpush2.bf16.xpose.msra.mxu0 0
        %2156 = vmatprep.mubr.bf16.mxu0 0
        %2157 = vmatmul.mubr.bf16.gmra.mxu0 %v2119
        %v2158 = vpop.f32.mrf.mxu0
        %v2159 = vadd.f32 0.0, %v2158
        %v2160 = vpop.f32.mrf.mxu0
        %v2161 = vpop.f32.mrf.mxu0
        %v2162 = vpop.f32.mrf.mxu0
        %2163 = vdwg.mxu0
        %v2164 = vsel %vm1825, %v2159, -inf
        %2165 = vmax.xlane.f32.xlu0 %v2164
        %v2166 = vpop.xlane.xlu0 %2165
        %v2167 = vsub.f32 %v2159, %v2166
        %v2168 = vmul.f32 %v2167, 1.442695
        %v2169 = vpow.pop %v2168
        %v2170 = vsel %vm1825, %v2169, 0.0
        %2171 = vadd.xlane.f32.xlu0 %v2170
        %v2172 = vpop.xlane.xlu0 %2171
        %v2173 = vrcp.pop %v2172
        %v2174 = vmul.f32 %v2169, %v2173
        %v2175 = vadd.f32 %v2061, %v2174
        %v2176 = vpack.c.bf16 %v2174, %v2174
        %2177 = vrot.lane.b32.xlu0 %v1778, 72
        %v2178 = vpop.permute.xlu0 %2177
        %v2181 = vsel %vm1825, %v2176, 0
        %2183 = vmatprep.subr.bf16.mxu0 0
        %2184 = vmatpush1.bf16.msra.mxu0 0
        %2185 = vmatprep.subr.bf16.mxu0 0
        %2186 = vmatpush1.bf16.msra.mxu0 0
        %2187 = vmatprep.subr.bf16.mxu0 0
        %2188 = vmatpush1.bf16.msra.mxu0 0
        %2189 = vmatprep.subr.bf16.mxu0 0
        %2190 = vmatpush1.bf16.msra.mxu0 0
        %2191 = vmatprep.subr.bf16.mxu0 0
        %2192 = vmatpush1.bf16.msra.mxu0 0
        %2193 = vmatprep.subr.bf16.mxu0 0
        %2194 = vmatpush1.bf16.msra.mxu0 0
        %2195 = vmatprep.subr.bf16.mxu0 0
        %2196 = vmatpush1.bf16.msra.mxu0 0
        %2197 = vmatprep.subr.bf16.mxu0 0
        %2198 = vmatpush1.bf16.msra.mxu0 %v2178
        %2199 = vmatprep.subr.bf16.mxu0 0
        %2200 = vmatpush2.bf16.msra.mxu0 0
        %2201 = vmatprep.subr.bf16.mxu0 0
        %2202 = vmatpush2.bf16.msra.mxu0 0
        %2203 = vmatprep.subr.bf16.mxu0 0
        %2204 = vmatpush2.bf16.msra.mxu0 0
        %2205 = vmatprep.subr.bf16.mxu0 0
        %2206 = vmatpush2.bf16.msra.mxu0 0
        %2207 = vmatprep.subr.bf16.mxu0 0
        %2208 = vmatpush2.bf16.msra.mxu0 0
        %2209 = vmatprep.subr.bf16.mxu0 0
        %2210 = vmatpush2.bf16.msra.mxu0 0
        %2211 = vmatprep.subr.bf16.mxu0 0
        %2212 = vmatpush2.bf16.msra.mxu0 0
        %2213 = vmatprep.subr.bf16.mxu0 0
        %2214 = vmatpush2.bf16.msra.mxu0 0
        %2215 = vmatprep.mubr.bf16.mxu0 0
        %2216 = vmatmul.mubr.bf16.gmra.mxu0 %v2181
        %v2217 = vpop.f32.mrf.mxu0
        %v2218 = vadd.f32 0.0, %v2217
        %v2219 = vpop.f32.mrf.mxu0
        %v2220 = vpop.f32.mrf.mxu0
        %v2221 = vpop.f32.mrf.mxu0
        %2222 = vdwg.mxu0
        %2224 = vrot.lane.b32.xlu0 %v2218, 24
        %v2225 = vpop.permute.xlu0 %2224
        %2227 = vst.msk [vmem:[#allocation4] sm:$0xff] %vm1603, %v2225
        %v2228 = vld [vmem:[#allocation4] sm:$0xff]
        %v2229 = vpack.c.bf16 %v2228, %v2228
        %v2231 = vlaneseq
        %v2232 = vshrl.u32 %v2231, 7
        %v2233 = vsub.s32 0, %v2232
        %v2234 = vrot.slane %v1710, %v2233
        %v2240 = vunpack.c.l.b16 %v1706
        %v2241 = vunpack.c.l.b16 %v1707
        %v2242 = vunpack.c.l.b16 %v1708
        %v2243 = vunpack.c.l.b16 %v1709
        %v2244 = vpack.c.b16 %v2241, %v2240
        %v2245 = vpack.c.b16 %v2243, %v2242
        %v2249 = vsel %vm1099, %v2229, 0
        %2251 = vmatprep.subr.bf16.mxu0 0
        %2252 = vmatpush1.bf16.msra.mxu0 0
        %2253 = vmatprep.subr.bf16.mxu0 0
        %2254 = vmatpush1.bf16.msra.mxu0 0
        %2255 = vmatprep.subr.bf16.mxu0 0
        %2256 = vmatpush1.bf16.msra.mxu0 0
        %2257 = vmatprep.subr.bf16.mxu0 0
        %2258 = vmatpush1.bf16.msra.mxu0 0
        %2259 = vmatprep.subr.bf16.mxu0 0
        %2260 = vmatpush1.bf16.msra.mxu0 0
        %2261 = vmatprep.subr.bf16.mxu0 0
        %2262 = vmatpush1.bf16.msra.mxu0 0
        %2263 = vmatprep.subr.bf16.mxu0 0
        %2264 = vmatpush1.bf16.msra.mxu0 %v2245
        %2265 = vmatprep.subr.bf16.mxu0 0
        %2266 = vmatpush1.bf16.msra.mxu0 %v2244
        %2267 = vmatprep.subr.bf16.mxu0 0
        %2268 = vmatpush2.bf16.msra.mxu0 0
        %2269 = vmatprep.subr.bf16.mxu0 0
        %2270 = vmatpush2.bf16.msra.mxu0 0
        %2271 = vmatprep.subr.bf16.mxu0 0
        %2272 = vmatpush2.bf16.msra.mxu0 0
        %2273 = vmatprep.subr.bf16.mxu0 0
        %2274 = vmatpush2.bf16.msra.mxu0 0
        %2275 = vmatprep.subr.bf16.mxu0 0
        %2276 = vmatpush2.bf16.msra.mxu0 0
        %2277 = vmatprep.subr.bf16.mxu0 0
        %2278 = vmatpush2.bf16.msra.mxu0 0
        %2279 = vmatprep.subr.bf16.mxu0 0
        %2280 = vmatpush2.bf16.msra.mxu0 0
        %2281 = vmatprep.subr.bf16.mxu0 0
        %2282 = vmatpush2.bf16.msra.mxu0 0
        %2283 = vmatprep.mubr.bf16.mxu0 0
        %2284 = vmatmul.mubr.bf16.gmra.mxu0 %v2249
        %v2285 = vpop.f32.mrf.mxu0
        %v2286 = vadd.f32 %v2234, %v2285
        %v2287 = vpop.f32.mrf.mxu0
        %v2288 = vpop.f32.mrf.mxu0
        %v2289 = vpop.f32.mrf.mxu0
        %2290 = vdwg.mxu0
        %v2291 = vmul.f32 %v2175, 0.25
        %v2292 = vadd.f32 %v1698, %v2286
        %v2293 = vld [vmem:[%s20] sm:$0x1]
        %v2294 = vld [vmem:[%s21] sm:$0x1]
        %v2295 = vsel %vm1099, %v2292, 0.0
        %2296 = vadd.xlane.f32.xlu0 %v2295
        %v2297 = vpop.xlane.xlu0 %2296
        %v2298 = vmul.f32 %v2297, %v1674
        %v2299 = vsub.f32 %v2292, %v2298
        %v2300 = vmul.f32 %v2299, %v2299
        %v2301 = vsel %vm1099, %v2300, 0.0
        %2302 = vadd.xlane.f32.xlu0 %v2301
        %v2303 = vpop.xlane.xlu0 %2302
        %v2304 = vmul.f32 %v2303, %v1674
        %v2305 = vadd.f32 %v2304, 1e-05
        %v2306 = vrsqrt.pop %v2305
        %v2307 = vmul.f32 %v2299, %v2306
        %v2309 = vlaneseq
        %v2310 = vshrl.u32 %v2309, 7
        %v2311 = vsub.s32 0, %v2310
        %v2312 = vrot.slane %v2293, %v2311
        %v2314 = vmul.f32 %v2307, %v2312
        %v2316 = vlaneseq
        %v2317 = vshrl.u32 %v2316, 7
        %v2318 = vsub.s32 0, %v2317
        %v2319 = vrot.slane %v2294, %v2318
        %v2321 = vadd.f32 %v2314, %v2319
        %v2322 = vpack.c.bf16 %v2321, %v2321
        %v2323 = vld [vmem:[#allocation16] sm:$0xf]
        %v2324 = vld [vmem:[#allocation16 + $0x4] sm:$0xf]
        %v2325 = vld [vmem:[#allocation16 + $0x8] sm:$0xf]
        %v2326 = vld [vmem:[#allocation16 + $0xc] sm:$0xf]
        %v2327 = vld [vmem:[%s15] sm:$0x1]
        %v2329 = vlaneseq
        %v2330 = vshrl.u32 %v2329, 7
        %v2331 = vsub.s32 0, %v2330
        %v2332 = vrot.slane %v2327, %v2331
        %v2338 = vunpack.c.l.b16 %v2323
        %v2339 = vunpack.c.l.b16 %v2324
        %v2340 = vunpack.c.l.b16 %v2325
        %v2341 = vunpack.c.l.b16 %v2326
        %v2342 = vpack.c.b16 %v2339, %v2338
        %v2343 = vpack.c.b16 %v2341, %v2340
        %v2347 = vsel %vm1099, %v2322, 0
        %2349 = vmatprep.subr.bf16.mxu0 0
        %2350 = vmatpush1.bf16.msra.mxu0 0
        %2351 = vmatprep.subr.bf16.mxu0 0
        %2352 = vmatpush1.bf16.msra.mxu0 0
        %2353 = vmatprep.subr.bf16.mxu0 0
        %2354 = vmatpush1.bf16.msra.mxu0 0
        %2355 = vmatprep.subr.bf16.mxu0 0
        %2356 = vmatpush1.bf16.msra.mxu0 0
        %2357 = vmatprep.subr.bf16.mxu0 0
        %2358 = vmatpush1.bf16.msra.mxu0 0
        %2359 = vmatprep.subr.bf16.mxu0 0
        %2360 = vmatpush1.bf16.msra.mxu0 0
        %2361 = vmatprep.subr.bf16.mxu0 0
        %2362 = vmatpush1.bf16.msra.mxu0 %v2343
        %2363 = vmatprep.subr.bf16.mxu0 0
        %2364 = vmatpush1.bf16.msra.mxu0 %v2342
        %2365 = vmatprep.subr.bf16.mxu0 0
        %2366 = vmatpush2.bf16.msra.mxu0 0
        %2367 = vmatprep.subr.bf16.mxu0 0
        %2368 = vmatpush2.bf16.msra.mxu0 0
        %2369 = vmatprep.subr.bf16.mxu0 0
        %2370 = vmatpush2.bf16.msra.mxu0 0
        %2371 = vmatprep.subr.bf16.mxu0 0
        %2372 = vmatpush2.bf16.msra.mxu0 0
        %2373 = vmatprep.subr.bf16.mxu0 0
        %2374 = vmatpush2.bf16.msra.mxu0 0
        %2375 = vmatprep.subr.bf16.mxu0 0
        %2376 = vmatpush2.bf16.msra.mxu0 0
        %2377 = vmatprep.subr.bf16.mxu0 0
        %2378 = vmatpush2.bf16.msra.mxu0 0
        %2379 = vmatprep.subr.bf16.mxu0 0
        %2380 = vmatpush2.bf16.msra.mxu0 0
        %2381 = vmatprep.mubr.bf16.mxu0 0
        %2382 = vmatmul.mubr.bf16.gmra.mxu0 %v2347
        %v2383 = vpop.f32.mrf.mxu0
        %v2384 = vadd.f32 %v2332, %v2383
        %v2385 = vpop.f32.mrf.mxu0
        %v2386 = vpop.f32.mrf.mxu0
        %v2387 = vpop.f32.mrf.mxu0
        %2388 = vdwg.mxu0
        %v2389 = vmax.f32 %v2384, 0.0
        %v2390 = vpack.c.bf16 %v2389, %v2389
        %v2391 = vld [vmem:[%s16] sm:$0xf]
        %v2392 = vld [vmem:[%s16 + $0x4] sm:$0xf]
        %v2393 = vld [vmem:[%s16 + $0x8] sm:$0xf]
        %v2394 = vld [vmem:[%s16 + $0xc] sm:$0xf]
        %v2395 = vld [vmem:[%s16 + $0x10] sm:$0xf]
        %v2396 = vld [vmem:[%s16 + $0x14] sm:$0xf]
        %v2397 = vld [vmem:[%s16 + $0x18] sm:$0xf]
        %v2398 = vld [vmem:[%s16 + $0x1c] sm:$0xf]
        %v2399 = vld [vmem:[%s17] sm:$0x1]
        %v2401 = vlaneseq
        %v2402 = vshrl.u32 %v2401, 7
        %v2403 = vsub.s32 0, %v2402
        %v2404 = vrot.slane %v2399, %v2403
        %v2414 = vunpack.c.l.b16 %v2391
        %v2415 = vunpack.c.l.b16 %v2392
        %v2416 = vunpack.c.l.b16 %v2393
        %v2417 = vunpack.c.l.b16 %v2394
        %v2418 = vunpack.c.l.b16 %v2395
        %v2419 = vunpack.c.l.b16 %v2396
        %v2420 = vunpack.c.l.b16 %v2397
        %v2421 = vunpack.c.l.b16 %v2398
        %v2422 = vpack.c.b16 %v2415, %v2414
        %v2423 = vpack.c.b16 %v2417, %v2416
        %v2424 = vpack.c.b16 %v2419, %v2418
        %v2425 = vpack.c.b16 %v2421, %v2420
        %vm2430 = vcmask 523264
        %v2432 = vsel %vm2430, %v2390, 0
        %2434 = vmatprep.subr.bf16.mxu0 0
        %2435 = vmatpush1.bf16.msra.mxu0 0
        %2436 = vmatprep.subr.bf16.mxu0 0
        %2437 = vmatpush1.bf16.msra.mxu0 0
        %2438 = vmatprep.subr.bf16.mxu0 0
        %2439 = vmatpush1.bf16.msra.mxu0 0
        %2440 = vmatprep.subr.bf16.mxu0 0
        %2441 = vmatpush1.bf16.msra.mxu0 0
        %2442 = vmatprep.subr.bf16.mxu0 0
        %2443 = vmatpush1.bf16.msra.mxu0 %v2425
        %2444 = vmatprep.subr.bf16.mxu0 0
        %2445 = vmatpush1.bf16.msra.mxu0 %v2424
        %2446 = vmatprep.subr.bf16.mxu0 0
        %2447 = vmatpush1.bf16.msra.mxu0 %v2423
        %2448 = vmatprep.subr.bf16.mxu0 0
        %2449 = vmatpush1.bf16.msra.mxu0 %v2422
        %2450 = vmatprep.subr.bf16.mxu0 0
        %2451 = vmatpush2.bf16.msra.mxu0 0
        %2452 = vmatprep.subr.bf16.mxu0 0
        %2453 = vmatpush2.bf16.msra.mxu0 0
        %2454 = vmatprep.subr.bf16.mxu0 0
        %2455 = vmatpush2.bf16.msra.mxu0 0
        %2456 = vmatprep.subr.bf16.mxu0 0
        %2457 = vmatpush2.bf16.msra.mxu0 0
        %2458 = vmatprep.subr.bf16.mxu0 0
        %2459 = vmatpush2.bf16.msra.mxu0 0
        %2460 = vmatprep.subr.bf16.mxu0 0
        %2461 = vmatpush2.bf16.msra.mxu0 0
        %2462 = vmatprep.subr.bf16.mxu0 0
        %2463 = vmatpush2.bf16.msra.mxu0 0
        %2464 = vmatprep.subr.bf16.mxu0 0
        %2465 = vmatpush2.bf16.msra.mxu0 0
        %2466 = vmatprep.mubr.bf16.mxu0 0
        %2467 = vmatmul.mubr.bf16.gmra.mxu0 %v2432
        %v2468 = vpop.f32.mrf.mxu0
        %v2469 = vadd.f32 %v2404, %v2468
        %v2470 = vpop.f32.mrf.mxu0
        %v2471 = vpop.f32.mrf.mxu0
        %v2472 = vpop.f32.mrf.mxu0
        %2473 = vdwg.mxu0
        %v2474 = vadd.f32 %v2321, %v2469
        %v2475 = vld [vmem:[%s22] sm:$0x1]
        %v2476 = vld [vmem:[%s23] sm:$0x1]
        %v2477 = vsel %vm1099, %v2474, 0.0
        %2478 = vadd.xlane.f32.xlu0 %v2477
        %v2479 = vpop.xlane.xlu0 %2478
        %v2480 = vmul.f32 %v2479, %v1674
        %v2481 = vsub.f32 %v2474, %v2480
        %v2482 = vmul.f32 %v2481, %v2481
        %v2483 = vsel %vm1099, %v2482, 0.0
        %2484 = vadd.xlane.f32.xlu0 %v2483
        %v2485 = vpop.xlane.xlu0 %2484
        %v2486 = vmul.f32 %v2485, %v1674
        %v2487 = vadd.f32 %v2486, 1e-05
        %v2488 = vrsqrt.pop %v2487
        %v2489 = vmul.f32 %v2481, %v2488
        %v2491 = vlaneseq
        %v2492 = vshrl.u32 %v2491, 7
        %v2493 = vsub.s32 0, %v2492
        %v2494 = vrot.slane %v2475, %v2493
        %v2496 = vmul.f32 %v2489, %v2494
        %v2498 = vlaneseq
        %v2499 = vshrl.u32 %v2498, 7
        %v2500 = vsub.s32 0, %v2499
        %v2501 = vrot.slane %v2476, %v2500
        %v2503 = vadd.f32 %v2496, %v2501
        %2504 = vst.msk [vmem:[%s892] sm:$0xff] %vm1099, %v2503
        %2505 = vst.msk [vmem:[%s899] sm:$0xff] %vm1825, %v2291
        %s2506 = sand.u32 %s583, 1
        %s2507 = scalar_lea.sflag [#allocation7], %s2506
        %s2508 = sand.u32 %s583, 1
        %s2509 = smul.addr %s2508, 8
        %s2510 = scalar_lea.vmem [#allocation17], %s2509
        %s2511 = sand.u32 %s611, 1
        %s2512 = scalar_lea.sflag [#allocation19], %s2511
        %s2513 = sand.u32 %s611, 1
        %s2514 = smul.addr %s2513, 8
        %s2515 = scalar_lea.vmem [#allocation18], %s2514
        // Predicated region
        $region149: #{tpu_custom_call.1} parent=115 // pred_check
          %p2516 = pneg %p593
        $region150: #{tpu_custom_call.1} parent=115 // pred_check_branch
          %2518 = sbr.rel (%p2516) target = $region152
        $region151: #{tpu_custom_call.1} parent=115 // pred_region
          %s2520 = ssub.s32 128, 128
          %2521 = vsyncadd %s2507, %s2520
          %s2522 = sadd.s32 %s52, %s51
          %s2523 = smul.addr %s2522, 128
          %s2524 = scalar_lea.hbm %s24, %s2523
          %s2526 = sshll.u32 %s2510, 4
          %s2527 = int_to_ptr.vmem [resolvable:$true] %s2526
          %2529 = dma.vmem_to_hbm [thread:$0]  %s2527, 128, %s2524, %s2507
        $region152: #{tpu_custom_call.1} parent=115 // pred_fallthru
          _
        // Predicated region
        $region153: #{tpu_custom_call.1} parent=115 // pred_check
          %p2530 = pneg %p621
        $region154: #{tpu_custom_call.1} parent=115 // pred_check_branch
          %2532 = sbr.rel (%p2530) target = $region156
        $region155: #{tpu_custom_call.1} parent=115 // pred_region
          %s2534 = ssub.s32 128, 128
          %2535 = vsyncadd %s2512, %s2534
          %s2536 = sadd.s32 %s52, %s51
          %s2537 = smul.addr %s2536, 128
          %s2538 = scalar_lea.hbm %s25, %s2537
          %s2540 = sshll.u32 %s2515, 4
          %s2541 = int_to_ptr.vmem [resolvable:$true] %s2540
          %2543 = dma.vmem_to_hbm [thread:$0]  %s2541, 128, %s2538, %s2512
        $region156: #{tpu_custom_call.1} parent=115 // pred_fallthru
          _
      $region116: #{tpu_custom_call.1} parent=5 // pred_fallthru
        _
      %p2544 = scmp.le.s32.totalorder 2, %s42
      // Predicated region
      $region157: #{tpu_custom_call.1} parent=5 // pred_check
        %p2545 = pneg %p2544
      $region158: #{tpu_custom_call.1} parent=5 // pred_check_branch
        %2547 = sbr.rel (%p2545) target = $region160
      $region159: #{tpu_custom_call.1} parent=5 // pred_region
        %s2548 = ssub.s32 %s42, 2
        // Predicated region
        $region161: #{tpu_custom_call.1} parent=159 // pred_check
          %p2549 = pneg %p599
        $region162: #{tpu_custom_call.1} parent=159 // pred_check_branch
          %2551 = sbr.rel (%p2549) target = $region164
        $region163: #{tpu_custom_call.1} parent=159 // pred_region
          %s2552 = sand.u32 %s584, 1
          %s2553 = scalar_lea.sflag [#allocation7], %s2552
          %s2554 = sand.u32 %s584, 1
          %s2555 = smul.addr %s2554, 8
          %s2556 = scalar_lea.vmem [#allocation17], %s2555
          %2557 = dma.done %s2553, 128
        $region164: #{tpu_custom_call.1} parent=159 // pred_fallthru
          _
        // Predicated region
        $region165: #{tpu_custom_call.1} parent=159 // pred_check
          %p2558 = pneg %p627
        $region166: #{tpu_custom_call.1} parent=159 // pred_check_branch
          %2560 = sbr.rel (%p2558) target = $region168
        $region167: #{tpu_custom_call.1} parent=159 // pred_region
          %s2561 = sand.u32 %s612, 1
          %s2562 = scalar_lea.sflag [#allocation19], %s2561
          %s2563 = sand.u32 %s612, 1
          %s2564 = smul.addr %s2563, 8
          %s2565 = scalar_lea.vmem [#allocation18], %s2564
          %2566 = dma.done %s2562, 128
        $region168: #{tpu_custom_call.1} parent=159 // pred_fallthru
          _
      $region160: #{tpu_custom_call.1} parent=5 // pred_fallthru
        _
    $region6: #{tpu_custom_call.1} parent=1 // loop_footer
      %s46 = sadd.s32 1, %s42
    $region7: #{tpu_custom_call.1} parent=1 // loop_footer_branch
      %41 = sbr.rel target = $region3
    $region8: #{tpu_custom_call.1} parent=1 // loop_exit
      _
    %2567 = vsyncpa [#allocation6], 1
    %s2568 = scalar_lea.sflag [#allocation6], 1
    %2569 = vsyncpa %s2568, 1
    %2570 = vsyncpa [#allocation9], 1
    %2571 = vsyncpa [#allocation12], 1
    %2572 = vsyncpa [#allocation15], 1
    %2573 = vsyncpa [#allocation7], 1
    %s2574 = scalar_lea.sflag [#allocation7], 1
    %2575 = vsyncpa %s2574, 1
    %2576 = vsyncpa [#allocation19], 1
    %s2577 = scalar_lea.sflag [#allocation19], 1
    %2578 = vsyncpa %s2577, 1

</llo_original>
